<compile_context>
chip_gen: v7x
topology: tpu7x:2x2x1
jax: 0.10.0
libtpu: 0.0.40
codegen_flags: <defaults>
</compile_context>

<pallas_src>
import jax
import jax.numpy as jnp
from jax.experimental import pallas as pl
from jax.experimental.pallas import tpu as pltpu

BN_EPS = 1e-5


# --------------------------------------------------------------------------
# Fused whole-stack kernel: for each block,
#   expand(1x1) -> depthwise(3x3, stride) -> project(1x1) (+ residual)
# --------------------------------------------------------------------------
def _mb_stack_kernel_factory(block_cfgs):
    """block_cfgs: tuple of static per-block configs
    (has_expand, use_sel, use_shortcut, H, W, Ho, Wo)."""

    def kernel(*refs):
        refs = list(refs)
        x_ref = refs.pop(0)

        # Per-block weight refs, in the same order the wrapper packed them.
        blk = []
        for cfg in block_cfgs:
            d = {}
            if cfg["has_expand"]:
                d["w_exp"] = refs.pop(0)
                d["b_exp"] = refs.pop(0)
            d["w_dw"] = refs.pop(0)
            d["b_dw"] = refs.pop(0)
            d["w_proj"] = refs.pop(0)
            d["b_proj"] = refs.pop(0)
            if cfg["use_sel"]:
                d["sel"] = refs.pop(0)
            blk.append(d)
        o_ref = refs.pop(0)
        epad_refs = refs                      # one VMEM halo scratch per block

        H0, W0, C0 = x_ref.shape[1], x_ref.shape[2], x_ref.shape[3]
        # Carried activation, flattened (spatial, channels) for the 1x1 matmuls.
        x2d = x_ref[0].reshape(H0 * W0, C0).astype(jnp.float32)

        for cfg, d, epad_ref in zip(block_cfgs, blk, epad_refs):
            H, W = cfg["H"], cfg["W"]
            Ho, Wo = cfg["Ho"], cfg["Wo"]
            Cm = d["w_dw"].shape[2]

            # ---- 1x1 expand + BN bias + ReLU6 (BN scale pre-folded) ----
            if cfg["has_expand"]:
                e = jnp.dot(x2d, d["w_exp"][...],
                            preferred_element_type=jnp.float32)
                e = jnp.clip(e + d["b_exp"][...], 0.0, 6.0)
            else:
                e = x2d

            # ---- build zero halo in VMEM scratch ----
            # Interior sits at sublane offset 8 (aligned -> unmasked store);
            # halo columns 7 and 8+W / rows 0 and H+1 stay zero.
            epad_ref[...] = jnp.zeros_like(epad_ref)
            epad_ref[1:H + 1, 8:8 + W, :] = e.reshape(H, W, Cm)
            epad = epad_ref[...]

            # ---- 3x3 depthwise (stride-1 stencil in VMEM) + BN bias + ReLU6 ----
            w_dw = d["w_dw"][...]
            acc = jnp.zeros((H, W, Cm), jnp.float32)
            for dh in range(3):
                for dw in range(3):
                    acc = acc + epad[dh:dh + H, 7 + dw:7 + dw + W, :] * w_dw[dh, dw, :]
            y = jnp.clip(acc + d["b_dw"][0], 0.0, 6.0)
            y2d = y.reshape(H * W, Cm)

            # ---- stride > 1: pick strided output pixels in-kernel (MXU) ----
            if cfg["use_sel"]:
                y2d = jnp.dot(d["sel"][...], y2d,
                              preferred_element_type=jnp.float32)

            # ---- 1x1 project + BN bias (linear) + optional residual ----
            out = jnp.dot(y2d, d["w_proj"][...],
                          preferred_element_type=jnp.float32)
            out = out + d["b_proj"][...]
            if cfg["use_shortcut"]:
                out = out + x2d          # stride == 1 and C_in == C_out here
            x2d = out                    # carry to next block (stays in VMEM)

        last = block_cfgs[-1]
        o_ref[0] = x2d.reshape(last["Ho"], last["Wo"],
                               o_ref.shape[3]).astype(o_ref.dtype)

    return kernel


# --------------------------------------------------------------------------
# Parameter setup (deterministic, synthetic), BN folding, and the MB forward.
# --------------------------------------------------------------------------
def _fold_bn(gamma, beta, mean, var):
    scale = gamma / jnp.sqrt(var + BN_EPS)
    bias = beta - mean * scale
    return scale.astype(jnp.float32), bias.astype(jnp.float32)


def _rand_bn(keys, ch):
    gamma = 1.0 + 0.1 * jax.random.normal(keys[0], (ch,), jnp.float32)
    beta = 0.1 * jax.random.normal(keys[1], (ch,), jnp.float32)
    mean = 0.05 * jax.random.normal(keys[2], (ch,), jnp.float32)
    var = 0.5 + jax.random.uniform(keys[3], (ch,), jnp.float32)
    return _fold_bn(gamma, beta, mean, var)


def init_mb_params(key, ch_in, t, c, n):
    """Mirrors MB.__init__: n MBInvertedResidual blocks, expand ratio t."""
    params = []
    c1 = ch_in
    for _ in range(n):
        cm = int(round(c1 * t))
        c2 = c
        key, *ks = jax.random.split(key, 16)
        p = {}
        if t != 1:
            # expand 1x1: Conv2d(c1, cm, 1) weight (cm, c1, 1, 1) -> (c1, cm)
            p["w_exp"] = 0.2 * jax.random.normal(ks[0], (c1, cm), jnp.float32)
            p["s_exp"], p["b_exp"] = _rand_bn(ks[1:5], cm)
        # depthwise 3x3: Conv2d(cm, cm, 3, groups=cm) weight (cm,1,3,3) -> (3,3,cm)
        p["w_dw"] = 0.2 * jax.random.normal(ks[5], (3, 3, cm), jnp.float32)
        p["s_dw"], p["b_dw"] = _rand_bn(ks[6:10], cm)
        # project 1x1: Conv2d(cm, c2, 1) weight (c2, cm, 1, 1) -> (cm, c2)
        p["w_proj"] = 0.2 * jax.random.normal(ks[10], (cm, c2), jnp.float32)
        p["s_proj"], p["b_proj"] = _rand_bn(ks[11:15], c2)
        params.append(p)
        c1 = c2
    return params


def _prep_block_params(p, has_expand):
    """Fold BN scale into conv weights; keep only the bias for the kernel."""
    q = {}
    if has_expand:
        q["w_exp"] = p["w_exp"] * p["s_exp"][None, :]
        q["b_exp"] = p["b_exp"].reshape(1, -1)
    q["w_dw"] = p["w_dw"] * p["s_dw"][None, None, :]
    q["b_dw"] = p["b_dw"].reshape(1, -1)
    q["w_proj"] = p["w_proj"] * p["s_proj"][None, :]
    q["b_proj"] = p["b_proj"].reshape(1, -1)
    return q


def mb_forward(x_nchw, params, *, t, s):
    """Forward of MB as a single fused pallas_call.  x_nchw: (N, C, H, W)."""
    x = jnp.transpose(x_nchw, (0, 2, 3, 1))          # -> NHWC
    N, H, W, C = x.shape
    dtype = x.dtype

    args = [x]
    in_specs = [pl.BlockSpec((1, H, W, C), lambda n: (n, 0, 0, 0))]
    scratch_shapes = []
    block_cfgs = []

    curH, curW, curC = H, W, C
    for i, p in enumerate(params):
        stride = s if i == 0 else 1
        has_expand = (t != 1)
        cm = p["w_dw"].shape[-1]
        c2 = p["w_proj"].shape[1]
        use_shortcut = (stride == 1) and (curC == c2)
        Ho = (curH - 1) // stride + 1   # k=3, pad=1
        Wo = (curW - 1) // stride + 1
        use_sel = stride > 1

        q = _prep_block_params(p, has_expand)
        if has_expand:
            args += [q["w_exp"], q["b_exp"]]
            in_specs += [pl.BlockSpec((curC, cm), lambda n: (0, 0)),
                         pl.BlockSpec((1, cm), lambda n: (0, 0))]
        args += [q["w_dw"], q["b_dw"], q["w_proj"], q["b_proj"]]
        in_specs += [pl.BlockSpec((3, 3, cm), lambda n: (0, 0, 0)),
                     pl.BlockSpec((1, cm), lambda n: (0, 0)),
                     pl.BlockSpec((cm, c2), lambda n: (0, 0)),
                     pl.BlockSpec((1, c2), lambda n: (0, 0))]
        if use_sel:
            # 0/1 matrix picking the strided output pixels from the flattened
            # stride-1 stencil result (exact; runs on the otherwise-idle MXU).
            rows = jnp.arange(Ho * Wo)
            src = (rows // Wo) * (stride * curW) + (rows % Wo) * stride
            sel = (src[:, None] == jnp.arange(curH * curW)[None, :]).astype(jnp.float32)
            args.append(sel)
            in_specs.append(pl.BlockSpec((Ho * Wo, curH * curW), lambda n: (0, 0)))

        # Zero-halo scratch for this block's 3x3 depthwise stencil.
        scratch_shapes.append(pltpu.VMEM((curH + 2, curW + 16, cm), jnp.float32))
        block_cfgs.append(dict(has_expand=has_expand, use_sel=use_sel,
                               use_shortcut=use_shortcut,
                               H=curH, W=curW, Ho=Ho, Wo=Wo))
        curH, curW, curC = Ho, Wo, c2

    kernel = _mb_stack_kernel_factory(tuple(block_cfgs))
    out = pl.pallas_call(
        kernel,
        out_shape=jax.ShapeDtypeStruct((N, curH, curW, curC), dtype),
        grid=(N,),
        in_specs=in_specs,
        out_specs=pl.BlockSpec((1, curH, curW, curC), lambda n: (n, 0, 0, 0)),
        scratch_shapes=scratch_shapes,
        compiler_params=pltpu.CompilerParams(
            dimension_semantics=("parallel",)),
    )(*args)
    return jnp.transpose(out, (0, 3, 1, 2))          # -> NCHW


# --------------------------------------------------------------------------
# Pure-XLA reference (same folded-BN params) for a correctness sanity check.
# --------------------------------------------------------------------------
def _ref_block(x, q, *, stride, has_expand, use_shortcut):
    hp = jax.lax.Precision.HIGHEST

    def conv1x1(h, w):
        return jax.lax.conv_general_dilated(
            h, w[None, None, :, :], (1, 1), "VALID",
            dimension_numbers=("NHWC", "HWIO", "NHWC"), precision=hp)

    h = x
    if has_expand:
        h = jnp.clip(conv1x1(h, q["w_exp"]) + q["b_exp"], 0.0, 6.0)
    cm = q["w_dw"].shape[-1]
    h = jax.lax.conv_general_dilated(
        h, q["w_dw"][:, :, None, :], (stride, stride), ((1, 1), (1, 1)),
        dimension_numbers=("NHWC", "HWIO", "NHWC"),
        feature_group_count=cm, precision=hp)
    h = jnp.clip(h + q["b_dw"], 0.0, 6.0)
    h = conv1x1(h, q["w_proj"]) + q["b_proj"]
    if use_shortcut:
        h = h + x
    return h


def mb_forward_ref(x_nchw, params, *, t, s):
    x = jnp.transpose(x_nchw, (0, 2, 3, 1))
    for i, p in enumerate(params):
        stride = s if i == 0 else 1
        has_expand = (t != 1)
        c1 = x.shape[-1]
        c2 = p["w_proj"].shape[1]
        use_shortcut = (stride == 1) and (c1 == c2)
        q = _prep_block_params(p, has_expand)
        x = _ref_block(x, q, stride=stride, has_expand=has_expand,
                       use_shortcut=use_shortcut)
    return jnp.transpose(x, (0, 3, 1, 2))


if __name__ == "__main__":
    # MB(ch_in=4, t=6, c=8, n=2, s=2) on a (2, 4, 16, 16) NCHW input.
    ch_in, t, c, n, s = 4, 6, 8, 2, 2
    N, H, W = 2, 16, 16

    key = jax.random.PRNGKey(0)
    k_x, k_p = jax.random.split(key)
    x = jax.random.normal(k_x, (N, ch_in, H, W), jnp.float32)
    params = init_mb_params(k_p, ch_in, t, c, n)

    fwd = jax.jit(lambda xx, pp: mb_forward(xx, pp, t=t, s=s))
    out = jax.block_until_ready(fwd(x, params))

    # Block 0 has stride 2 -> spatial 16 -> 8; output channels = c = 8 (NCHW).
    assert out.shape == (N, c, H // s, W // s), out.shape
    assert out.dtype == jnp.float32
    assert bool(jnp.all(jnp.isfinite(out)))

    # Numerical sanity check against a pure-XLA conv reference.
    ref = jax.block_until_ready(
        jax.jit(lambda xx, pp: mb_forward_ref(xx, pp, t=t, s=s))(x, params))
    max_err = float(jnp.max(jnp.abs(out - ref)))
    assert max_err < 1e-1, f"max abs err vs reference = {max_err}"

    print("KERNEL_OK")
</pallas_src>

<mosaic_0001>
module attributes {stable_mosaic.version = 11 : i64} {
  func.func @kernel(%arg0: i32, %arg1: memref<1x16x16x4xf32, #tpu.memory_space<vmem>>, %arg2: memref<4x24xf32, #tpu.memory_space<vmem>>, %arg3: memref<1x24xf32, #tpu.memory_space<vmem>>, %arg4: memref<3x3x24xf32, #tpu.memory_space<vmem>>, %arg5: memref<1x24xf32, #tpu.memory_space<vmem>>, %arg6: memref<24x8xf32, #tpu.memory_space<vmem>>, %arg7: memref<1x8xf32, #tpu.memory_space<vmem>>, %arg8: memref<64x256xf32, #tpu.memory_space<vmem>>, %arg9: memref<8x48xf32, #tpu.memory_space<vmem>>, %arg10: memref<1x48xf32, #tpu.memory_space<vmem>>, %arg11: memref<3x3x48xf32, #tpu.memory_space<vmem>>, %arg12: memref<1x48xf32, #tpu.memory_space<vmem>>, %arg13: memref<48x8xf32, #tpu.memory_space<vmem>>, %arg14: memref<1x8xf32, #tpu.memory_space<vmem>>, %arg15: memref<1x8x8x8xf32, #tpu.memory_space<vmem>>, %arg16: memref<18x32x24xf32, #tpu.memory_space<vmem>>, %arg17: memref<10x24x48xf32, #tpu.memory_space<vmem>>) attributes {dimension_semantics = [#tpu.dimension_semantics<parallel>], iteration_bounds = array<i64: 2>, scalar_prefetch = 0 : i64, scratch_operands = 2 : i64, tpu.core_type = #tpu.core_type<tc>, window_params = [{transform_indices = @transform_0, window_bounds = array<i64: 1, 16, 16, 4>}, {pipeline_mode = #tpu.pipeline_mode<synchronous>, transform_indices = @transform_1, window_bounds = array<i64: 4, 24>}, {pipeline_mode = #tpu.pipeline_mode<synchronous>, transform_indices = @transform_2, window_bounds = array<i64: 1, 24>}, {pipeline_mode = #tpu.pipeline_mode<synchronous>, transform_indices = @transform_3, window_bounds = array<i64: 3, 3, 24>}, {pipeline_mode = #tpu.pipeline_mode<synchronous>, transform_indices = @transform_4, window_bounds = array<i64: 1, 24>}, {pipeline_mode = #tpu.pipeline_mode<synchronous>, transform_indices = @transform_5, window_bounds = array<i64: 24, 8>}, {pipeline_mode = #tpu.pipeline_mode<synchronous>, transform_indices = @transform_6, window_bounds = array<i64: 1, 8>}, {pipeline_mode = #tpu.pipeline_mode<synchronous>, transform_indices = @transform_7, window_bounds = array<i64: 64, 256>}, {pipeline_mode = #tpu.pipeline_mode<synchronous>, transform_indices = @transform_8, window_bounds = array<i64: 8, 48>}, {pipeline_mode = #tpu.pipeline_mode<synchronous>, transform_indices = @transform_9, window_bounds = array<i64: 1, 48>}, {pipeline_mode = #tpu.pipeline_mode<synchronous>, transform_indices = @transform_10, window_bounds = array<i64: 3, 3, 48>}, {pipeline_mode = #tpu.pipeline_mode<synchronous>, transform_indices = @transform_11, window_bounds = array<i64: 1, 48>}, {pipeline_mode = #tpu.pipeline_mode<synchronous>, transform_indices = @transform_12, window_bounds = array<i64: 48, 8>}, {pipeline_mode = #tpu.pipeline_mode<synchronous>, transform_indices = @transform_13, window_bounds = array<i64: 1, 8>}, {transform_indices = @transform_14, window_bounds = array<i64: 1, 8, 8, 8>}]} {
    %c0 = arith.constant 0 : index
    %c0_0 = arith.constant 0 : index
    %c0_1 = arith.constant 0 : index
    %c0_2 = arith.constant 0 : index
    %0 = vector.load %arg1[%c0, %c0_0, %c0_1, %c0_2] : memref<1x16x16x4xf32, #tpu.memory_space<vmem>>, vector<1x16x16x4xf32>
    %1 = vector.shape_cast %0 : vector<1x16x16x4xf32> to vector<16x16x4xf32>
    %2 = vector.shape_cast %1 : vector<16x16x4xf32> to vector<256x4xf32>
    %c0_3 = arith.constant 0 : index
    %c0_4 = arith.constant 0 : index
    %3 = vector.load %arg2[%c0_3, %c0_4] : memref<4x24xf32, #tpu.memory_space<vmem>>, vector<4x24xf32>
    %cst = arith.constant dense<0.000000e+00> : vector<256x24xf32>
    %4 = tpu.matmul %2, %3, %cst {dimension_numbers = #tpu.dot_dimension_numbers<[1], [0], [0], [1], [0, 0, 1, 1], [], []>} : vector<256x4xf32>, vector<4x24xf32>, vector<256x24xf32> -> vector<256x24xf32>
    %c0_5 = arith.constant 0 : index
    %c0_6 = arith.constant 0 : index
    %5 = vector.load %arg3[%c0_5, %c0_6] : memref<1x24xf32, #tpu.memory_space<vmem>>, vector<1x24xf32>
    %6 = vector.broadcast %5 : vector<1x24xf32> to vector<256x24xf32>
    %7 = arith.addf %4, %6 : vector<256x24xf32>
    %cst_7 = arith.constant 0.000000e+00 : f32
    %cst_8 = arith.constant 6.000000e+00 : f32
    %8 = vector.broadcast %cst_7 : f32 to vector<256x24xf32>
    %9 = arith.maximumf %8, %7 : vector<256x24xf32>
    %10 = vector.broadcast %cst_8 : f32 to vector<256x24xf32>
    %11 = arith.minimumf %10, %9 : vector<256x24xf32>
    %cst_9 = arith.constant 0.000000e+00 : f32
    %12 = vector.broadcast %cst_9 : f32 to vector<18x32x24xf32>
    %c0_10 = arith.constant 0 : index
    %c0_11 = arith.constant 0 : index
    %c0_12 = arith.constant 0 : index
    %13 = vector.load %arg16[%c0_10, %c0_11, %c0_12] : memref<18x32x24xf32, #tpu.memory_space<vmem>>, vector<18x32x24xf32>
    tpu.vector_store %arg16[%c0_10, %c0_11, %c0_12], %12 {strides = array<i32>} : memref<18x32x24xf32, #tpu.memory_space<vmem>>, vector<18x32x24xf32>,
    %14 = vector.shape_cast %11 : vector<256x24xf32> to vector<16x16x24xf32>
    %c1 = arith.constant 1 : index
    %c8 = arith.constant 8 : index
    %c0_13 = arith.constant 0 : index
    %15 = vector.load %arg16[%c1, %c8, %c0_13] : memref<18x32x24xf32, #tpu.memory_space<vmem>>, vector<16x16x24xf32>
    tpu.vector_store %arg16[%c1, %c8, %c0_13], %14 {strides = array<i32>} : memref<18x32x24xf32, #tpu.memory_space<vmem>>, vector<16x16x24xf32>,
    %c0_14 = arith.constant 0 : index
    %c0_15 = arith.constant 0 : index
    %c0_16 = arith.constant 0 : index
    %16 = vector.load %arg16[%c0_14, %c0_15, %c0_16] : memref<18x32x24xf32, #tpu.memory_space<vmem>>, vector<18x32x24xf32>
    %c0_17 = arith.constant 0 : index
    %c0_18 = arith.constant 0 : index
    %c0_19 = arith.constant 0 : index
    %17 = vector.load %arg4[%c0_17, %c0_18, %c0_19] : memref<3x3x24xf32, #tpu.memory_space<vmem>>, vector<3x3x24xf32>
    %cst_20 = arith.constant 0.000000e+00 : f32
    %18 = vector.broadcast %cst_20 : f32 to vector<16x16x24xf32>
    %19 = vector.extract_strided_slice %16 {offsets = [0, 7, 0], sizes = [16, 16, 24], strides = [1, 1, 1]} : vector<18x32x24xf32> to vector<16x16x24xf32>
    %20 = vector.extract_strided_slice %17 {offsets = [0, 0, 0], sizes = [1, 1, 24], strides = [1, 1, 1]} : vector<3x3x24xf32> to vector<1x1x24xf32>
    %21 = vector.shape_cast %20 : vector<1x1x24xf32> to vector<24xf32>
    %22 = vector.shape_cast %21 : vector<24xf32> to vector<1x1x24xf32>
    %23 = vector.broadcast %22 : vector<1x1x24xf32> to vector<16x16x24xf32>
    %24 = arith.mulf %19, %23 : vector<16x16x24xf32>
    %25 = arith.addf %18, %24 : vector<16x16x24xf32>
    %26 = vector.extract_strided_slice %16 {offsets = [0, 8, 0], sizes = [16, 16, 24], strides = [1, 1, 1]} : vector<18x32x24xf32> to vector<16x16x24xf32>
    %27 = vector.extract_strided_slice %17 {offsets = [0, 1, 0], sizes = [1, 1, 24], strides = [1, 1, 1]} : vector<3x3x24xf32> to vector<1x1x24xf32>
    %28 = vector.shape_cast %27 : vector<1x1x24xf32> to vector<24xf32>
    %29 = vector.shape_cast %28 : vector<24xf32> to vector<1x1x24xf32>
    %30 = vector.broadcast %29 : vector<1x1x24xf32> to vector<16x16x24xf32>
    %31 = arith.mulf %26, %30 : vector<16x16x24xf32>
    %32 = arith.addf %25, %31 : vector<16x16x24xf32>
    %33 = vector.extract_strided_slice %16 {offsets = [0, 9, 0], sizes = [16, 16, 24], strides = [1, 1, 1]} : vector<18x32x24xf32> to vector<16x16x24xf32>
    %34 = vector.extract_strided_slice %17 {offsets = [0, 2, 0], sizes = [1, 1, 24], strides = [1, 1, 1]} : vector<3x3x24xf32> to vector<1x1x24xf32>
    %35 = vector.shape_cast %34 : vector<1x1x24xf32> to vector<24xf32>
    %36 = vector.shape_cast %35 : vector<24xf32> to vector<1x1x24xf32>
    %37 = vector.broadcast %36 : vector<1x1x24xf32> to vector<16x16x24xf32>
    %38 = arith.mulf %33, %37 : vector<16x16x24xf32>
    %39 = arith.addf %32, %38 : vector<16x16x24xf32>
    %40 = vector.extract_strided_slice %16 {offsets = [1, 7, 0], sizes = [16, 16, 24], strides = [1, 1, 1]} : vector<18x32x24xf32> to vector<16x16x24xf32>
    %41 = vector.extract_strided_slice %17 {offsets = [1, 0, 0], sizes = [1, 1, 24], strides = [1, 1, 1]} : vector<3x3x24xf32> to vector<1x1x24xf32>
    %42 = vector.shape_cast %41 : vector<1x1x24xf32> to vector<24xf32>
    %43 = vector.shape_cast %42 : vector<24xf32> to vector<1x1x24xf32>
    %44 = vector.broadcast %43 : vector<1x1x24xf32> to vector<16x16x24xf32>
    %45 = arith.mulf %40, %44 : vector<16x16x24xf32>
    %46 = arith.addf %39, %45 : vector<16x16x24xf32>
    %47 = vector.extract_strided_slice %16 {offsets = [1, 8, 0], sizes = [16, 16, 24], strides = [1, 1, 1]} : vector<18x32x24xf32> to vector<16x16x24xf32>
    %48 = vector.extract_strided_slice %17 {offsets = [1, 1, 0], sizes = [1, 1, 24], strides = [1, 1, 1]} : vector<3x3x24xf32> to vector<1x1x24xf32>
    %49 = vector.shape_cast %48 : vector<1x1x24xf32> to vector<24xf32>
    %50 = vector.shape_cast %49 : vector<24xf32> to vector<1x1x24xf32>
    %51 = vector.broadcast %50 : vector<1x1x24xf32> to vector<16x16x24xf32>
    %52 = arith.mulf %47, %51 : vector<16x16x24xf32>
    %53 = arith.addf %46, %52 : vector<16x16x24xf32>
    %54 = vector.extract_strided_slice %16 {offsets = [1, 9, 0], sizes = [16, 16, 24], strides = [1, 1, 1]} : vector<18x32x24xf32> to vector<16x16x24xf32>
    %55 = vector.extract_strided_slice %17 {offsets = [1, 2, 0], sizes = [1, 1, 24], strides = [1, 1, 1]} : vector<3x3x24xf32> to vector<1x1x24xf32>
    %56 = vector.shape_cast %55 : vector<1x1x24xf32> to vector<24xf32>
    %57 = vector.shape_cast %56 : vector<24xf32> to vector<1x1x24xf32>
    %58 = vector.broadcast %57 : vector<1x1x24xf32> to vector<16x16x24xf32>
    %59 = arith.mulf %54, %58 : vector<16x16x24xf32>
    %60 = arith.addf %53, %59 : vector<16x16x24xf32>
    %61 = vector.extract_strided_slice %16 {offsets = [2, 7, 0], sizes = [16, 16, 24], strides = [1, 1, 1]} : vector<18x32x24xf32> to vector<16x16x24xf32>
    %62 = vector.extract_strided_slice %17 {offsets = [2, 0, 0], sizes = [1, 1, 24], strides = [1, 1, 1]} : vector<3x3x24xf32> to vector<1x1x24xf32>
    %63 = vector.shape_cast %62 : vector<1x1x24xf32> to vector<24xf32>
    %64 = vector.shape_cast %63 : vector<24xf32> to vector<1x1x24xf32>
    %65 = vector.broadcast %64 : vector<1x1x24xf32> to vector<16x16x24xf32>
    %66 = arith.mulf %61, %65 : vector<16x16x24xf32>
    %67 = arith.addf %60, %66 : vector<16x16x24xf32>
    %68 = vector.extract_strided_slice %16 {offsets = [2, 8, 0], sizes = [16, 16, 24], strides = [1, 1, 1]} : vector<18x32x24xf32> to vector<16x16x24xf32>
    %69 = vector.extract_strided_slice %17 {offsets = [2, 1, 0], sizes = [1, 1, 24], strides = [1, 1, 1]} : vector<3x3x24xf32> to vector<1x1x24xf32>
    %70 = vector.shape_cast %69 : vector<1x1x24xf32> to vector<24xf32>
    %71 = vector.shape_cast %70 : vector<24xf32> to vector<1x1x24xf32>
    %72 = vector.broadcast %71 : vector<1x1x24xf32> to vector<16x16x24xf32>
    %73 = arith.mulf %68, %72 : vector<16x16x24xf32>
    %74 = arith.addf %67, %73 : vector<16x16x24xf32>
    %75 = vector.extract_strided_slice %16 {offsets = [2, 9, 0], sizes = [16, 16, 24], strides = [1, 1, 1]} : vector<18x32x24xf32> to vector<16x16x24xf32>
    %76 = vector.extract_strided_slice %17 {offsets = [2, 2, 0], sizes = [1, 1, 24], strides = [1, 1, 1]} : vector<3x3x24xf32> to vector<1x1x24xf32>
    %77 = vector.shape_cast %76 : vector<1x1x24xf32> to vector<24xf32>
    %78 = vector.shape_cast %77 : vector<24xf32> to vector<1x1x24xf32>
    %79 = vector.broadcast %78 : vector<1x1x24xf32> to vector<16x16x24xf32>
    %80 = arith.mulf %75, %79 : vector<16x16x24xf32>
    %81 = arith.addf %74, %80 : vector<16x16x24xf32>
    %c0_21 = arith.constant 0 : index
    %c0_22 = arith.constant 0 : index
    %82 = vector.load %arg5[%c0_21, %c0_22] : memref<1x24xf32, #tpu.memory_space<vmem>>, vector<1x24xf32>
    %83 = vector.shape_cast %82 : vector<1x24xf32> to vector<24xf32>
    %84 = vector.shape_cast %83 : vector<24xf32> to vector<1x1x24xf32>
    %85 = vector.broadcast %84 : vector<1x1x24xf32> to vector<16x16x24xf32>
    %86 = arith.addf %81, %85 : vector<16x16x24xf32>
    %cst_23 = arith.constant 0.000000e+00 : f32
    %cst_24 = arith.constant 6.000000e+00 : f32
    %87 = vector.broadcast %cst_23 : f32 to vector<16x16x24xf32>
    %88 = arith.maximumf %87, %86 : vector<16x16x24xf32>
    %89 = vector.broadcast %cst_24 : f32 to vector<16x16x24xf32>
    %90 = arith.minimumf %89, %88 : vector<16x16x24xf32>
    %91 = vector.shape_cast %90 : vector<16x16x24xf32> to vector<256x24xf32>
    %c0_25 = arith.constant 0 : index
    %c0_26 = arith.constant 0 : index
    %92 = vector.load %arg8[%c0_25, %c0_26] : memref<64x256xf32, #tpu.memory_space<vmem>>, vector<64x256xf32>
    %cst_27 = arith.constant dense<0.000000e+00> : vector<64x24xf32>
    %93 = tpu.matmul %92, %91, %cst_27 {dimension_numbers = #tpu.dot_dimension_numbers<[1], [0], [0], [1], [0, 0, 1, 1], [], []>} : vector<64x256xf32>, vector<256x24xf32>, vector<64x24xf32> -> vector<64x24xf32>
    %c0_28 = arith.constant 0 : index
    %c0_29 = arith.constant 0 : index
    %94 = vector.load %arg6[%c0_28, %c0_29] : memref<24x8xf32, #tpu.memory_space<vmem>>, vector<24x8xf32>
    %cst_30 = arith.constant dense<0.000000e+00> : vector<64x8xf32>
    %95 = tpu.matmul %93, %94, %cst_30 {dimension_numbers = #tpu.dot_dimension_numbers<[1], [0], [0], [1], [0, 0, 1, 1], [], []>} : vector<64x24xf32>, vector<24x8xf32>, vector<64x8xf32> -> vector<64x8xf32>
    %c0_31 = arith.constant 0 : index
    %c0_32 = arith.constant 0 : index
    %96 = vector.load %arg7[%c0_31, %c0_32] : memref<1x8xf32, #tpu.memory_space<vmem>>, vector<1x8xf32>
    %97 = vector.broadcast %96 : vector<1x8xf32> to vector<64x8xf32>
    %98 = arith.addf %95, %97 : vector<64x8xf32>
    %c0_33 = arith.constant 0 : index
    %c0_34 = arith.constant 0 : index
    %99 = vector.load %arg9[%c0_33, %c0_34] : memref<8x48xf32, #tpu.memory_space<vmem>>, vector<8x48xf32>
    %cst_35 = arith.constant dense<0.000000e+00> : vector<64x48xf32>
    %100 = tpu.matmul %98, %99, %cst_35 {dimension_numbers = #tpu.dot_dimension_numbers<[1], [0], [0], [1], [0, 0, 1, 1], [], []>} : vector<64x8xf32>, vector<8x48xf32>, vector<64x48xf32> -> vector<64x48xf32>
    %c0_36 = arith.constant 0 : index
    %c0_37 = arith.constant 0 : index
    %101 = vector.load %arg10[%c0_36, %c0_37] : memref<1x48xf32, #tpu.memory_space<vmem>>, vector<1x48xf32>
    %102 = vector.broadcast %101 : vector<1x48xf32> to vector<64x48xf32>
    %103 = arith.addf %100, %102 : vector<64x48xf32>
    %cst_38 = arith.constant 0.000000e+00 : f32
    %cst_39 = arith.constant 6.000000e+00 : f32
    %104 = vector.broadcast %cst_38 : f32 to vector<64x48xf32>
    %105 = arith.maximumf %104, %103 : vector<64x48xf32>
    %106 = vector.broadcast %cst_39 : f32 to vector<64x48xf32>
    %107 = arith.minimumf %106, %105 : vector<64x48xf32>
    %cst_40 = arith.constant 0.000000e+00 : f32
    %108 = vector.broadcast %cst_40 : f32 to vector<10x24x48xf32>
    %c0_41 = arith.constant 0 : index
    %c0_42 = arith.constant 0 : index
    %c0_43 = arith.constant 0 : index
    %109 = vector.load %arg17[%c0_41, %c0_42, %c0_43] : memref<10x24x48xf32, #tpu.memory_space<vmem>>, vector<10x24x48xf32>
    tpu.vector_store %arg17[%c0_41, %c0_42, %c0_43], %108 {strides = array<i32>} : memref<10x24x48xf32, #tpu.memory_space<vmem>>, vector<10x24x48xf32>,
    %110 = vector.shape_cast %107 : vector<64x48xf32> to vector<8x8x48xf32>
    %c1_44 = arith.constant 1 : index
    %c8_45 = arith.constant 8 : index
    %c0_46 = arith.constant 0 : index
    %111 = vector.load %arg17[%c1_44, %c8_45, %c0_46] : memref<10x24x48xf32, #tpu.memory_space<vmem>>, vector<8x8x48xf32>
    tpu.vector_store %arg17[%c1_44, %c8_45, %c0_46], %110 {strides = array<i32>} : memref<10x24x48xf32, #tpu.memory_space<vmem>>, vector<8x8x48xf32>,
    %c0_47 = arith.constant 0 : index
    %c0_48 = arith.constant 0 : index
    %c0_49 = arith.constant 0 : index
    %112 = vector.load %arg17[%c0_47, %c0_48, %c0_49] : memref<10x24x48xf32, #tpu.memory_space<vmem>>, vector<10x24x48xf32>
    %c0_50 = arith.constant 0 : index
    %c0_51 = arith.constant 0 : index
    %c0_52 = arith.constant 0 : index
    %113 = vector.load %arg11[%c0_50, %c0_51, %c0_52] : memref<3x3x48xf32, #tpu.memory_space<vmem>>, vector<3x3x48xf32>
    %cst_53 = arith.constant 0.000000e+00 : f32
    %114 = vector.broadcast %cst_53 : f32 to vector<8x8x48xf32>
    %115 = vector.extract_strided_slice %112 {offsets = [0, 7, 0], sizes = [8, 8, 48], strides = [1, 1, 1]} : vector<10x24x48xf32> to vector<8x8x48xf32>
    %116 = vector.extract_strided_slice %113 {offsets = [0, 0, 0], sizes = [1, 1, 48], strides = [1, 1, 1]} : vector<3x3x48xf32> to vector<1x1x48xf32>
    %117 = vector.shape_cast %116 : vector<1x1x48xf32> to vector<48xf32>
    %118 = vector.shape_cast %117 : vector<48xf32> to vector<1x1x48xf32>
    %119 = vector.broadcast %118 : vector<1x1x48xf32> to vector<8x8x48xf32>
    %120 = arith.mulf %115, %119 : vector<8x8x48xf32>
    %121 = arith.addf %114, %120 : vector<8x8x48xf32>
    %122 = vector.extract_strided_slice %112 {offsets = [0, 8, 0], sizes = [8, 8, 48], strides = [1, 1, 1]} : vector<10x24x48xf32> to vector<8x8x48xf32>
    %123 = vector.extract_strided_slice %113 {offsets = [0, 1, 0], sizes = [1, 1, 48], strides = [1, 1, 1]} : vector<3x3x48xf32> to vector<1x1x48xf32>
    %124 = vector.shape_cast %123 : vector<1x1x48xf32> to vector<48xf32>
    %125 = vector.shape_cast %124 : vector<48xf32> to vector<1x1x48xf32>
    %126 = vector.broadcast %125 : vector<1x1x48xf32> to vector<8x8x48xf32>
    %127 = arith.mulf %122, %126 : vector<8x8x48xf32>
    %128 = arith.addf %121, %127 : vector<8x8x48xf32>
    %129 = vector.extract_strided_slice %112 {offsets = [0, 9, 0], sizes = [8, 8, 48], strides = [1, 1, 1]} : vector<10x24x48xf32> to vector<8x8x48xf32>
    %130 = vector.extract_strided_slice %113 {offsets = [0, 2, 0], sizes = [1, 1, 48], strides = [1, 1, 1]} : vector<3x3x48xf32> to vector<1x1x48xf32>
    %131 = vector.shape_cast %130 : vector<1x1x48xf32> to vector<48xf32>
    %132 = vector.shape_cast %131 : vector<48xf32> to vector<1x1x48xf32>
    %133 = vector.broadcast %132 : vector<1x1x48xf32> to vector<8x8x48xf32>
    %134 = arith.mulf %129, %133 : vector<8x8x48xf32>
    %135 = arith.addf %128, %134 : vector<8x8x48xf32>
    %136 = vector.extract_strided_slice %112 {offsets = [1, 7, 0], sizes = [8, 8, 48], strides = [1, 1, 1]} : vector<10x24x48xf32> to vector<8x8x48xf32>
    %137 = vector.extract_strided_slice %113 {offsets = [1, 0, 0], sizes = [1, 1, 48], strides = [1, 1, 1]} : vector<3x3x48xf32> to vector<1x1x48xf32>
    %138 = vector.shape_cast %137 : vector<1x1x48xf32> to vector<48xf32>
    %139 = vector.shape_cast %138 : vector<48xf32> to vector<1x1x48xf32>
    %140 = vector.broadcast %139 : vector<1x1x48xf32> to vector<8x8x48xf32>
    %141 = arith.mulf %136, %140 : vector<8x8x48xf32>
    %142 = arith.addf %135, %141 : vector<8x8x48xf32>
    %143 = vector.extract_strided_slice %112 {offsets = [1, 8, 0], sizes = [8, 8, 48], strides = [1, 1, 1]} : vector<10x24x48xf32> to vector<8x8x48xf32>
    %144 = vector.extract_strided_slice %113 {offsets = [1, 1, 0], sizes = [1, 1, 48], strides = [1, 1, 1]} : vector<3x3x48xf32> to vector<1x1x48xf32>
    %145 = vector.shape_cast %144 : vector<1x1x48xf32> to vector<48xf32>
    %146 = vector.shape_cast %145 : vector<48xf32> to vector<1x1x48xf32>
    %147 = vector.broadcast %146 : vector<1x1x48xf32> to vector<8x8x48xf32>
    %148 = arith.mulf %143, %147 : vector<8x8x48xf32>
    %149 = arith.addf %142, %148 : vector<8x8x48xf32>
    %150 = vector.extract_strided_slice %112 {offsets = [1, 9, 0], sizes = [8, 8, 48], strides = [1, 1, 1]} : vector<10x24x48xf32> to vector<8x8x48xf32>
    %151 = vector.extract_strided_slice %113 {offsets = [1, 2, 0], sizes = [1, 1, 48], strides = [1, 1, 1]} : vector<3x3x48xf32> to vector<1x1x48xf32>
    %152 = vector.shape_cast %151 : vector<1x1x48xf32> to vector<48xf32>
    %153 = vector.shape_cast %152 : vector<48xf32> to vector<1x1x48xf32>
    %154 = vector.broadcast %153 : vector<1x1x48xf32> to vector<8x8x48xf32>
    %155 = arith.mulf %150, %154 : vector<8x8x48xf32>
    %156 = arith.addf %149, %155 : vector<8x8x48xf32>
    %157 = vector.extract_strided_slice %112 {offsets = [2, 7, 0], sizes = [8, 8, 48], strides = [1, 1, 1]} : vector<10x24x48xf32> to vector<8x8x48xf32>
    %158 = vector.extract_strided_slice %113 {offsets = [2, 0, 0], sizes = [1, 1, 48], strides = [1, 1, 1]} : vector<3x3x48xf32> to vector<1x1x48xf32>
    %159 = vector.shape_cast %158 : vector<1x1x48xf32> to vector<48xf32>
    %160 = vector.shape_cast %159 : vector<48xf32> to vector<1x1x48xf32>
    %161 = vector.broadcast %160 : vector<1x1x48xf32> to vector<8x8x48xf32>
    %162 = arith.mulf %157, %161 : vector<8x8x48xf32>
    %163 = arith.addf %156, %162 : vector<8x8x48xf32>
    %164 = vector.extract_strided_slice %112 {offsets = [2, 8, 0], sizes = [8, 8, 48], strides = [1, 1, 1]} : vector<10x24x48xf32> to vector<8x8x48xf32>
    %165 = vector.extract_strided_slice %113 {offsets = [2, 1, 0], sizes = [1, 1, 48], strides = [1, 1, 1]} : vector<3x3x48xf32> to vector<1x1x48xf32>
    %166 = vector.shape_cast %165 : vector<1x1x48xf32> to vector<48xf32>
    %167 = vector.shape_cast %166 : vector<48xf32> to vector<1x1x48xf32>
    %168 = vector.broadcast %167 : vector<1x1x48xf32> to vector<8x8x48xf32>
    %169 = arith.mulf %164, %168 : vector<8x8x48xf32>
    %170 = arith.addf %163, %169 : vector<8x8x48xf32>
    %171 = vector.extract_strided_slice %112 {offsets = [2, 9, 0], sizes = [8, 8, 48], strides = [1, 1, 1]} : vector<10x24x48xf32> to vector<8x8x48xf32>
    %172 = vector.extract_strided_slice %113 {offsets = [2, 2, 0], sizes = [1, 1, 48], strides = [1, 1, 1]} : vector<3x3x48xf32> to vector<1x1x48xf32>
    %173 = vector.shape_cast %172 : vector<1x1x48xf32> to vector<48xf32>
    %174 = vector.shape_cast %173 : vector<48xf32> to vector<1x1x48xf32>
    %175 = vector.broadcast %174 : vector<1x1x48xf32> to vector<8x8x48xf32>
    %176 = arith.mulf %171, %175 : vector<8x8x48xf32>
    %177 = arith.addf %170, %176 : vector<8x8x48xf32>
    %c0_54 = arith.constant 0 : index
    %c0_55 = arith.constant 0 : index
    %178 = vector.load %arg12[%c0_54, %c0_55] : memref<1x48xf32, #tpu.memory_space<vmem>>, vector<1x48xf32>
    %179 = vector.shape_cast %178 : vector<1x48xf32> to vector<48xf32>
    %180 = vector.shape_cast %179 : vector<48xf32> to vector<1x1x48xf32>
    %181 = vector.broadcast %180 : vector<1x1x48xf32> to vector<8x8x48xf32>
    %182 = arith.addf %177, %181 : vector<8x8x48xf32>
    %cst_56 = arith.constant 0.000000e+00 : f32
    %cst_57 = arith.constant 6.000000e+00 : f32
    %183 = vector.broadcast %cst_56 : f32 to vector<8x8x48xf32>
    %184 = arith.maximumf %183, %182 : vector<8x8x48xf32>
    %185 = vector.broadcast %cst_57 : f32 to vector<8x8x48xf32>
    %186 = arith.minimumf %185, %184 : vector<8x8x48xf32>
    %187 = vector.shape_cast %186 : vector<8x8x48xf32> to vector<64x48xf32>
    %c0_58 = arith.constant 0 : index
    %c0_59 = arith.constant 0 : index
    %188 = vector.load %arg13[%c0_58, %c0_59] : memref<48x8xf32, #tpu.memory_space<vmem>>, vector<48x8xf32>
    %cst_60 = arith.constant dense<0.000000e+00> : vector<64x8xf32>
    %189 = tpu.matmul %187, %188, %cst_60 {dimension_numbers = #tpu.dot_dimension_numbers<[1], [0], [0], [1], [0, 0, 1, 1], [], []>} : vector<64x48xf32>, vector<48x8xf32>, vector<64x8xf32> -> vector<64x8xf32>
    %c0_61 = arith.constant 0 : index
    %c0_62 = arith.constant 0 : index
    %190 = vector.load %arg14[%c0_61, %c0_62] : memref<1x8xf32, #tpu.memory_space<vmem>>, vector<1x8xf32>
    %191 = vector.broadcast %190 : vector<1x8xf32> to vector<64x8xf32>
    %192 = arith.addf %189, %191 : vector<64x8xf32>
    %193 = arith.addf %192, %98 : vector<64x8xf32>
    %194 = vector.shape_cast %193 : vector<64x8xf32> to vector<8x8x8xf32>
    %c0_63 = arith.constant 0 : index
    %c0_64 = arith.constant 0 : index
    %c0_65 = arith.constant 0 : index
    %c0_66 = arith.constant 0 : index
    %195 = vector.load %arg15[%c0_63, %c0_64, %c0_65, %c0_66] : memref<1x8x8x8xf32, #tpu.memory_space<vmem>>, vector<1x8x8x8xf32>
    %196 = vector.shape_cast %195 : vector<1x8x8x8xf32> to vector<8x8x8xf32>
    %197 = vector.shape_cast %194 : vector<8x8x8xf32> to vector<1x8x8x8xf32>
    tpu.vector_store %arg15[%c0_63, %c0_64, %c0_65, %c0_66], %197 {strides = array<i32>} : memref<1x8x8x8xf32, #tpu.memory_space<vmem>>, vector<1x8x8x8xf32>,
    return
  }
  func.func @transform_0(%arg0: i32) -> (i32, i32, i32, i32) {
    %c0_i32 = arith.constant 0 : i32
    %c0_i32_0 = arith.constant 0 : i32
    %c0_i32_1 = arith.constant 0 : i32
    %c0_i32_2 = arith.constant 0 : i32
    return %arg0, %c0_i32, %c0_i32_0, %c0_i32_1 : i32, i32, i32, i32
  }
  func.func @transform_1(%arg0: i32) -> (i32, i32) {
    %c0_i32 = arith.constant 0 : i32
    %c0_i32_0 = arith.constant 0 : i32
    %c0_i32_1 = arith.constant 0 : i32
    return %c0_i32, %c0_i32_0 : i32, i32
  }
  func.func @transform_2(%arg0: i32) -> (i32, i32) {
    %c0_i32 = arith.constant 0 : i32
    %c0_i32_0 = arith.constant 0 : i32
    %c0_i32_1 = arith.constant 0 : i32
    return %c0_i32, %c0_i32_0 : i32, i32
  }
  func.func @transform_3(%arg0: i32) -> (i32, i32, i32) {
    %c0_i32 = arith.constant 0 : i32
    %c0_i32_0 = arith.constant 0 : i32
    %c0_i32_1 = arith.constant 0 : i32
    %c0_i32_2 = arith.constant 0 : i32
    return %c0_i32, %c0_i32_0, %c0_i32_1 : i32, i32, i32
  }
  func.func @transform_4(%arg0: i32) -> (i32, i32) {
    %c0_i32 = arith.constant 0 : i32
    %c0_i32_0 = arith.constant 0 : i32
    %c0_i32_1 = arith.constant 0 : i32
    return %c0_i32, %c0_i32_0 : i32, i32
  }
  func.func @transform_5(%arg0: i32) -> (i32, i32) {
    %c0_i32 = arith.constant 0 : i32
    %c0_i32_0 = arith.constant 0 : i32
    %c0_i32_1 = arith.constant 0 : i32
    return %c0_i32, %c0_i32_0 : i32, i32
  }
  func.func @transform_6(%arg0: i32) -> (i32, i32) {
    %c0_i32 = arith.constant 0 : i32
    %c0_i32_0 = arith.constant 0 : i32
    %c0_i32_1 = arith.constant 0 : i32
    return %c0_i32, %c0_i32_0 : i32, i32
  }
  func.func @transform_7(%arg0: i32) -> (i32, i32) {
    %c0_i32 = arith.constant 0 : i32
    %c0_i32_0 = arith.constant 0 : i32
    %c0_i32_1 = arith.constant 0 : i32
    return %c0_i32, %c0_i32_0 : i32, i32
  }
  func.func @transform_8(%arg0: i32) -> (i32, i32) {
    %c0_i32 = arith.constant 0 : i32
    %c0_i32_0 = arith.constant 0 : i32
    %c0_i32_1 = arith.constant 0 : i32
    return %c0_i32, %c0_i32_0 : i32, i32
  }
  func.func @transform_9(%arg0: i32) -> (i32, i32) {
    %c0_i32 = arith.constant 0 : i32
    %c0_i32_0 = arith.constant 0 : i32
    %c0_i32_1 = arith.constant 0 : i32
    return %c0_i32, %c0_i32_0 : i32, i32
  }
  func.func @transform_10(%arg0: i32) -> (i32, i32, i32) {
    %c0_i32 = arith.constant 0 : i32
    %c0_i32_0 = arith.constant 0 : i32
    %c0_i32_1 = arith.constant 0 : i32
    %c0_i32_2 = arith.constant 0 : i32
    return %c0_i32, %c0_i32_0, %c0_i32_1 : i32, i32, i32
  }
  func.func @transform_11(%arg0: i32) -> (i32, i32) {
    %c0_i32 = arith.constant 0 : i32
    %c0_i32_0 = arith.constant 0 : i32
    %c0_i32_1 = arith.constant 0 : i32
    return %c0_i32, %c0_i32_0 : i32, i32
  }
  func.func @transform_12(%arg0: i32) -> (i32, i32) {
    %c0_i32 = arith.constant 0 : i32
    %c0_i32_0 = arith.constant 0 : i32
    %c0_i32_1 = arith.constant 0 : i32
    return %c0_i32, %c0_i32_0 : i32, i32
  }
  func.func @transform_13(%arg0: i32) -> (i32, i32) {
    %c0_i32 = arith.constant 0 : i32
    %c0_i32_0 = arith.constant 0 : i32
    %c0_i32_1 = arith.constant 0 : i32
    return %c0_i32, %c0_i32_0 : i32, i32
  }
  func.func @transform_14(%arg0: i32) -> (i32, i32, i32, i32) {
    %c0_i32 = arith.constant 0 : i32
    %c0_i32_0 = arith.constant 0 : i32
    %c0_i32_1 = arith.constant 0 : i32
    %c0_i32_2 = arith.constant 0 : i32
    return %arg0, %c0_i32, %c0_i32_0, %c0_i32_1 : i32, i32, i32, i32
  }
}

</mosaic_0001>

<llo_original>
// kernel: _lambda_.1
$region0: #{_lambda_.1}
  #allocation0 [shape = 'u32[]', space=smem, size = 0x4, offset = 0x4, fixed_abs, tag = 'smem constant byte address 0x4 - core index']
  #allocation1 [shape = 'u32[144,128]{1,0:T(1,128)}', space=vmem, size = 0x12000, scoped, tag = 'internal scratch']
  #allocation2 [shape = 'f32[18,32,24]{2,1,0:T(8,128)}', space=vmem, size = 0x48000, scoped, tag = 'scratch operand']
  #allocation3 [shape = 'f32[10,24,48]{2,1,0:T(8,128)}', space=vmem, size = 0x1e000, scoped, tag = 'scratch operand']
  %s0 = inlined_call_operand.vmem [shape: f32[2,16,16,4], index: 0, kind: input, shape index: {}]
  %s1 = inlined_call_operand.vmem [shape: f32[4,24], index: 1, kind: input, shape index: {}]
  %s2 = inlined_call_operand.vmem [shape: f32[1,24], index: 2, kind: input, shape index: {}]
  %s3 = inlined_call_operand.vmem [shape: f32[3,3,24], index: 3, kind: input, shape index: {}]
  %s4 = inlined_call_operand.vmem [shape: f32[1,24], index: 4, kind: input, shape index: {}]
  %s5 = inlined_call_operand.vmem [shape: f32[24,8], index: 5, kind: input, shape index: {}]
  %s6 = inlined_call_operand.vmem [shape: f32[1,8], index: 6, kind: input, shape index: {}]
  %s7 = inlined_call_operand.vmem [shape: f32[64,256], index: 7, kind: input, shape index: {}]
  %s8 = inlined_call_operand.vmem [shape: f32[8,48], index: 8, kind: input, shape index: {}]
  %s9 = inlined_call_operand.vmem [shape: f32[1,48], index: 9, kind: input, shape index: {}]
  %s10 = inlined_call_operand.vmem [shape: f32[3,3,48], index: 10, kind: input, shape index: {}]
  %s11 = inlined_call_operand.vmem [shape: f32[1,48], index: 11, kind: input, shape index: {}]
  %s12 = inlined_call_operand.vmem [shape: f32[48,8], index: 12, kind: input, shape index: {}]
  %s13 = inlined_call_operand.vmem [shape: f32[1,8], index: 13, kind: input, shape index: {}]
  %s14 = inlined_call_operand.vmem [shape: f32[2,8,8,8], index: 14, kind: output, shape index: {}]
  %s15 = sld [smem:[#allocation0]]
  $region89: #{_lambda_.1} parent=0
    _
  %s17 = ssub.s32 1, %s15
  %s18 = scalar_select 0, %s17, %s15
  loop: start=0, step=1, limit=4
  $region2: #{_lambda_.1} parent=0 // loop_pre_header
    _
  $region3: #{_lambda_.1} parent=0 // loop_header
    %s20 = sphi 0, %s24
    %p21 = scmp.ge.s32.totalorder %s20, 4
    %s30 = sphi 0, %s32
    %s33 = sphi 0, %s30
    %s34 = sphi 0, %s33
    %s50 = sphi 0, %s34
    %s54 = sphi 0, %s54
    %s56 = sphi 0, %s54
    %s57 = sphi 0, %s56
    %s71 = sphi 0, %s57
    %s75 = sphi 0, %s75
    %s77 = sphi 0, %s75
    %s78 = sphi 0, %s77
    %s92 = sphi 0, %s78
    %s96 = sphi 0, %s96
    %s98 = sphi 0, %s96
    %s99 = sphi 0, %s98
    %s113 = sphi 0, %s99
    %s117 = sphi 0, %s117
    %s119 = sphi 0, %s117
    %s120 = sphi 0, %s119
    %s134 = sphi 0, %s120
    %s138 = sphi 0, %s138
    %s140 = sphi 0, %s138
    %s141 = sphi 0, %s140
    %s155 = sphi 0, %s141
    %s159 = sphi 0, %s159
    %s161 = sphi 0, %s159
    %s162 = sphi 0, %s161
    %s176 = sphi 0, %s162
    %s180 = sphi 0, %s180
    %s182 = sphi 0, %s180
    %s183 = sphi 0, %s182
    %s197 = sphi 0, %s183
    %s201 = sphi 0, %s201
    %s203 = sphi 0, %s201
    %s204 = sphi 0, %s203
    %s218 = sphi 0, %s204
    %s222 = sphi 0, %s222
    %s224 = sphi 0, %s222
    %s225 = sphi 0, %s224
    %s239 = sphi 0, %s225
    %s243 = sphi 0, %s243
    %s245 = sphi 0, %s243
    %s246 = sphi 0, %s245
    %s260 = sphi 0, %s246
    %s264 = sphi 0, %s264
    %s266 = sphi 0, %s264
    %s267 = sphi 0, %s266
    %s281 = sphi 0, %s267
    %s285 = sphi 0, %s285
    %s287 = sphi 0, %s285
    %s288 = sphi 0, %s287
    %s302 = sphi 0, %s288
    %s306 = sphi 0, %s306
    %s308 = sphi 0, %s306
    %s309 = sphi 0, %s308
    %s323 = sphi 0, %s309
    %s329 = sphi 0, %s331
    %s332 = sphi 0, %s329
    %s333 = sphi 0, %s332
    %s349 = sphi 0, %s333
  $region4: #{_lambda_.1} parent=0 // loop_header_branch
    %23 = sbr.rel (%p21) target = $region8
  $region5: #{_lambda_.1} parent=0 // loop_body
    %s25 = ssub.s32 %s20, 1
    %s26 = ssub.s32 %s20, 2
    %s27 = sadd.s32 %s20, 1
    %s28 = ssub.s32 %s20, %s27
    %p29 = scmp.eq.s32.totalorder %s28, 0
    %s31 = sadd.s32 %s30, 1
    %s32 = scalar_select %p29, %s30, %s31
    %p35 = pneg %p29
    %p36 = scmp.eq.s32.totalorder %s20, 1
    %p37 = por %p35, %p36
    %p38 = scmp.ne.s32.totalorder %s30, %s33
    %p39 = scmp.eq.s32.totalorder %s20, 0
    %p40 = por %p38, %p39
    %p41 = scmp.ne.s32.totalorder %s30, %s33
    %p42 = scmp.eq.s32.totalorder %s25, 1
    %p43 = por %p41, %p42
    %p44 = scmp.ne.s32.totalorder %s33, %s34
    %p45 = scmp.eq.s32.totalorder %s25, 0
    %p46 = por %p44, %p45
    %p47 = scmp.ne.s32.totalorder %s33, %s34
    %p48 = scmp.eq.s32.totalorder %s26, 1
    %p49 = por %p47, %p48
    %p51 = scmp.ne.s32.totalorder %s34, %s50
    %p52 = scmp.eq.s32.totalorder %s26, 0
    %p53 = por %p51, %p52
    %s55 = sadd.s32 %s54, 1
    %p58 = scmp.eq.s32.totalorder %s20, 1
    %p59 = scmp.ne.s32.totalorder %s54, %s56
    %p60 = scmp.eq.s32.totalorder %s20, 0
    %p61 = por %p59, %p60
    %p62 = scmp.ne.s32.totalorder %s54, %s56
    %p63 = scmp.eq.s32.totalorder %s25, 1
    %p64 = por %p62, %p63
    %p65 = scmp.ne.s32.totalorder %s56, %s57
    %p66 = scmp.eq.s32.totalorder %s25, 0
    %p67 = por %p65, %p66
    %p68 = scmp.ne.s32.totalorder %s56, %s57
    %p69 = scmp.eq.s32.totalorder %s26, 1
    %p70 = por %p68, %p69
    %p72 = scmp.ne.s32.totalorder %s57, %s71
    %p73 = scmp.eq.s32.totalorder %s26, 0
    %p74 = por %p72, %p73
    %s76 = sadd.s32 %s75, 1
    %p79 = scmp.eq.s32.totalorder %s20, 1
    %p80 = scmp.ne.s32.totalorder %s75, %s77
    %p81 = scmp.eq.s32.totalorder %s20, 0
    %p82 = por %p80, %p81
    %p83 = scmp.ne.s32.totalorder %s75, %s77
    %p84 = scmp.eq.s32.totalorder %s25, 1
    %p85 = por %p83, %p84
    %p86 = scmp.ne.s32.totalorder %s77, %s78
    %p87 = scmp.eq.s32.totalorder %s25, 0
    %p88 = por %p86, %p87
    %p89 = scmp.ne.s32.totalorder %s77, %s78
    %p90 = scmp.eq.s32.totalorder %s26, 1
    %p91 = por %p89, %p90
    %p93 = scmp.ne.s32.totalorder %s78, %s92
    %p94 = scmp.eq.s32.totalorder %s26, 0
    %p95 = por %p93, %p94
    %s97 = sadd.s32 %s96, 1
    %p100 = scmp.eq.s32.totalorder %s20, 1
    %p101 = scmp.ne.s32.totalorder %s96, %s98
    %p102 = scmp.eq.s32.totalorder %s20, 0
    %p103 = por %p101, %p102
    %p104 = scmp.ne.s32.totalorder %s96, %s98
    %p105 = scmp.eq.s32.totalorder %s25, 1
    %p106 = por %p104, %p105
    %p107 = scmp.ne.s32.totalorder %s98, %s99
    %p108 = scmp.eq.s32.totalorder %s25, 0
    %p109 = por %p107, %p108
    %p110 = scmp.ne.s32.totalorder %s98, %s99
    %p111 = scmp.eq.s32.totalorder %s26, 1
    %p112 = por %p110, %p111
    %p114 = scmp.ne.s32.totalorder %s99, %s113
    %p115 = scmp.eq.s32.totalorder %s26, 0
    %p116 = por %p114, %p115
    %s118 = sadd.s32 %s117, 1
    %p121 = scmp.eq.s32.totalorder %s20, 1
    %p122 = scmp.ne.s32.totalorder %s117, %s119
    %p123 = scmp.eq.s32.totalorder %s20, 0
    %p124 = por %p122, %p123
    %p125 = scmp.ne.s32.totalorder %s117, %s119
    %p126 = scmp.eq.s32.totalorder %s25, 1
    %p127 = por %p125, %p126
    %p128 = scmp.ne.s32.totalorder %s119, %s120
    %p129 = scmp.eq.s32.totalorder %s25, 0
    %p130 = por %p128, %p129
    %p131 = scmp.ne.s32.totalorder %s119, %s120
    %p132 = scmp.eq.s32.totalorder %s26, 1
    %p133 = por %p131, %p132
    %p135 = scmp.ne.s32.totalorder %s120, %s134
    %p136 = scmp.eq.s32.totalorder %s26, 0
    %p137 = por %p135, %p136
    %s139 = sadd.s32 %s138, 1
    %p142 = scmp.eq.s32.totalorder %s20, 1
    %p143 = scmp.ne.s32.totalorder %s138, %s140
    %p144 = scmp.eq.s32.totalorder %s20, 0
    %p145 = por %p143, %p144
    %p146 = scmp.ne.s32.totalorder %s138, %s140
    %p147 = scmp.eq.s32.totalorder %s25, 1
    %p148 = por %p146, %p147
    %p149 = scmp.ne.s32.totalorder %s140, %s141
    %p150 = scmp.eq.s32.totalorder %s25, 0
    %p151 = por %p149, %p150
    %p152 = scmp.ne.s32.totalorder %s140, %s141
    %p153 = scmp.eq.s32.totalorder %s26, 1
    %p154 = por %p152, %p153
    %p156 = scmp.ne.s32.totalorder %s141, %s155
    %p157 = scmp.eq.s32.totalorder %s26, 0
    %p158 = por %p156, %p157
    %s160 = sadd.s32 %s159, 1
    %p163 = scmp.eq.s32.totalorder %s20, 1
    %p164 = scmp.ne.s32.totalorder %s159, %s161
    %p165 = scmp.eq.s32.totalorder %s20, 0
    %p166 = por %p164, %p165
    %p167 = scmp.ne.s32.totalorder %s159, %s161
    %p168 = scmp.eq.s32.totalorder %s25, 1
    %p169 = por %p167, %p168
    %p170 = scmp.ne.s32.totalorder %s161, %s162
    %p171 = scmp.eq.s32.totalorder %s25, 0
    %p172 = por %p170, %p171
    %p173 = scmp.ne.s32.totalorder %s161, %s162
    %p174 = scmp.eq.s32.totalorder %s26, 1
    %p175 = por %p173, %p174
    %p177 = scmp.ne.s32.totalorder %s162, %s176
    %p178 = scmp.eq.s32.totalorder %s26, 0
    %p179 = por %p177, %p178
    %s181 = sadd.s32 %s180, 1
    %p184 = scmp.eq.s32.totalorder %s20, 1
    %p185 = scmp.ne.s32.totalorder %s180, %s182
    %p186 = scmp.eq.s32.totalorder %s20, 0
    %p187 = por %p185, %p186
    %p188 = scmp.ne.s32.totalorder %s180, %s182
    %p189 = scmp.eq.s32.totalorder %s25, 1
    %p190 = por %p188, %p189
    %p191 = scmp.ne.s32.totalorder %s182, %s183
    %p192 = scmp.eq.s32.totalorder %s25, 0
    %p193 = por %p191, %p192
    %p194 = scmp.ne.s32.totalorder %s182, %s183
    %p195 = scmp.eq.s32.totalorder %s26, 1
    %p196 = por %p194, %p195
    %p198 = scmp.ne.s32.totalorder %s183, %s197
    %p199 = scmp.eq.s32.totalorder %s26, 0
    %p200 = por %p198, %p199
    %s202 = sadd.s32 %s201, 1
    %p205 = scmp.eq.s32.totalorder %s20, 1
    %p206 = scmp.ne.s32.totalorder %s201, %s203
    %p207 = scmp.eq.s32.totalorder %s20, 0
    %p208 = por %p206, %p207
    %p209 = scmp.ne.s32.totalorder %s201, %s203
    %p210 = scmp.eq.s32.totalorder %s25, 1
    %p211 = por %p209, %p210
    %p212 = scmp.ne.s32.totalorder %s203, %s204
    %p213 = scmp.eq.s32.totalorder %s25, 0
    %p214 = por %p212, %p213
    %p215 = scmp.ne.s32.totalorder %s203, %s204
    %p216 = scmp.eq.s32.totalorder %s26, 1
    %p217 = por %p215, %p216
    %p219 = scmp.ne.s32.totalorder %s204, %s218
    %p220 = scmp.eq.s32.totalorder %s26, 0
    %p221 = por %p219, %p220
    %s223 = sadd.s32 %s222, 1
    %p226 = scmp.eq.s32.totalorder %s20, 1
    %p227 = scmp.ne.s32.totalorder %s222, %s224
    %p228 = scmp.eq.s32.totalorder %s20, 0
    %p229 = por %p227, %p228
    %p230 = scmp.ne.s32.totalorder %s222, %s224
    %p231 = scmp.eq.s32.totalorder %s25, 1
    %p232 = por %p230, %p231
    %p233 = scmp.ne.s32.totalorder %s224, %s225
    %p234 = scmp.eq.s32.totalorder %s25, 0
    %p235 = por %p233, %p234
    %p236 = scmp.ne.s32.totalorder %s224, %s225
    %p237 = scmp.eq.s32.totalorder %s26, 1
    %p238 = por %p236, %p237
    %p240 = scmp.ne.s32.totalorder %s225, %s239
    %p241 = scmp.eq.s32.totalorder %s26, 0
    %p242 = por %p240, %p241
    %s244 = sadd.s32 %s243, 1
    %p247 = scmp.eq.s32.totalorder %s20, 1
    %p248 = scmp.ne.s32.totalorder %s243, %s245
    %p249 = scmp.eq.s32.totalorder %s20, 0
    %p250 = por %p248, %p249
    %p251 = scmp.ne.s32.totalorder %s243, %s245
    %p252 = scmp.eq.s32.totalorder %s25, 1
    %p253 = por %p251, %p252
    %p254 = scmp.ne.s32.totalorder %s245, %s246
    %p255 = scmp.eq.s32.totalorder %s25, 0
    %p256 = por %p254, %p255
    %p257 = scmp.ne.s32.totalorder %s245, %s246
    %p258 = scmp.eq.s32.totalorder %s26, 1
    %p259 = por %p257, %p258
    %p261 = scmp.ne.s32.totalorder %s246, %s260
    %p262 = scmp.eq.s32.totalorder %s26, 0
    %p263 = por %p261, %p262
    %s265 = sadd.s32 %s264, 1
    %p268 = scmp.eq.s32.totalorder %s20, 1
    %p269 = scmp.ne.s32.totalorder %s264, %s266
    %p270 = scmp.eq.s32.totalorder %s20, 0
    %p271 = por %p269, %p270
    %p272 = scmp.ne.s32.totalorder %s264, %s266
    %p273 = scmp.eq.s32.totalorder %s25, 1
    %p274 = por %p272, %p273
    %p275 = scmp.ne.s32.totalorder %s266, %s267
    %p276 = scmp.eq.s32.totalorder %s25, 0
    %p277 = por %p275, %p276
    %p278 = scmp.ne.s32.totalorder %s266, %s267
    %p279 = scmp.eq.s32.totalorder %s26, 1
    %p280 = por %p278, %p279
    %p282 = scmp.ne.s32.totalorder %s267, %s281
    %p283 = scmp.eq.s32.totalorder %s26, 0
    %p284 = por %p282, %p283
    %s286 = sadd.s32 %s285, 1
    %p289 = scmp.eq.s32.totalorder %s20, 1
    %p290 = scmp.ne.s32.totalorder %s285, %s287
    %p291 = scmp.eq.s32.totalorder %s20, 0
    %p292 = por %p290, %p291
    %p293 = scmp.ne.s32.totalorder %s285, %s287
    %p294 = scmp.eq.s32.totalorder %s25, 1
    %p295 = por %p293, %p294
    %p296 = scmp.ne.s32.totalorder %s287, %s288
    %p297 = scmp.eq.s32.totalorder %s25, 0
    %p298 = por %p296, %p297
    %p299 = scmp.ne.s32.totalorder %s287, %s288
    %p300 = scmp.eq.s32.totalorder %s26, 1
    %p301 = por %p299, %p300
    %p303 = scmp.ne.s32.totalorder %s288, %s302
    %p304 = scmp.eq.s32.totalorder %s26, 0
    %p305 = por %p303, %p304
    %s307 = sadd.s32 %s306, 1
    %p310 = scmp.eq.s32.totalorder %s20, 1
    %p311 = scmp.ne.s32.totalorder %s306, %s308
    %p312 = scmp.eq.s32.totalorder %s20, 0
    %p313 = por %p311, %p312
    %p314 = scmp.ne.s32.totalorder %s306, %s308
    %p315 = scmp.eq.s32.totalorder %s25, 1
    %p316 = por %p314, %p315
    %p317 = scmp.ne.s32.totalorder %s308, %s309
    %p318 = scmp.eq.s32.totalorder %s25, 0
    %p319 = por %p317, %p318
    %p320 = scmp.ne.s32.totalorder %s308, %s309
    %p321 = scmp.eq.s32.totalorder %s26, 1
    %p322 = por %p320, %p321
    %p324 = scmp.ne.s32.totalorder %s309, %s323
    %p325 = scmp.eq.s32.totalorder %s26, 0
    %p326 = por %p324, %p325
    %s327 = ssub.s32 %s20, %s27
    %p328 = scmp.eq.s32.totalorder %s327, 0
    %s330 = sadd.s32 %s329, 1
    %s331 = scalar_select %p328, %s329, %s330
    %p334 = pneg %p328
    %p335 = scmp.eq.s32.totalorder %s20, 1
    %p336 = por %p334, %p335
    %p337 = scmp.ne.s32.totalorder %s329, %s332
    %p338 = scmp.eq.s32.totalorder %s20, 0
    %p339 = por %p337, %p338
    %p340 = scmp.ne.s32.totalorder %s329, %s332
    %p341 = scmp.eq.s32.totalorder %s25, 1
    %p342 = por %p340, %p341
    %p343 = scmp.ne.s32.totalorder %s332, %s333
    %p344 = scmp.eq.s32.totalorder %s25, 0
    %p345 = por %p343, %p344
    %p346 = scmp.ne.s32.totalorder %s332, %s333
    %p347 = scmp.eq.s32.totalorder %s26, 1
    %p348 = por %p346, %p347
    %p350 = scmp.ne.s32.totalorder %s333, %s349
    %p351 = scmp.eq.s32.totalorder %s26, 0
    %p352 = por %p350, %p351
    %p353 = scmp.le.s32.totalorder 1, %s20
    %p354 = scmp.lt.s32.totalorder %s20, 3
    %p355 = pnand %p353, %p354
    %p356 = pneg %p355
    // Predicated region
    $region9: #{_lambda_.1} parent=5 // pred_check
      _
    $region10: #{_lambda_.1} parent=5 // pred_check_branch
      %358 = sbr.rel (%p355) target = $region12
    $region11: #{_lambda_.1} parent=5 // pred_region
      %s359 = ssub.s32 %s20, 1
      // Predicated region
      $region13: #{_lambda_.1} parent=11 // pred_check
        %p360 = pneg %p67
      $region14: #{_lambda_.1} parent=11 // pred_check_branch
        %362 = sbr.rel (%p360) target = $region16
      $region15: #{_lambda_.1} parent=11 // pred_region
        _
      $region16: #{_lambda_.1} parent=11 // pred_fallthru
        _
      // Predicated region
      $region17: #{_lambda_.1} parent=11 // pred_check
        %p363 = pneg %p88
      $region18: #{_lambda_.1} parent=11 // pred_check_branch
        %365 = sbr.rel (%p363) target = $region20
      $region19: #{_lambda_.1} parent=11 // pred_region
        _
      $region20: #{_lambda_.1} parent=11 // pred_fallthru
        _
      // Predicated region
      $region21: #{_lambda_.1} parent=11 // pred_check
        %p366 = pneg %p109
      $region22: #{_lambda_.1} parent=11 // pred_check_branch
        %368 = sbr.rel (%p366) target = $region24
      $region23: #{_lambda_.1} parent=11 // pred_region
        _
      $region24: #{_lambda_.1} parent=11 // pred_fallthru
        _
      // Predicated region
      $region25: #{_lambda_.1} parent=11 // pred_check
        %p369 = pneg %p130
      $region26: #{_lambda_.1} parent=11 // pred_check_branch
        %371 = sbr.rel (%p369) target = $region28
      $region27: #{_lambda_.1} parent=11 // pred_region
        _
      $region28: #{_lambda_.1} parent=11 // pred_fallthru
        _
      // Predicated region
      $region29: #{_lambda_.1} parent=11 // pred_check
        %p372 = pneg %p151
      $region30: #{_lambda_.1} parent=11 // pred_check_branch
        %374 = sbr.rel (%p372) target = $region32
      $region31: #{_lambda_.1} parent=11 // pred_region
        _
      $region32: #{_lambda_.1} parent=11 // pred_fallthru
        _
      // Predicated region
      $region33: #{_lambda_.1} parent=11 // pred_check
        %p375 = pneg %p172
      $region34: #{_lambda_.1} parent=11 // pred_check_branch
        %377 = sbr.rel (%p375) target = $region36
      $region35: #{_lambda_.1} parent=11 // pred_region
        _
      $region36: #{_lambda_.1} parent=11 // pred_fallthru
        _
      // Predicated region
      $region37: #{_lambda_.1} parent=11 // pred_check
        %p378 = pneg %p193
      $region38: #{_lambda_.1} parent=11 // pred_check_branch
        %380 = sbr.rel (%p378) target = $region40
      $region39: #{_lambda_.1} parent=11 // pred_region
        _
      $region40: #{_lambda_.1} parent=11 // pred_fallthru
        _
      // Predicated region
      $region41: #{_lambda_.1} parent=11 // pred_check
        %p381 = pneg %p214
      $region42: #{_lambda_.1} parent=11 // pred_check_branch
        %383 = sbr.rel (%p381) target = $region44
      $region43: #{_lambda_.1} parent=11 // pred_region
        _
      $region44: #{_lambda_.1} parent=11 // pred_fallthru
        _
      // Predicated region
      $region45: #{_lambda_.1} parent=11 // pred_check
        %p384 = pneg %p235
      $region46: #{_lambda_.1} parent=11 // pred_check_branch
        %386 = sbr.rel (%p384) target = $region48
      $region47: #{_lambda_.1} parent=11 // pred_region
        _
      $region48: #{_lambda_.1} parent=11 // pred_fallthru
        _
      // Predicated region
      $region49: #{_lambda_.1} parent=11 // pred_check
        %p387 = pneg %p256
      $region50: #{_lambda_.1} parent=11 // pred_check_branch
        %389 = sbr.rel (%p387) target = $region52
      $region51: #{_lambda_.1} parent=11 // pred_region
        _
      $region52: #{_lambda_.1} parent=11 // pred_fallthru
        _
      // Predicated region
      $region53: #{_lambda_.1} parent=11 // pred_check
        %p390 = pneg %p277
      $region54: #{_lambda_.1} parent=11 // pred_check_branch
        %392 = sbr.rel (%p390) target = $region56
      $region55: #{_lambda_.1} parent=11 // pred_region
        _
      $region56: #{_lambda_.1} parent=11 // pred_fallthru
        _
      // Predicated region
      $region57: #{_lambda_.1} parent=11 // pred_check
        %p393 = pneg %p298
      $region58: #{_lambda_.1} parent=11 // pred_check_branch
        %395 = sbr.rel (%p393) target = $region60
      $region59: #{_lambda_.1} parent=11 // pred_region
        _
      $region60: #{_lambda_.1} parent=11 // pred_fallthru
        _
      // Predicated region
      $region61: #{_lambda_.1} parent=11 // pred_check
        %p396 = pneg %p319
      $region62: #{_lambda_.1} parent=11 // pred_check_branch
        %398 = sbr.rel (%p396) target = $region64
      $region63: #{_lambda_.1} parent=11 // pred_region
        _
      $region64: #{_lambda_.1} parent=11 // pred_fallthru
        _
    $region12: #{_lambda_.1} parent=5 // pred_fallthru
      _
    %p399 = scmp.lt.s32.totalorder %s20, 2
    // Predicated region
    $region65: #{_lambda_.1} parent=5 // pred_check
      %p400 = pneg %p399
    $region66: #{_lambda_.1} parent=5 // pred_check_branch
      %402 = sbr.rel (%p400) target = $region68
    $region67: #{_lambda_.1} parent=5 // pred_region
      // Predicated region
      $region69: #{_lambda_.1} parent=67 // pred_check
        %p403 = pneg %p40
      $region70: #{_lambda_.1} parent=67 // pred_check_branch
        %405 = sbr.rel (%p403) target = $region72
      $region71: #{_lambda_.1} parent=67 // pred_region
        %p406 = scmp.lt.s32.totalorder %s20, 1
        %s407 = scalar_select %p406, %s20, 1
        %s408 = smul.addr %s407, 32
        %s409 = smul.addr %s408, 8
        %s410 = scalar_lea.vmem %s0, %s409
      $region72: #{_lambda_.1} parent=67 // pred_fallthru
        _
    $region68: #{_lambda_.1} parent=5 // pred_fallthru
      _
    %p411 = scmp.le.s32.totalorder 1, %s20
    %p412 = scmp.lt.s32.totalorder %s20, 3
    %p413 = pnand %p411, %p412
    %p414 = pneg %p413
    // Predicated region
    $region73: #{_lambda_.1} parent=5 // pred_check
      _
    $region74: #{_lambda_.1} parent=5 // pred_check_branch
      %416 = sbr.rel (%p413) target = $region76
    $region75: #{_lambda_.1} parent=5 // pred_region
      %s417 = ssub.s32 %s20, 1
      %p418 = scmp.lt.s32.totalorder %s25, 1
      %s419 = scalar_select %p418, %s25, 1
      %s420 = smul.addr %s419, 32
      %s421 = smul.addr %s420, 8
      %s422 = scalar_lea.vmem %s0, %s421
      %p423 = pneg %p46
      %p424 = pneg %p43
      %p425 = pneg %p67
      %p426 = pneg %p64
      %p427 = pneg %p88
      %p428 = pneg %p85
      %p429 = pneg %p109
      %p430 = pneg %p106
      %p431 = pneg %p130
      %p432 = pneg %p127
      %p433 = pneg %p151
      %p434 = pneg %p148
      %p435 = pneg %p172
      %p436 = pneg %p169
      %p437 = pneg %p193
      %p438 = pneg %p190
      %p439 = pneg %p214
      %p440 = pneg %p211
      %p441 = pneg %p235
      %p442 = pneg %p232
      %p443 = pneg %p256
      %p444 = pneg %p253
      %p445 = pneg %p277
      %p446 = pneg %p274
      %p447 = pneg %p298
      %p448 = pneg %p295
      %p449 = pneg %p319
      %p450 = pneg %p316
      %p451 = pneg %p345
      %p452 = pneg %p342
      %p453 = scmp.lt.s32.totalorder %s25, 1
      %s454 = scalar_select %p453, %s25, 1
      %s455 = smul.addr %s454, 8
      %s456 = smul.addr %s455, 8
      %s457 = scalar_lea.vmem %s14, %s456
      %p458 = scmp.lt.s32.totalorder %s25, 1
      %s459 = scalar_select %p458, %s25, 1
      %s460 = smul.addr %s459, 32
      %s461 = smul.addr %s460, 8
      %s462 = scalar_lea.vmem %s0, %s461
      %p463 = scmp.lt.s32.totalorder %s25, 1
      %s464 = scalar_select %p463, %s25, 1
      %s465 = smul.addr %s464, 8
      %s466 = smul.addr %s465, 8
      %s467 = scalar_lea.vmem %s14, %s466
      %v468 = vld [vmem:[%s462] sm:$0xff]
      %v469 = vld [vmem:[%s462 + $0x8] sm:$0xff]
      %v470 = vld [vmem:[%s462 + $0x10] sm:$0xff]
      %v471 = vld [vmem:[%s462 + $0x18] sm:$0xff]
      %v472 = vld [vmem:[%s462 + $0x20] sm:$0xff]
      %v473 = vld [vmem:[%s462 + $0x28] sm:$0xff]
      %v474 = vld [vmem:[%s462 + $0x30] sm:$0xff]
      %v475 = vld [vmem:[%s462 + $0x38] sm:$0xff]
      %v476 = vld [vmem:[%s462 + $0x40] sm:$0xff]
      %v477 = vld [vmem:[%s462 + $0x48] sm:$0xff]
      %v478 = vld [vmem:[%s462 + $0x50] sm:$0xff]
      %v479 = vld [vmem:[%s462 + $0x58] sm:$0xff]
      %v480 = vld [vmem:[%s462 + $0x60] sm:$0xff]
      %v481 = vld [vmem:[%s462 + $0x68] sm:$0xff]
      %v482 = vld [vmem:[%s462 + $0x70] sm:$0xff]
      %v483 = vld [vmem:[%s462 + $0x78] sm:$0xff]
      %v484 = vld [vmem:[%s462 + $0x80] sm:$0xff]
      %v485 = vld [vmem:[%s462 + $0x88] sm:$0xff]
      %v486 = vld [vmem:[%s462 + $0x90] sm:$0xff]
      %v487 = vld [vmem:[%s462 + $0x98] sm:$0xff]
      %v488 = vld [vmem:[%s462 + $0xa0] sm:$0xff]
      %v489 = vld [vmem:[%s462 + $0xa8] sm:$0xff]
      %v490 = vld [vmem:[%s462 + $0xb0] sm:$0xff]
      %v491 = vld [vmem:[%s462 + $0xb8] sm:$0xff]
      %v492 = vld [vmem:[%s462 + $0xc0] sm:$0xff]
      %v493 = vld [vmem:[%s462 + $0xc8] sm:$0xff]
      %v494 = vld [vmem:[%s462 + $0xd0] sm:$0xff]
      %v495 = vld [vmem:[%s462 + $0xd8] sm:$0xff]
      %v496 = vld [vmem:[%s462 + $0xe0] sm:$0xff]
      %v497 = vld [vmem:[%s462 + $0xe8] sm:$0xff]
      %v498 = vld [vmem:[%s462 + $0xf0] sm:$0xff]
      %v499 = vld [vmem:[%s462 + $0xf8] sm:$0xff]
      %v500 = vld [vmem:[%s1] sm:$0xf]
      %v501 = vld [vmem:[%s2] sm:$0x1]
      %v503 = vlaneseq
      %v504 = vshrl.u32 %v503, 7
      %v505 = vsub.s32 0, %v504
      %v506 = vrot.slane %v501, %v505
      %vm508 = vcmask 31744
      %v510 = vsel %vm508, %v468, 0
      %v513 = vsel %vm508, %v469, 0
      %v516 = vsel %vm508, %v470, 0
      %v519 = vsel %vm508, %v471, 0
      %v522 = vsel %vm508, %v472, 0
      %v525 = vsel %vm508, %v473, 0
      %v528 = vsel %vm508, %v474, 0
      %v531 = vsel %vm508, %v475, 0
      %v534 = vsel %vm508, %v476, 0
      %v537 = vsel %vm508, %v477, 0
      %v540 = vsel %vm508, %v478, 0
      %v543 = vsel %vm508, %v479, 0
      %v546 = vsel %vm508, %v480, 0
      %v549 = vsel %vm508, %v481, 0
      %v552 = vsel %vm508, %v482, 0
      %v555 = vsel %vm508, %v483, 0
      %v558 = vsel %vm508, %v484, 0
      %v561 = vsel %vm508, %v485, 0
      %v564 = vsel %vm508, %v486, 0
      %v567 = vsel %vm508, %v487, 0
      %v570 = vsel %vm508, %v488, 0
      %v573 = vsel %vm508, %v489, 0
      %v576 = vsel %vm508, %v490, 0
      %v579 = vsel %vm508, %v491, 0
      %v582 = vsel %vm508, %v492, 0
      %v585 = vsel %vm508, %v493, 0
      %v588 = vsel %vm508, %v494, 0
      %v591 = vsel %vm508, %v495, 0
      %v594 = vsel %vm508, %v496, 0
      %v597 = vsel %vm508, %v497, 0
      %v600 = vsel %vm508, %v498, 0
      %v603 = vsel %vm508, %v499, 0
      %vm605 = vcmask 1043456
      %v607 = vsel %vm605, %v500, 0
      %609 = vmatprep.subr.mxu0 0.0
      %610 = vmatpush1.msra.mxu0 %v607
      %611 = vmatprep.subr.mxu0 0.0
      %612 = vmatpush1.msra.mxu0 0.0
      %613 = vmatprep.subr.mxu0 0.0
      %614 = vmatpush1.msra.mxu0 0.0
      %615 = vmatprep.subr.mxu0 0.0
      %616 = vmatpush1.msra.mxu0 0.0
      %617 = vmatprep.subr.mxu0 0.0
      %618 = vmatpush1.msra.mxu0 0.0
      %619 = vmatprep.subr.mxu0 0.0
      %620 = vmatpush1.msra.mxu0 0.0
      %621 = vmatprep.subr.mxu0 0.0
      %622 = vmatpush1.msra.mxu0 0.0
      %623 = vmatprep.subr.mxu0 0.0
      %624 = vmatpush1.msra.mxu0 0.0
      %625 = vmatprep.subr.mxu0 0.0
      %626 = vmatpush1.msra.mxu0 0.0
      %627 = vmatprep.subr.mxu0 0.0
      %628 = vmatpush1.msra.mxu0 0.0
      %629 = vmatprep.subr.mxu0 0.0
      %630 = vmatpush1.msra.mxu0 0.0
      %631 = vmatprep.subr.mxu0 0.0
      %632 = vmatpush1.msra.mxu0 0.0
      %633 = vmatprep.subr.mxu0 0.0
      %634 = vmatpush1.msra.mxu0 0.0
      %635 = vmatprep.subr.mxu0 0.0
      %636 = vmatpush1.msra.mxu0 0.0
      %637 = vmatprep.subr.mxu0 0.0
      %638 = vmatpush1.msra.mxu0 0.0
      %639 = vmatprep.subr.mxu0 0.0
      %640 = vmatpush1.msra.mxu0 0.0
      %641 = vmatprep.subr.mxu0 0.0
      %642 = vmatpush1.msra.mxu0 0.0
      %643 = vmatprep.subr.mxu0 0.0
      %644 = vmatpush1.msra.mxu0 0.0
      %645 = vmatprep.subr.mxu0 0.0
      %646 = vmatpush1.msra.mxu0 0.0
      %647 = vmatprep.subr.mxu0 0.0
      %648 = vmatpush1.msra.mxu0 0.0
      %649 = vmatprep.subr.mxu0 0.0
      %650 = vmatpush1.msra.mxu0 0.0
      %651 = vmatprep.subr.mxu0 0.0
      %652 = vmatpush1.msra.mxu0 0.0
      %653 = vmatprep.subr.mxu0 0.0
      %654 = vmatpush1.msra.mxu0 0.0
      %655 = vmatprep.subr.mxu0 0.0
      %656 = vmatpush1.msra.mxu0 0.0
      %657 = vmatprep.subr.mxu0 0.0
      %658 = vmatpush1.msra.mxu0 0.0
      %659 = vmatprep.subr.mxu0 0.0
      %660 = vmatpush1.msra.mxu0 0.0
      %661 = vmatprep.subr.mxu0 0.0
      %662 = vmatpush1.msra.mxu0 0.0
      %663 = vmatprep.subr.mxu0 0.0
      %664 = vmatpush1.msra.mxu0 0.0
      %665 = vmatprep.subr.mxu0 0.0
      %666 = vmatpush1.msra.mxu0 0.0
      %667 = vmatprep.subr.mxu0 0.0
      %668 = vmatpush1.msra.mxu0 0.0
      %669 = vmatprep.subr.mxu0 0.0
      %670 = vmatpush1.msra.mxu0 0.0
      %671 = vmatprep.subr.mxu0 0.0
      %672 = vmatpush1.msra.mxu0 0.0
      %673 = vmatprep.mubr.f32.mxu0 0.0
      %674 = vmatmul.mubr.f32.gmra.mrb[0].mxu0 %v510
      %v675 = vpop.f32.mrb[0].mxu0
      %v676 = vadd.f32 %v506, %v675
      %v677 = vpop.f32.mrb[0].mxu0
      %678 = vmatprep.mubr.f32.mxu0 0.0
      %679 = vmatmul.mubr.f32.gmra.mrb[0].mxu0 %v513
      %v680 = vpop.f32.mrb[0].mxu0
      %v681 = vadd.f32 %v506, %v680
      %v682 = vpop.f32.mrb[0].mxu0
      %683 = vmatprep.mubr.f32.mxu0 0.0
      %684 = vmatmul.mubr.f32.gmra.mrb[0].mxu0 %v516
      %v685 = vpop.f32.mrb[0].mxu0
      %v686 = vadd.f32 %v506, %v685
      %v687 = vpop.f32.mrb[0].mxu0
      %688 = vmatprep.mubr.f32.mxu0 0.0
      %689 = vmatmul.mubr.f32.gmra.mrb[0].mxu0 %v519
      %v690 = vpop.f32.mrb[0].mxu0
      %v691 = vadd.f32 %v506, %v690
      %v692 = vpop.f32.mrb[0].mxu0
      %693 = vmatprep.mubr.f32.mxu0 0.0
      %694 = vmatmul.mubr.f32.gmra.mrb[0].mxu0 %v522
      %v695 = vpop.f32.mrb[0].mxu0
      %v696 = vadd.f32 %v506, %v695
      %v697 = vpop.f32.mrb[0].mxu0
      %698 = vmatprep.mubr.f32.mxu0 0.0
      %699 = vmatmul.mubr.f32.gmra.mrb[0].mxu0 %v525
      %v700 = vpop.f32.mrb[0].mxu0
      %v701 = vadd.f32 %v506, %v700
      %v702 = vpop.f32.mrb[0].mxu0
      %703 = vmatprep.mubr.f32.mxu0 0.0
      %704 = vmatmul.mubr.f32.gmra.mrb[0].mxu0 %v528
      %v705 = vpop.f32.mrb[0].mxu0
      %v706 = vadd.f32 %v506, %v705
      %v707 = vpop.f32.mrb[0].mxu0
      %708 = vmatprep.mubr.f32.mxu0 0.0
      %709 = vmatmul.mubr.f32.gmra.mrb[0].mxu0 %v531
      %v710 = vpop.f32.mrb[0].mxu0
      %v711 = vadd.f32 %v506, %v710
      %v712 = vpop.f32.mrb[0].mxu0
      %713 = vmatprep.mubr.f32.mxu0 0.0
      %714 = vmatmul.mubr.f32.gmra.mrb[0].mxu0 %v534
      %v715 = vpop.f32.mrb[0].mxu0
      %v716 = vadd.f32 %v506, %v715
      %v717 = vpop.f32.mrb[0].mxu0
      %718 = vmatprep.mubr.f32.mxu0 0.0
      %719 = vmatmul.mubr.f32.gmra.mrb[0].mxu0 %v537
      %v720 = vpop.f32.mrb[0].mxu0
      %v721 = vadd.f32 %v506, %v720
      %v722 = vpop.f32.mrb[0].mxu0
      %723 = vmatprep.mubr.f32.mxu0 0.0
      %724 = vmatmul.mubr.f32.gmra.mrb[0].mxu0 %v540
      %v725 = vpop.f32.mrb[0].mxu0
      %v726 = vadd.f32 %v506, %v725
      %v727 = vpop.f32.mrb[0].mxu0
      %728 = vmatprep.mubr.f32.mxu0 0.0
      %729 = vmatmul.mubr.f32.gmra.mrb[0].mxu0 %v543
      %v730 = vpop.f32.mrb[0].mxu0
      %v731 = vadd.f32 %v506, %v730
      %v732 = vpop.f32.mrb[0].mxu0
      %733 = vmatprep.mubr.f32.mxu0 0.0
      %734 = vmatmul.mubr.f32.gmra.mrb[0].mxu0 %v546
      %v735 = vpop.f32.mrb[0].mxu0
      %v736 = vadd.f32 %v506, %v735
      %v737 = vpop.f32.mrb[0].mxu0
      %738 = vmatprep.mubr.f32.mxu0 0.0
      %739 = vmatmul.mubr.f32.gmra.mrb[0].mxu0 %v549
      %v740 = vpop.f32.mrb[0].mxu0
      %v741 = vadd.f32 %v506, %v740
      %v742 = vpop.f32.mrb[0].mxu0
      %743 = vmatprep.mubr.f32.mxu0 0.0
      %744 = vmatmul.mubr.f32.gmra.mrb[0].mxu0 %v552
      %v745 = vpop.f32.mrb[0].mxu0
      %v746 = vadd.f32 %v506, %v745
      %v747 = vpop.f32.mrb[0].mxu0
      %748 = vmatprep.mubr.f32.mxu0 0.0
      %749 = vmatmul.mubr.f32.gmra.mrb[0].mxu0 %v555
      %v750 = vpop.f32.mrb[0].mxu0
      %v751 = vadd.f32 %v506, %v750
      %v752 = vpop.f32.mrb[0].mxu0
      %753 = vmatprep.mubr.f32.mxu0 0.0
      %754 = vmatmul.mubr.f32.gmra.mrb[0].mxu0 %v558
      %v755 = vpop.f32.mrb[0].mxu0
      %v756 = vadd.f32 %v506, %v755
      %v757 = vpop.f32.mrb[0].mxu0
      %758 = vmatprep.mubr.f32.mxu0 0.0
      %759 = vmatmul.mubr.f32.gmra.mrb[0].mxu0 %v561
      %v760 = vpop.f32.mrb[0].mxu0
      %v761 = vadd.f32 %v506, %v760
      %v762 = vpop.f32.mrb[0].mxu0
      %763 = vmatprep.mubr.f32.mxu0 0.0
      %764 = vmatmul.mubr.f32.gmra.mrb[0].mxu0 %v564
      %v765 = vpop.f32.mrb[0].mxu0
      %v766 = vadd.f32 %v506, %v765
      %v767 = vpop.f32.mrb[0].mxu0
      %768 = vmatprep.mubr.f32.mxu0 0.0
      %769 = vmatmul.mubr.f32.gmra.mrb[0].mxu0 %v567
      %v770 = vpop.f32.mrb[0].mxu0
      %v771 = vadd.f32 %v506, %v770
      %v772 = vpop.f32.mrb[0].mxu0
      %773 = vmatprep.mubr.f32.mxu0 0.0
      %774 = vmatmul.mubr.f32.gmra.mrb[0].mxu0 %v570
      %v775 = vpop.f32.mrb[0].mxu0
      %v776 = vadd.f32 %v506, %v775
      %v777 = vpop.f32.mrb[0].mxu0
      %778 = vmatprep.mubr.f32.mxu0 0.0
      %779 = vmatmul.mubr.f32.gmra.mrb[0].mxu0 %v573
      %v780 = vpop.f32.mrb[0].mxu0
      %v781 = vadd.f32 %v506, %v780
      %v782 = vpop.f32.mrb[0].mxu0
      %783 = vmatprep.mubr.f32.mxu0 0.0
      %784 = vmatmul.mubr.f32.gmra.mrb[0].mxu0 %v576
      %v785 = vpop.f32.mrb[0].mxu0
      %v786 = vadd.f32 %v506, %v785
      %v787 = vpop.f32.mrb[0].mxu0
      %788 = vmatprep.mubr.f32.mxu0 0.0
      %789 = vmatmul.mubr.f32.gmra.mrb[0].mxu0 %v579
      %v790 = vpop.f32.mrb[0].mxu0
      %v791 = vadd.f32 %v506, %v790
      %v792 = vpop.f32.mrb[0].mxu0
      %793 = vmatprep.mubr.f32.mxu0 0.0
      %794 = vmatmul.mubr.f32.gmra.mrb[0].mxu0 %v582
      %v795 = vpop.f32.mrb[0].mxu0
      %v796 = vadd.f32 %v506, %v795
      %v797 = vpop.f32.mrb[0].mxu0
      %798 = vmatprep.mubr.f32.mxu0 0.0
      %799 = vmatmul.mubr.f32.gmra.mrb[0].mxu0 %v585
      %v800 = vpop.f32.mrb[0].mxu0
      %v801 = vadd.f32 %v506, %v800
      %v802 = vpop.f32.mrb[0].mxu0
      %803 = vmatprep.mubr.f32.mxu0 0.0
      %804 = vmatmul.mubr.f32.gmra.mrb[0].mxu0 %v588
      %v805 = vpop.f32.mrb[0].mxu0
      %v806 = vadd.f32 %v506, %v805
      %v807 = vpop.f32.mrb[0].mxu0
      %808 = vmatprep.mubr.f32.mxu0 0.0
      %809 = vmatmul.mubr.f32.gmra.mrb[0].mxu0 %v591
      %v810 = vpop.f32.mrb[0].mxu0
      %v811 = vadd.f32 %v506, %v810
      %v812 = vpop.f32.mrb[0].mxu0
      %813 = vmatprep.mubr.f32.mxu0 0.0
      %814 = vmatmul.mubr.f32.gmra.mrb[0].mxu0 %v594
      %v815 = vpop.f32.mrb[0].mxu0
      %v816 = vadd.f32 %v506, %v815
      %v817 = vpop.f32.mrb[0].mxu0
      %818 = vmatprep.mubr.f32.mxu0 0.0
      %819 = vmatmul.mubr.f32.gmra.mrb[0].mxu0 %v597
      %v820 = vpop.f32.mrb[0].mxu0
      %v821 = vadd.f32 %v506, %v820
      %v822 = vpop.f32.mrb[0].mxu0
      %823 = vmatprep.mubr.f32.mxu0 0.0
      %824 = vmatmul.mubr.f32.gmra.mrb[0].mxu0 %v600
      %v825 = vpop.f32.mrb[0].mxu0
      %v826 = vadd.f32 %v506, %v825
      %v827 = vpop.f32.mrb[0].mxu0
      %828 = vmatprep.mubr.f32.mxu0 0.0
      %829 = vmatmul.mubr.f32.gmra.mrb[0].mxu0 %v603
      %v830 = vpop.f32.mrb[0].mxu0
      %v831 = vadd.f32 %v506, %v830
      %v832 = vpop.f32.mrb[0].mxu0
      %833 = vdwg.mxu0
      %v834 = vmax.f32 %v676, 0.0
      %v835 = vmax.f32 %v681, 0.0
      %v836 = vmax.f32 %v686, 0.0
      %v837 = vmax.f32 %v691, 0.0
      %v838 = vmax.f32 %v696, 0.0
      %v839 = vmax.f32 %v701, 0.0
      %v840 = vmax.f32 %v706, 0.0
      %v841 = vmax.f32 %v711, 0.0
      %v842 = vmax.f32 %v716, 0.0
      %v843 = vmax.f32 %v721, 0.0
      %v844 = vmax.f32 %v726, 0.0
      %v845 = vmax.f32 %v731, 0.0
      %v846 = vmax.f32 %v736, 0.0
      %v847 = vmax.f32 %v741, 0.0
      %v848 = vmax.f32 %v746, 0.0
      %v849 = vmax.f32 %v751, 0.0
      %v850 = vmax.f32 %v756, 0.0
      %v851 = vmax.f32 %v761, 0.0
      %v852 = vmax.f32 %v766, 0.0
      %v853 = vmax.f32 %v771, 0.0
      %v854 = vmax.f32 %v776, 0.0
      %v855 = vmax.f32 %v781, 0.0
      %v856 = vmax.f32 %v786, 0.0
      %v857 = vmax.f32 %v791, 0.0
      %v858 = vmax.f32 %v796, 0.0
      %v859 = vmax.f32 %v801, 0.0
      %v860 = vmax.f32 %v806, 0.0
      %v861 = vmax.f32 %v811, 0.0
      %v862 = vmax.f32 %v816, 0.0
      %v863 = vmax.f32 %v821, 0.0
      %v864 = vmax.f32 %v826, 0.0
      %v865 = vmax.f32 %v831, 0.0
      %v866 = vmin.f32 %v834, 6.0
      %v867 = vmin.f32 %v835, 6.0
      %v868 = vmin.f32 %v836, 6.0
      %v869 = vmin.f32 %v837, 6.0
      %v870 = vmin.f32 %v838, 6.0
      %v871 = vmin.f32 %v839, 6.0
      %v872 = vmin.f32 %v840, 6.0
      %v873 = vmin.f32 %v841, 6.0
      %v874 = vmin.f32 %v842, 6.0
      %v875 = vmin.f32 %v843, 6.0
      %v876 = vmin.f32 %v844, 6.0
      %v877 = vmin.f32 %v845, 6.0
      %v878 = vmin.f32 %v846, 6.0
      %v879 = vmin.f32 %v847, 6.0
      %v880 = vmin.f32 %v848, 6.0
      %v881 = vmin.f32 %v849, 6.0
      %v882 = vmin.f32 %v850, 6.0
      %v883 = vmin.f32 %v851, 6.0
      %v884 = vmin.f32 %v852, 6.0
      %v885 = vmin.f32 %v853, 6.0
      %v886 = vmin.f32 %v854, 6.0
      %v887 = vmin.f32 %v855, 6.0
      %v888 = vmin.f32 %v856, 6.0
      %v889 = vmin.f32 %v857, 6.0
      %v890 = vmin.f32 %v858, 6.0
      %v891 = vmin.f32 %v859, 6.0
      %v892 = vmin.f32 %v860, 6.0
      %v893 = vmin.f32 %v861, 6.0
      %v894 = vmin.f32 %v862, 6.0
      %v895 = vmin.f32 %v863, 6.0
      %v896 = vmin.f32 %v864, 6.0
      %v897 = vmin.f32 %v865, 6.0
      %vm898 = vcmask 195584
      %899 = vst.msk [vmem:[#allocation2] sm:$0xff] %vm898, 0.0
      %900 = vst.msk [vmem:[#allocation2 + $0x8] sm:$0xff] %vm898, 0.0
      %901 = vst.msk [vmem:[#allocation2 + $0x10] sm:$0xff] %vm898, 0.0
      %902 = vst.msk [vmem:[#allocation2 + $0x18] sm:$0xff] %vm898, 0.0
      %903 = vst.msk [vmem:[#allocation2 + $0x20] sm:$0xff] %vm898, 0.0
      %904 = vst.msk [vmem:[#allocation2 + $0x28] sm:$0xff] %vm898, 0.0
      %905 = vst.msk [vmem:[#allocation2 + $0x30] sm:$0xff] %vm898, 0.0
      %906 = vst.msk [vmem:[#allocation2 + $0x38] sm:$0xff] %vm898, 0.0
      %907 = vst.msk [vmem:[#allocation2 + $0x40] sm:$0xff] %vm898, 0.0
      %908 = vst.msk [vmem:[#allocation2 + $0x48] sm:$0xff] %vm898, 0.0
      %909 = vst.msk [vmem:[#allocation2 + $0x50] sm:$0xff] %vm898, 0.0
      %910 = vst.msk [vmem:[#allocation2 + $0x58] sm:$0xff] %vm898, 0.0
      %911 = vst.msk [vmem:[#allocation2 + $0x60] sm:$0xff] %vm898, 0.0
      %912 = vst.msk [vmem:[#allocation2 + $0x68] sm:$0xff] %vm898, 0.0
      %913 = vst.msk [vmem:[#allocation2 + $0x70] sm:$0xff] %vm898, 0.0
      %914 = vst.msk [vmem:[#allocation2 + $0x78] sm:$0xff] %vm898, 0.0
      %915 = vst.msk [vmem:[#allocation2 + $0x80] sm:$0xff] %vm898, 0.0
      %916 = vst.msk [vmem:[#allocation2 + $0x88] sm:$0xff] %vm898, 0.0
      %917 = vst.msk [vmem:[#allocation2 + $0x90] sm:$0xff] %vm898, 0.0
      %918 = vst.msk [vmem:[#allocation2 + $0x98] sm:$0xff] %vm898, 0.0
      %919 = vst.msk [vmem:[#allocation2 + $0xa0] sm:$0xff] %vm898, 0.0
      %920 = vst.msk [vmem:[#allocation2 + $0xa8] sm:$0xff] %vm898, 0.0
      %921 = vst.msk [vmem:[#allocation2 + $0xb0] sm:$0xff] %vm898, 0.0
      %922 = vst.msk [vmem:[#allocation2 + $0xb8] sm:$0xff] %vm898, 0.0
      %923 = vst.msk [vmem:[#allocation2 + $0xc0] sm:$0xff] %vm898, 0.0
      %924 = vst.msk [vmem:[#allocation2 + $0xc8] sm:$0xff] %vm898, 0.0
      %925 = vst.msk [vmem:[#allocation2 + $0xd0] sm:$0xff] %vm898, 0.0
      %926 = vst.msk [vmem:[#allocation2 + $0xd8] sm:$0xff] %vm898, 0.0
      %927 = vst.msk [vmem:[#allocation2 + $0xe0] sm:$0xff] %vm898, 0.0
      %928 = vst.msk [vmem:[#allocation2 + $0xe8] sm:$0xff] %vm898, 0.0
      %929 = vst.msk [vmem:[#allocation2 + $0xf0] sm:$0xff] %vm898, 0.0
      %930 = vst.msk [vmem:[#allocation2 + $0xf8] sm:$0xff] %vm898, 0.0
      %931 = vst.msk [vmem:[#allocation2 + $0x100] sm:$0xff] %vm898, 0.0
      %932 = vst.msk [vmem:[#allocation2 + $0x108] sm:$0xff] %vm898, 0.0
      %933 = vst.msk [vmem:[#allocation2 + $0x110] sm:$0xff] %vm898, 0.0
      %934 = vst.msk [vmem:[#allocation2 + $0x118] sm:$0xff] %vm898, 0.0
      %935 = vst.msk [vmem:[#allocation2 + $0x120] sm:$0xff] %vm898, 0.0
      %936 = vst.msk [vmem:[#allocation2 + $0x128] sm:$0xff] %vm898, 0.0
      %937 = vst.msk [vmem:[#allocation2 + $0x130] sm:$0xff] %vm898, 0.0
      %938 = vst.msk [vmem:[#allocation2 + $0x138] sm:$0xff] %vm898, 0.0
      %939 = vst.msk [vmem:[#allocation2 + $0x140] sm:$0xff] %vm898, 0.0
      %940 = vst.msk [vmem:[#allocation2 + $0x148] sm:$0xff] %vm898, 0.0
      %941 = vst.msk [vmem:[#allocation2 + $0x150] sm:$0xff] %vm898, 0.0
      %942 = vst.msk [vmem:[#allocation2 + $0x158] sm:$0xff] %vm898, 0.0
      %943 = vst.msk [vmem:[#allocation2 + $0x160] sm:$0xff] %vm898, 0.0
      %944 = vst.msk [vmem:[#allocation2 + $0x168] sm:$0xff] %vm898, 0.0
      %945 = vst.msk [vmem:[#allocation2 + $0x170] sm:$0xff] %vm898, 0.0
      %946 = vst.msk [vmem:[#allocation2 + $0x178] sm:$0xff] %vm898, 0.0
      %947 = vst.msk [vmem:[#allocation2 + $0x180] sm:$0xff] %vm898, 0.0
      %948 = vst.msk [vmem:[#allocation2 + $0x188] sm:$0xff] %vm898, 0.0
      %949 = vst.msk [vmem:[#allocation2 + $0x190] sm:$0xff] %vm898, 0.0
      %950 = vst.msk [vmem:[#allocation2 + $0x198] sm:$0xff] %vm898, 0.0
      %951 = vst.msk [vmem:[#allocation2 + $0x1a0] sm:$0xff] %vm898, 0.0
      %952 = vst.msk [vmem:[#allocation2 + $0x1a8] sm:$0xff] %vm898, 0.0
      %953 = vst.msk [vmem:[#allocation2 + $0x1b0] sm:$0xff] %vm898, 0.0
      %954 = vst.msk [vmem:[#allocation2 + $0x1b8] sm:$0xff] %vm898, 0.0
      %955 = vst.msk [vmem:[#allocation2 + $0x1c0] sm:$0xff] %vm898, 0.0
      %956 = vst.msk [vmem:[#allocation2 + $0x1c8] sm:$0xff] %vm898, 0.0
      %957 = vst.msk [vmem:[#allocation2 + $0x1d0] sm:$0xff] %vm898, 0.0
      %958 = vst.msk [vmem:[#allocation2 + $0x1d8] sm:$0xff] %vm898, 0.0
      %959 = vst.msk [vmem:[#allocation2 + $0x1e0] sm:$0xff] %vm898, 0.0
      %960 = vst.msk [vmem:[#allocation2 + $0x1e8] sm:$0xff] %vm898, 0.0
      %961 = vst.msk [vmem:[#allocation2 + $0x1f0] sm:$0xff] %vm898, 0.0
      %962 = vst.msk [vmem:[#allocation2 + $0x1f8] sm:$0xff] %vm898, 0.0
      %963 = vst.msk [vmem:[#allocation2 + $0x200] sm:$0xff] %vm898, 0.0
      %964 = vst.msk [vmem:[#allocation2 + $0x208] sm:$0xff] %vm898, 0.0
      %965 = vst.msk [vmem:[#allocation2 + $0x210] sm:$0xff] %vm898, 0.0
      %966 = vst.msk [vmem:[#allocation2 + $0x218] sm:$0xff] %vm898, 0.0
      %967 = vst.msk [vmem:[#allocation2 + $0x220] sm:$0xff] %vm898, 0.0
      %968 = vst.msk [vmem:[#allocation2 + $0x228] sm:$0xff] %vm898, 0.0
      %969 = vst.msk [vmem:[#allocation2 + $0x230] sm:$0xff] %vm898, 0.0
      %970 = vst.msk [vmem:[#allocation2 + $0x238] sm:$0xff] %vm898, 0.0
      %s971 = scalar_lea.vmem [#allocation2], 32
      %972 = vst.msk [vmem:[%s971 + $0x8] sm:$0xff] %vm898, %v866
      %973 = vst.msk [vmem:[%s971 + $0x10] sm:$0xff] %vm898, %v867
      %974 = vst.msk [vmem:[%s971 + $0x28] sm:$0xff] %vm898, %v868
      %975 = vst.msk [vmem:[%s971 + $0x30] sm:$0xff] %vm898, %v869
      %976 = vst.msk [vmem:[%s971 + $0x48] sm:$0xff] %vm898, %v870
      %977 = vst.msk [vmem:[%s971 + $0x50] sm:$0xff] %vm898, %v871
      %978 = vst.msk [vmem:[%s971 + $0x68] sm:$0xff] %vm898, %v872
      %979 = vst.msk [vmem:[%s971 + $0x70] sm:$0xff] %vm898, %v873
      %980 = vst.msk [vmem:[%s971 + $0x88] sm:$0xff] %vm898, %v874
      %981 = vst.msk [vmem:[%s971 + $0x90] sm:$0xff] %vm898, %v875
      %982 = vst.msk [vmem:[%s971 + $0xa8] sm:$0xff] %vm898, %v876
      %983 = vst.msk [vmem:[%s971 + $0xb0] sm:$0xff] %vm898, %v877
      %984 = vst.msk [vmem:[%s971 + $0xc8] sm:$0xff] %vm898, %v878
      %985 = vst.msk [vmem:[%s971 + $0xd0] sm:$0xff] %vm898, %v879
      %986 = vst.msk [vmem:[%s971 + $0xe8] sm:$0xff] %vm898, %v880
      %987 = vst.msk [vmem:[%s971 + $0xf0] sm:$0xff] %vm898, %v881
      %988 = vst.msk [vmem:[%s971 + $0x108] sm:$0xff] %vm898, %v882
      %989 = vst.msk [vmem:[%s971 + $0x110] sm:$0xff] %vm898, %v883
      %990 = vst.msk [vmem:[%s971 + $0x128] sm:$0xff] %vm898, %v884
      %991 = vst.msk [vmem:[%s971 + $0x130] sm:$0xff] %vm898, %v885
      %992 = vst.msk [vmem:[%s971 + $0x148] sm:$0xff] %vm898, %v886
      %993 = vst.msk [vmem:[%s971 + $0x150] sm:$0xff] %vm898, %v887
      %994 = vst.msk [vmem:[%s971 + $0x168] sm:$0xff] %vm898, %v888
      %995 = vst.msk [vmem:[%s971 + $0x170] sm:$0xff] %vm898, %v889
      %996 = vst.msk [vmem:[%s971 + $0x188] sm:$0xff] %vm898, %v890
      %997 = vst.msk [vmem:[%s971 + $0x190] sm:$0xff] %vm898, %v891
      %998 = vst.msk [vmem:[%s971 + $0x1a8] sm:$0xff] %vm898, %v892
      %999 = vst.msk [vmem:[%s971 + $0x1b0] sm:$0xff] %vm898, %v893
      %1000 = vst.msk [vmem:[%s971 + $0x1c8] sm:$0xff] %vm898, %v894
      %1001 = vst.msk [vmem:[%s971 + $0x1d0] sm:$0xff] %vm898, %v895
      %1002 = vst.msk [vmem:[%s971 + $0x1e8] sm:$0xff] %vm898, %v896
      %1003 = vst.msk [vmem:[%s971 + $0x1f0] sm:$0xff] %vm898, %v897
      %v1004 = vld [vmem:[#allocation2] sm:$0xff]
      %v1005 = vld [vmem:[#allocation2 + $0x8] sm:$0xff]
      %v1006 = vld [vmem:[#allocation2 + $0x10] sm:$0xff]
      %v1007 = vld [vmem:[#allocation2 + $0x18] sm:$0xff]
      %v1008 = vld [vmem:[#allocation2 + $0x20] sm:$0xff]
      %v1009 = vld [vmem:[#allocation2 + $0x28] sm:$0xff]
      %v1010 = vld [vmem:[#allocation2 + $0x30] sm:$0xff]
      %v1011 = vld [vmem:[#allocation2 + $0x38] sm:$0xff]
      %v1012 = vld [vmem:[#allocation2 + $0x40] sm:$0xff]
      %v1013 = vld [vmem:[#allocation2 + $0x48] sm:$0xff]
      %v1014 = vld [vmem:[#allocation2 + $0x50] sm:$0xff]
      %v1015 = vld [vmem:[#allocation2 + $0x58] sm:$0xff]
      %v1016 = vld [vmem:[#allocation2 + $0x60] sm:$0xff]
      %v1017 = vld [vmem:[#allocation2 + $0x68] sm:$0xff]
      %v1018 = vld [vmem:[#allocation2 + $0x70] sm:$0xff]
      %v1019 = vld [vmem:[#allocation2 + $0x78] sm:$0xff]
      %v1020 = vld [vmem:[#allocation2 + $0x80] sm:$0xff]
      %v1021 = vld [vmem:[#allocation2 + $0x88] sm:$0xff]
      %v1022 = vld [vmem:[#allocation2 + $0x90] sm:$0xff]
      %v1023 = vld [vmem:[#allocation2 + $0x98] sm:$0xff]
      %v1024 = vld [vmem:[#allocation2 + $0xa0] sm:$0xff]
      %v1025 = vld [vmem:[#allocation2 + $0xa8] sm:$0xff]
      %v1026 = vld [vmem:[#allocation2 + $0xb0] sm:$0xff]
      %v1027 = vld [vmem:[#allocation2 + $0xb8] sm:$0xff]
      %v1028 = vld [vmem:[#allocation2 + $0xc0] sm:$0xff]
      %v1029 = vld [vmem:[#allocation2 + $0xc8] sm:$0xff]
      %v1030 = vld [vmem:[#allocation2 + $0xd0] sm:$0xff]
      %v1031 = vld [vmem:[#allocation2 + $0xd8] sm:$0xff]
      %v1032 = vld [vmem:[#allocation2 + $0xe0] sm:$0xff]
      %v1033 = vld [vmem:[#allocation2 + $0xe8] sm:$0xff]
      %v1034 = vld [vmem:[#allocation2 + $0xf0] sm:$0xff]
      %v1035 = vld [vmem:[#allocation2 + $0xf8] sm:$0xff]
      %v1036 = vld [vmem:[#allocation2 + $0x100] sm:$0xff]
      %v1037 = vld [vmem:[#allocation2 + $0x108] sm:$0xff]
      %v1038 = vld [vmem:[#allocation2 + $0x110] sm:$0xff]
      %v1039 = vld [vmem:[#allocation2 + $0x118] sm:$0xff]
      %v1040 = vld [vmem:[#allocation2 + $0x120] sm:$0xff]
      %v1041 = vld [vmem:[#allocation2 + $0x128] sm:$0xff]
      %v1042 = vld [vmem:[#allocation2 + $0x130] sm:$0xff]
      %v1043 = vld [vmem:[#allocation2 + $0x138] sm:$0xff]
      %v1044 = vld [vmem:[#allocation2 + $0x140] sm:$0xff]
      %v1045 = vld [vmem:[#allocation2 + $0x148] sm:$0xff]
      %v1046 = vld [vmem:[#allocation2 + $0x150] sm:$0xff]
      %v1047 = vld [vmem:[#allocation2 + $0x158] sm:$0xff]
      %v1048 = vld [vmem:[#allocation2 + $0x160] sm:$0xff]
      %v1049 = vld [vmem:[#allocation2 + $0x168] sm:$0xff]
      %v1050 = vld [vmem:[#allocation2 + $0x170] sm:$0xff]
      %v1051 = vld [vmem:[#allocation2 + $0x178] sm:$0xff]
      %v1052 = vld [vmem:[#allocation2 + $0x180] sm:$0xff]
      %v1053 = vld [vmem:[#allocation2 + $0x188] sm:$0xff]
      %v1054 = vld [vmem:[#allocation2 + $0x190] sm:$0xff]
      %v1055 = vld [vmem:[#allocation2 + $0x198] sm:$0xff]
      %v1056 = vld [vmem:[#allocation2 + $0x1a0] sm:$0xff]
      %v1057 = vld [vmem:[#allocation2 + $0x1a8] sm:$0xff]
      %v1058 = vld [vmem:[#allocation2 + $0x1b0] sm:$0xff]
      %v1059 = vld [vmem:[#allocation2 + $0x1b8] sm:$0xff]
      %v1060 = vld [vmem:[#allocation2 + $0x1c0] sm:$0xff]
      %v1061 = vld [vmem:[#allocation2 + $0x1c8] sm:$0xff]
      %v1062 = vld [vmem:[#allocation2 + $0x1d0] sm:$0xff]
      %v1063 = vld [vmem:[#allocation2 + $0x1d8] sm:$0xff]
      %v1064 = vld [vmem:[#allocation2 + $0x1e0] sm:$0xff]
      %v1065 = vld [vmem:[#allocation2 + $0x1e8] sm:$0xff]
      %v1066 = vld [vmem:[#allocation2 + $0x1f0] sm:$0xff]
      %v1067 = vld [vmem:[#allocation2 + $0x1f8] sm:$0xff]
      %v1068 = vld [vmem:[#allocation2 + $0x200] sm:$0xff]
      %v1069 = vld [vmem:[#allocation2 + $0x208] sm:$0xff]
      %v1070 = vld [vmem:[#allocation2 + $0x210] sm:$0xff]
      %v1071 = vld [vmem:[#allocation2 + $0x218] sm:$0xff]
      %v1072 = vld [vmem:[#allocation2 + $0x220] sm:$0xff]
      %v1073 = vld [vmem:[#allocation2 + $0x228] sm:$0xff]
      %v1074 = vld [vmem:[#allocation2 + $0x230] sm:$0xff]
      %v1075 = vld [vmem:[#allocation2 + $0x238] sm:$0xff]
      %v1076 = vld [vmem:[%s3] sm:$0x7]
      %v1077 = vld [vmem:[%s3 + $0x4] sm:$0x7]
      %v1078 = vld [vmem:[%s3 + $0x8] sm:$0x7]
      %v1079 = vlaneseq
      %v1080 = vshrl.u32 %v1079, 7
      %v1081 = vsub.s32 0, %v1080
      %v1082 = vrot.slane %v1076, %v1081
      %v1083 = vmul.f32 %v1004, %v1082
      %v1084 = vmul.f32 %v1005, %v1082
      %v1085 = vmul.f32 %v1006, %v1082
      %v1086 = vmul.f32 %v1008, %v1082
      %v1087 = vmul.f32 %v1009, %v1082
      %v1088 = vmul.f32 %v1010, %v1082
      %v1089 = vmul.f32 %v1012, %v1082
      %v1090 = vmul.f32 %v1013, %v1082
      %v1091 = vmul.f32 %v1014, %v1082
      %v1092 = vmul.f32 %v1016, %v1082
      %v1093 = vmul.f32 %v1017, %v1082
      %v1094 = vmul.f32 %v1018, %v1082
      %v1095 = vmul.f32 %v1020, %v1082
      %v1096 = vmul.f32 %v1021, %v1082
      %v1097 = vmul.f32 %v1022, %v1082
      %v1098 = vmul.f32 %v1024, %v1082
      %v1099 = vmul.f32 %v1025, %v1082
      %v1100 = vmul.f32 %v1026, %v1082
      %v1101 = vmul.f32 %v1028, %v1082
      %v1102 = vmul.f32 %v1029, %v1082
      %v1103 = vmul.f32 %v1030, %v1082
      %v1104 = vmul.f32 %v1032, %v1082
      %v1105 = vmul.f32 %v1033, %v1082
      %v1106 = vmul.f32 %v1034, %v1082
      %v1107 = vmul.f32 %v1036, %v1082
      %v1108 = vmul.f32 %v1037, %v1082
      %v1109 = vmul.f32 %v1038, %v1082
      %v1110 = vmul.f32 %v1040, %v1082
      %v1111 = vmul.f32 %v1041, %v1082
      %v1112 = vmul.f32 %v1042, %v1082
      %v1113 = vmul.f32 %v1044, %v1082
      %v1114 = vmul.f32 %v1045, %v1082
      %v1115 = vmul.f32 %v1046, %v1082
      %v1116 = vmul.f32 %v1048, %v1082
      %v1117 = vmul.f32 %v1049, %v1082
      %v1118 = vmul.f32 %v1050, %v1082
      %v1119 = vmul.f32 %v1052, %v1082
      %v1120 = vmul.f32 %v1053, %v1082
      %v1121 = vmul.f32 %v1054, %v1082
      %v1122 = vmul.f32 %v1056, %v1082
      %v1123 = vmul.f32 %v1057, %v1082
      %v1124 = vmul.f32 %v1058, %v1082
      %v1125 = vmul.f32 %v1060, %v1082
      %v1126 = vmul.f32 %v1061, %v1082
      %v1127 = vmul.f32 %v1062, %v1082
      %v1128 = vmul.f32 %v1064, %v1082
      %v1129 = vmul.f32 %v1065, %v1082
      %v1130 = vmul.f32 %v1066, %v1082
      %v1131 = vadd.f32 %v1083, 0.0
      %v1132 = vadd.f32 %v1084, 0.0
      %v1133 = vadd.f32 %v1085, 0.0
      %v1134 = vadd.f32 %v1086, 0.0
      %v1135 = vadd.f32 %v1087, 0.0
      %v1136 = vadd.f32 %v1088, 0.0
      %v1137 = vadd.f32 %v1089, 0.0
      %v1138 = vadd.f32 %v1090, 0.0
      %v1139 = vadd.f32 %v1091, 0.0
      %v1140 = vadd.f32 %v1092, 0.0
      %v1141 = vadd.f32 %v1093, 0.0
      %v1142 = vadd.f32 %v1094, 0.0
      %v1143 = vadd.f32 %v1095, 0.0
      %v1144 = vadd.f32 %v1096, 0.0
      %v1145 = vadd.f32 %v1097, 0.0
      %v1146 = vadd.f32 %v1098, 0.0
      %v1147 = vadd.f32 %v1099, 0.0
      %v1148 = vadd.f32 %v1100, 0.0
      %v1149 = vadd.f32 %v1101, 0.0
      %v1150 = vadd.f32 %v1102, 0.0
      %v1151 = vadd.f32 %v1103, 0.0
      %v1152 = vadd.f32 %v1104, 0.0
      %v1153 = vadd.f32 %v1105, 0.0
      %v1154 = vadd.f32 %v1106, 0.0
      %v1155 = vadd.f32 %v1107, 0.0
      %v1156 = vadd.f32 %v1108, 0.0
      %v1157 = vadd.f32 %v1109, 0.0
      %v1158 = vadd.f32 %v1110, 0.0
      %v1159 = vadd.f32 %v1111, 0.0
      %v1160 = vadd.f32 %v1112, 0.0
      %v1161 = vadd.f32 %v1113, 0.0
      %v1162 = vadd.f32 %v1114, 0.0
      %v1163 = vadd.f32 %v1115, 0.0
      %v1164 = vadd.f32 %v1116, 0.0
      %v1165 = vadd.f32 %v1117, 0.0
      %v1166 = vadd.f32 %v1118, 0.0
      %v1167 = vadd.f32 %v1119, 0.0
      %v1168 = vadd.f32 %v1120, 0.0
      %v1169 = vadd.f32 %v1121, 0.0
      %v1170 = vadd.f32 %v1122, 0.0
      %v1171 = vadd.f32 %v1123, 0.0
      %v1172 = vadd.f32 %v1124, 0.0
      %v1173 = vadd.f32 %v1125, 0.0
      %v1174 = vadd.f32 %v1126, 0.0
      %v1175 = vadd.f32 %v1127, 0.0
      %v1176 = vadd.f32 %v1128, 0.0
      %v1177 = vadd.f32 %v1129, 0.0
      %v1178 = vadd.f32 %v1130, 0.0
      %v1179 = vlaneseq
      %v1180 = vshrl.u32 %v1179, 7
      %v1181 = vsub.s32 1, %v1180
      %v1182 = vrot.slane %v1076, %v1181
      %v1183 = vmul.f32 %v1005, %v1182
      %v1184 = vmul.f32 %v1006, %v1182
      %v1185 = vmul.f32 %v1009, %v1182
      %v1186 = vmul.f32 %v1010, %v1182
      %v1187 = vmul.f32 %v1013, %v1182
      %v1188 = vmul.f32 %v1014, %v1182
      %v1189 = vmul.f32 %v1017, %v1182
      %v1190 = vmul.f32 %v1018, %v1182
      %v1191 = vmul.f32 %v1021, %v1182
      %v1192 = vmul.f32 %v1022, %v1182
      %v1193 = vmul.f32 %v1025, %v1182
      %v1194 = vmul.f32 %v1026, %v1182
      %v1195 = vmul.f32 %v1029, %v1182
      %v1196 = vmul.f32 %v1030, %v1182
      %v1197 = vmul.f32 %v1033, %v1182
      %v1198 = vmul.f32 %v1034, %v1182
      %v1199 = vmul.f32 %v1037, %v1182
      %v1200 = vmul.f32 %v1038, %v1182
      %v1201 = vmul.f32 %v1041, %v1182
      %v1202 = vmul.f32 %v1042, %v1182
      %v1203 = vmul.f32 %v1045, %v1182
      %v1204 = vmul.f32 %v1046, %v1182
      %v1205 = vmul.f32 %v1049, %v1182
      %v1206 = vmul.f32 %v1050, %v1182
      %v1207 = vmul.f32 %v1053, %v1182
      %v1208 = vmul.f32 %v1054, %v1182
      %v1209 = vmul.f32 %v1057, %v1182
      %v1210 = vmul.f32 %v1058, %v1182
      %v1211 = vmul.f32 %v1061, %v1182
      %v1212 = vmul.f32 %v1062, %v1182
      %v1213 = vmul.f32 %v1065, %v1182
      %v1214 = vmul.f32 %v1066, %v1182
      %vm1247 = vcmask 1046528
      %v1248 = vrot.slane %v1183, 1
      %v1249 = vrot.slane %v1184, 1
      %v1250 = vsel %vm1247, %v1248, %v1249
      %v1251 = vrot.slane %v1185, 1
      %v1252 = vrot.slane %v1186, 1
      %v1253 = vsel %vm1247, %v1251, %v1252
      %v1254 = vrot.slane %v1187, 1
      %v1255 = vrot.slane %v1188, 1
      %v1256 = vsel %vm1247, %v1254, %v1255
      %v1257 = vrot.slane %v1189, 1
      %v1258 = vrot.slane %v1190, 1
      %v1259 = vsel %vm1247, %v1257, %v1258
      %v1260 = vrot.slane %v1191, 1
      %v1261 = vrot.slane %v1192, 1
      %v1262 = vsel %vm1247, %v1260, %v1261
      %v1263 = vrot.slane %v1193, 1
      %v1264 = vrot.slane %v1194, 1
      %v1265 = vsel %vm1247, %v1263, %v1264
      %v1266 = vrot.slane %v1195, 1
      %v1267 = vrot.slane %v1196, 1
      %v1268 = vsel %vm1247, %v1266, %v1267
      %v1269 = vrot.slane %v1197, 1
      %v1270 = vrot.slane %v1198, 1
      %v1271 = vsel %vm1247, %v1269, %v1270
      %v1272 = vrot.slane %v1199, 1
      %v1273 = vrot.slane %v1200, 1
      %v1274 = vsel %vm1247, %v1272, %v1273
      %v1275 = vrot.slane %v1201, 1
      %v1276 = vrot.slane %v1202, 1
      %v1277 = vsel %vm1247, %v1275, %v1276
      %v1278 = vrot.slane %v1203, 1
      %v1279 = vrot.slane %v1204, 1
      %v1280 = vsel %vm1247, %v1278, %v1279
      %v1281 = vrot.slane %v1205, 1
      %v1282 = vrot.slane %v1206, 1
      %v1283 = vsel %vm1247, %v1281, %v1282
      %v1284 = vrot.slane %v1207, 1
      %v1285 = vrot.slane %v1208, 1
      %v1286 = vsel %vm1247, %v1284, %v1285
      %v1287 = vrot.slane %v1209, 1
      %v1288 = vrot.slane %v1210, 1
      %v1289 = vsel %vm1247, %v1287, %v1288
      %v1290 = vrot.slane %v1211, 1
      %v1291 = vrot.slane %v1212, 1
      %v1292 = vsel %vm1247, %v1290, %v1291
      %v1293 = vrot.slane %v1213, 1
      %v1294 = vrot.slane %v1214, 1
      %v1295 = vsel %vm1247, %v1293, %v1294
      %v1344 = vadd.f32 %v1131, %v1248
      %v1345 = vadd.f32 %v1132, %v1250
      %v1346 = vadd.f32 %v1133, %v1249
      %v1347 = vadd.f32 %v1134, %v1251
      %v1348 = vadd.f32 %v1135, %v1253
      %v1349 = vadd.f32 %v1136, %v1252
      %v1350 = vadd.f32 %v1137, %v1254
      %v1351 = vadd.f32 %v1138, %v1256
      %v1352 = vadd.f32 %v1139, %v1255
      %v1353 = vadd.f32 %v1140, %v1257
      %v1354 = vadd.f32 %v1141, %v1259
      %v1355 = vadd.f32 %v1142, %v1258
      %v1356 = vadd.f32 %v1143, %v1260
      %v1357 = vadd.f32 %v1144, %v1262
      %v1358 = vadd.f32 %v1145, %v1261
      %v1359 = vadd.f32 %v1146, %v1263
      %v1360 = vadd.f32 %v1147, %v1265
      %v1361 = vadd.f32 %v1148, %v1264
      %v1362 = vadd.f32 %v1149, %v1266
      %v1363 = vadd.f32 %v1150, %v1268
      %v1364 = vadd.f32 %v1151, %v1267
      %v1365 = vadd.f32 %v1152, %v1269
      %v1366 = vadd.f32 %v1153, %v1271
      %v1367 = vadd.f32 %v1154, %v1270
      %v1368 = vadd.f32 %v1155, %v1272
      %v1369 = vadd.f32 %v1156, %v1274
      %v1370 = vadd.f32 %v1157, %v1273
      %v1371 = vadd.f32 %v1158, %v1275
      %v1372 = vadd.f32 %v1159, %v1277
      %v1373 = vadd.f32 %v1160, %v1276
      %v1374 = vadd.f32 %v1161, %v1278
      %v1375 = vadd.f32 %v1162, %v1280
      %v1376 = vadd.f32 %v1163, %v1279
      %v1377 = vadd.f32 %v1164, %v1281
      %v1378 = vadd.f32 %v1165, %v1283
      %v1379 = vadd.f32 %v1166, %v1282
      %v1380 = vadd.f32 %v1167, %v1284
      %v1381 = vadd.f32 %v1168, %v1286
      %v1382 = vadd.f32 %v1169, %v1285
      %v1383 = vadd.f32 %v1170, %v1287
      %v1384 = vadd.f32 %v1171, %v1289
      %v1385 = vadd.f32 %v1172, %v1288
      %v1386 = vadd.f32 %v1173, %v1290
      %v1387 = vadd.f32 %v1174, %v1292
      %v1388 = vadd.f32 %v1175, %v1291
      %v1389 = vadd.f32 %v1176, %v1293
      %v1390 = vadd.f32 %v1177, %v1295
      %v1391 = vadd.f32 %v1178, %v1294
      %v1392 = vlaneseq
      %v1393 = vshrl.u32 %v1392, 7
      %v1394 = vsub.s32 2, %v1393
      %v1395 = vrot.slane %v1076, %v1394
      %v1396 = vmul.f32 %v1005, %v1395
      %v1397 = vmul.f32 %v1006, %v1395
      %v1398 = vmul.f32 %v1007, %v1395
      %v1399 = vmul.f32 %v1009, %v1395
      %v1400 = vmul.f32 %v1010, %v1395
      %v1401 = vmul.f32 %v1011, %v1395
      %v1402 = vmul.f32 %v1013, %v1395
      %v1403 = vmul.f32 %v1014, %v1395
      %v1404 = vmul.f32 %v1015, %v1395
      %v1405 = vmul.f32 %v1017, %v1395
      %v1406 = vmul.f32 %v1018, %v1395
      %v1407 = vmul.f32 %v1019, %v1395
      %v1408 = vmul.f32 %v1021, %v1395
      %v1409 = vmul.f32 %v1022, %v1395
      %v1410 = vmul.f32 %v1023, %v1395
      %v1411 = vmul.f32 %v1025, %v1395
      %v1412 = vmul.f32 %v1026, %v1395
      %v1413 = vmul.f32 %v1027, %v1395
      %v1414 = vmul.f32 %v1029, %v1395
      %v1415 = vmul.f32 %v1030, %v1395
      %v1416 = vmul.f32 %v1031, %v1395
      %v1417 = vmul.f32 %v1033, %v1395
      %v1418 = vmul.f32 %v1034, %v1395
      %v1419 = vmul.f32 %v1035, %v1395
      %v1420 = vmul.f32 %v1037, %v1395
      %v1421 = vmul.f32 %v1038, %v1395
      %v1422 = vmul.f32 %v1039, %v1395
      %v1423 = vmul.f32 %v1041, %v1395
      %v1424 = vmul.f32 %v1042, %v1395
      %v1425 = vmul.f32 %v1043, %v1395
      %v1426 = vmul.f32 %v1045, %v1395
      %v1427 = vmul.f32 %v1046, %v1395
      %v1428 = vmul.f32 %v1047, %v1395
      %v1429 = vmul.f32 %v1049, %v1395
      %v1430 = vmul.f32 %v1050, %v1395
      %v1431 = vmul.f32 %v1051, %v1395
      %v1432 = vmul.f32 %v1053, %v1395
      %v1433 = vmul.f32 %v1054, %v1395
      %v1434 = vmul.f32 %v1055, %v1395
      %v1435 = vmul.f32 %v1057, %v1395
      %v1436 = vmul.f32 %v1058, %v1395
      %v1437 = vmul.f32 %v1059, %v1395
      %v1438 = vmul.f32 %v1061, %v1395
      %v1439 = vmul.f32 %v1062, %v1395
      %v1440 = vmul.f32 %v1063, %v1395
      %v1441 = vmul.f32 %v1065, %v1395
      %v1442 = vmul.f32 %v1066, %v1395
      %v1443 = vmul.f32 %v1067, %v1395
      %vm1492 = vcmask 1045504
      %v1493 = vrot.slane %v1396, 2
      %v1494 = vrot.slane %v1397, 2
      %v1495 = vsel %vm1492, %v1493, %v1494
      %v1496 = vrot.slane %v1398, 2
      %v1497 = vsel %vm1492, %v1494, %v1496
      %v1498 = vrot.slane %v1399, 2
      %v1499 = vrot.slane %v1400, 2
      %v1500 = vsel %vm1492, %v1498, %v1499
      %v1501 = vrot.slane %v1401, 2
      %v1502 = vsel %vm1492, %v1499, %v1501
      %v1503 = vrot.slane %v1402, 2
      %v1504 = vrot.slane %v1403, 2
      %v1505 = vsel %vm1492, %v1503, %v1504
      %v1506 = vrot.slane %v1404, 2
      %v1507 = vsel %vm1492, %v1504, %v1506
      %v1508 = vrot.slane %v1405, 2
      %v1509 = vrot.slane %v1406, 2
      %v1510 = vsel %vm1492, %v1508, %v1509
      %v1511 = vrot.slane %v1407, 2
      %v1512 = vsel %vm1492, %v1509, %v1511
      %v1513 = vrot.slane %v1408, 2
      %v1514 = vrot.slane %v1409, 2
      %v1515 = vsel %vm1492, %v1513, %v1514
      %v1516 = vrot.slane %v1410, 2
      %v1517 = vsel %vm1492, %v1514, %v1516
      %v1518 = vrot.slane %v1411, 2
      %v1519 = vrot.slane %v1412, 2
      %v1520 = vsel %vm1492, %v1518, %v1519
      %v1521 = vrot.slane %v1413, 2
      %v1522 = vsel %vm1492, %v1519, %v1521
      %v1523 = vrot.slane %v1414, 2
      %v1524 = vrot.slane %v1415, 2
      %v1525 = vsel %vm1492, %v1523, %v1524
      %v1526 = vrot.slane %v1416, 2
      %v1527 = vsel %vm1492, %v1524, %v1526
      %v1528 = vrot.slane %v1417, 2
      %v1529 = vrot.slane %v1418, 2
      %v1530 = vsel %vm1492, %v1528, %v1529
      %v1531 = vrot.slane %v1419, 2
      %v1532 = vsel %vm1492, %v1529, %v1531
      %v1533 = vrot.slane %v1420, 2
      %v1534 = vrot.slane %v1421, 2
      %v1535 = vsel %vm1492, %v1533, %v1534
      %v1536 = vrot.slane %v1422, 2
      %v1537 = vsel %vm1492, %v1534, %v1536
      %v1538 = vrot.slane %v1423, 2
      %v1539 = vrot.slane %v1424, 2
      %v1540 = vsel %vm1492, %v1538, %v1539
      %v1541 = vrot.slane %v1425, 2
      %v1542 = vsel %vm1492, %v1539, %v1541
      %v1543 = vrot.slane %v1426, 2
      %v1544 = vrot.slane %v1427, 2
      %v1545 = vsel %vm1492, %v1543, %v1544
      %v1546 = vrot.slane %v1428, 2
      %v1547 = vsel %vm1492, %v1544, %v1546
      %v1548 = vrot.slane %v1429, 2
      %v1549 = vrot.slane %v1430, 2
      %v1550 = vsel %vm1492, %v1548, %v1549
      %v1551 = vrot.slane %v1431, 2
      %v1552 = vsel %vm1492, %v1549, %v1551
      %v1553 = vrot.slane %v1432, 2
      %v1554 = vrot.slane %v1433, 2
      %v1555 = vsel %vm1492, %v1553, %v1554
      %v1556 = vrot.slane %v1434, 2
      %v1557 = vsel %vm1492, %v1554, %v1556
      %v1558 = vrot.slane %v1435, 2
      %v1559 = vrot.slane %v1436, 2
      %v1560 = vsel %vm1492, %v1558, %v1559
      %v1561 = vrot.slane %v1437, 2
      %v1562 = vsel %vm1492, %v1559, %v1561
      %v1563 = vrot.slane %v1438, 2
      %v1564 = vrot.slane %v1439, 2
      %v1565 = vsel %vm1492, %v1563, %v1564
      %v1566 = vrot.slane %v1440, 2
      %v1567 = vsel %vm1492, %v1564, %v1566
      %v1568 = vrot.slane %v1441, 2
      %v1569 = vrot.slane %v1442, 2
      %v1570 = vsel %vm1492, %v1568, %v1569
      %v1571 = vrot.slane %v1443, 2
      %v1572 = vsel %vm1492, %v1569, %v1571
      %v1621 = vadd.f32 %v1344, %v1493
      %v1622 = vadd.f32 %v1345, %v1495
      %v1623 = vadd.f32 %v1346, %v1497
      %v1624 = vadd.f32 %v1347, %v1498
      %v1625 = vadd.f32 %v1348, %v1500
      %v1626 = vadd.f32 %v1349, %v1502
      %v1627 = vadd.f32 %v1350, %v1503
      %v1628 = vadd.f32 %v1351, %v1505
      %v1629 = vadd.f32 %v1352, %v1507
      %v1630 = vadd.f32 %v1353, %v1508
      %v1631 = vadd.f32 %v1354, %v1510
      %v1632 = vadd.f32 %v1355, %v1512
      %v1633 = vadd.f32 %v1356, %v1513
      %v1634 = vadd.f32 %v1357, %v1515
      %v1635 = vadd.f32 %v1358, %v1517
      %v1636 = vadd.f32 %v1359, %v1518
      %v1637 = vadd.f32 %v1360, %v1520
      %v1638 = vadd.f32 %v1361, %v1522
      %v1639 = vadd.f32 %v1362, %v1523
      %v1640 = vadd.f32 %v1363, %v1525
      %v1641 = vadd.f32 %v1364, %v1527
      %v1642 = vadd.f32 %v1365, %v1528
      %v1643 = vadd.f32 %v1366, %v1530
      %v1644 = vadd.f32 %v1367, %v1532
      %v1645 = vadd.f32 %v1368, %v1533
      %v1646 = vadd.f32 %v1369, %v1535
      %v1647 = vadd.f32 %v1370, %v1537
      %v1648 = vadd.f32 %v1371, %v1538
      %v1649 = vadd.f32 %v1372, %v1540
      %v1650 = vadd.f32 %v1373, %v1542
      %v1651 = vadd.f32 %v1374, %v1543
      %v1652 = vadd.f32 %v1375, %v1545
      %v1653 = vadd.f32 %v1376, %v1547
      %v1654 = vadd.f32 %v1377, %v1548
      %v1655 = vadd.f32 %v1378, %v1550
      %v1656 = vadd.f32 %v1379, %v1552
      %v1657 = vadd.f32 %v1380, %v1553
      %v1658 = vadd.f32 %v1381, %v1555
      %v1659 = vadd.f32 %v1382, %v1557
      %v1660 = vadd.f32 %v1383, %v1558
      %v1661 = vadd.f32 %v1384, %v1560
      %v1662 = vadd.f32 %v1385, %v1562
      %v1663 = vadd.f32 %v1386, %v1563
      %v1664 = vadd.f32 %v1387, %v1565
      %v1665 = vadd.f32 %v1388, %v1567
      %v1666 = vadd.f32 %v1389, %v1568
      %v1667 = vadd.f32 %v1390, %v1570
      %v1668 = vadd.f32 %v1391, %v1572
      %v1669 = vlaneseq
      %v1670 = vshrl.u32 %v1669, 7
      %v1671 = vsub.s32 0, %v1670
      %v1672 = vrot.slane %v1077, %v1671
      %v1673 = vmul.f32 %v1008, %v1672
      %v1674 = vmul.f32 %v1009, %v1672
      %v1675 = vmul.f32 %v1010, %v1672
      %v1676 = vmul.f32 %v1012, %v1672
      %v1677 = vmul.f32 %v1013, %v1672
      %v1678 = vmul.f32 %v1014, %v1672
      %v1679 = vmul.f32 %v1016, %v1672
      %v1680 = vmul.f32 %v1017, %v1672
      %v1681 = vmul.f32 %v1018, %v1672
      %v1682 = vmul.f32 %v1020, %v1672
      %v1683 = vmul.f32 %v1021, %v1672
      %v1684 = vmul.f32 %v1022, %v1672
      %v1685 = vmul.f32 %v1024, %v1672
      %v1686 = vmul.f32 %v1025, %v1672
      %v1687 = vmul.f32 %v1026, %v1672
      %v1688 = vmul.f32 %v1028, %v1672
      %v1689 = vmul.f32 %v1029, %v1672
      %v1690 = vmul.f32 %v1030, %v1672
      %v1691 = vmul.f32 %v1032, %v1672
      %v1692 = vmul.f32 %v1033, %v1672
      %v1693 = vmul.f32 %v1034, %v1672
      %v1694 = vmul.f32 %v1036, %v1672
      %v1695 = vmul.f32 %v1037, %v1672
      %v1696 = vmul.f32 %v1038, %v1672
      %v1697 = vmul.f32 %v1040, %v1672
      %v1698 = vmul.f32 %v1041, %v1672
      %v1699 = vmul.f32 %v1042, %v1672
      %v1700 = vmul.f32 %v1044, %v1672
      %v1701 = vmul.f32 %v1045, %v1672
      %v1702 = vmul.f32 %v1046, %v1672
      %v1703 = vmul.f32 %v1048, %v1672
      %v1704 = vmul.f32 %v1049, %v1672
      %v1705 = vmul.f32 %v1050, %v1672
      %v1706 = vmul.f32 %v1052, %v1672
      %v1707 = vmul.f32 %v1053, %v1672
      %v1708 = vmul.f32 %v1054, %v1672
      %v1709 = vmul.f32 %v1056, %v1672
      %v1710 = vmul.f32 %v1057, %v1672
      %v1711 = vmul.f32 %v1058, %v1672
      %v1712 = vmul.f32 %v1060, %v1672
      %v1713 = vmul.f32 %v1061, %v1672
      %v1714 = vmul.f32 %v1062, %v1672
      %v1715 = vmul.f32 %v1064, %v1672
      %v1716 = vmul.f32 %v1065, %v1672
      %v1717 = vmul.f32 %v1066, %v1672
      %v1718 = vmul.f32 %v1068, %v1672
      %v1719 = vmul.f32 %v1069, %v1672
      %v1720 = vmul.f32 %v1070, %v1672
      %v1721 = vadd.f32 %v1621, %v1673
      %v1722 = vadd.f32 %v1622, %v1674
      %v1723 = vadd.f32 %v1623, %v1675
      %v1724 = vadd.f32 %v1624, %v1676
      %v1725 = vadd.f32 %v1625, %v1677
      %v1726 = vadd.f32 %v1626, %v1678
      %v1727 = vadd.f32 %v1627, %v1679
      %v1728 = vadd.f32 %v1628, %v1680
      %v1729 = vadd.f32 %v1629, %v1681
      %v1730 = vadd.f32 %v1630, %v1682
      %v1731 = vadd.f32 %v1631, %v1683
      %v1732 = vadd.f32 %v1632, %v1684
      %v1733 = vadd.f32 %v1633, %v1685
      %v1734 = vadd.f32 %v1634, %v1686
      %v1735 = vadd.f32 %v1635, %v1687
      %v1736 = vadd.f32 %v1636, %v1688
      %v1737 = vadd.f32 %v1637, %v1689
      %v1738 = vadd.f32 %v1638, %v1690
      %v1739 = vadd.f32 %v1639, %v1691
      %v1740 = vadd.f32 %v1640, %v1692
      %v1741 = vadd.f32 %v1641, %v1693
      %v1742 = vadd.f32 %v1642, %v1694
      %v1743 = vadd.f32 %v1643, %v1695
      %v1744 = vadd.f32 %v1644, %v1696
      %v1745 = vadd.f32 %v1645, %v1697
      %v1746 = vadd.f32 %v1646, %v1698
      %v1747 = vadd.f32 %v1647, %v1699
      %v1748 = vadd.f32 %v1648, %v1700
      %v1749 = vadd.f32 %v1649, %v1701
      %v1750 = vadd.f32 %v1650, %v1702
      %v1751 = vadd.f32 %v1651, %v1703
      %v1752 = vadd.f32 %v1652, %v1704
      %v1753 = vadd.f32 %v1653, %v1705
      %v1754 = vadd.f32 %v1654, %v1706
      %v1755 = vadd.f32 %v1655, %v1707
      %v1756 = vadd.f32 %v1656, %v1708
      %v1757 = vadd.f32 %v1657, %v1709
      %v1758 = vadd.f32 %v1658, %v1710
      %v1759 = vadd.f32 %v1659, %v1711
      %v1760 = vadd.f32 %v1660, %v1712
      %v1761 = vadd.f32 %v1661, %v1713
      %v1762 = vadd.f32 %v1662, %v1714
      %v1763 = vadd.f32 %v1663, %v1715
      %v1764 = vadd.f32 %v1664, %v1716
      %v1765 = vadd.f32 %v1665, %v1717
      %v1766 = vadd.f32 %v1666, %v1718
      %v1767 = vadd.f32 %v1667, %v1719
      %v1768 = vadd.f32 %v1668, %v1720
      %v1769 = vlaneseq
      %v1770 = vshrl.u32 %v1769, 7
      %v1771 = vsub.s32 1, %v1770
      %v1772 = vrot.slane %v1077, %v1771
      %v1773 = vmul.f32 %v1009, %v1772
      %v1774 = vmul.f32 %v1010, %v1772
      %v1775 = vmul.f32 %v1013, %v1772
      %v1776 = vmul.f32 %v1014, %v1772
      %v1777 = vmul.f32 %v1017, %v1772
      %v1778 = vmul.f32 %v1018, %v1772
      %v1779 = vmul.f32 %v1021, %v1772
      %v1780 = vmul.f32 %v1022, %v1772
      %v1781 = vmul.f32 %v1025, %v1772
      %v1782 = vmul.f32 %v1026, %v1772
      %v1783 = vmul.f32 %v1029, %v1772
      %v1784 = vmul.f32 %v1030, %v1772
      %v1785 = vmul.f32 %v1033, %v1772
      %v1786 = vmul.f32 %v1034, %v1772
      %v1787 = vmul.f32 %v1037, %v1772
      %v1788 = vmul.f32 %v1038, %v1772
      %v1789 = vmul.f32 %v1041, %v1772
      %v1790 = vmul.f32 %v1042, %v1772
      %v1791 = vmul.f32 %v1045, %v1772
      %v1792 = vmul.f32 %v1046, %v1772
      %v1793 = vmul.f32 %v1049, %v1772
      %v1794 = vmul.f32 %v1050, %v1772
      %v1795 = vmul.f32 %v1053, %v1772
      %v1796 = vmul.f32 %v1054, %v1772
      %v1797 = vmul.f32 %v1057, %v1772
      %v1798 = vmul.f32 %v1058, %v1772
      %v1799 = vmul.f32 %v1061, %v1772
      %v1800 = vmul.f32 %v1062, %v1772
      %v1801 = vmul.f32 %v1065, %v1772
      %v1802 = vmul.f32 %v1066, %v1772
      %v1803 = vmul.f32 %v1069, %v1772
      %v1804 = vmul.f32 %v1070, %v1772
      %v1837 = vrot.slane %v1773, 1
      %v1838 = vrot.slane %v1774, 1
      %v1839 = vsel %vm1247, %v1837, %v1838
      %v1840 = vrot.slane %v1775, 1
      %v1841 = vrot.slane %v1776, 1
      %v1842 = vsel %vm1247, %v1840, %v1841
      %v1843 = vrot.slane %v1777, 1
      %v1844 = vrot.slane %v1778, 1
      %v1845 = vsel %vm1247, %v1843, %v1844
      %v1846 = vrot.slane %v1779, 1
      %v1847 = vrot.slane %v1780, 1
      %v1848 = vsel %vm1247, %v1846, %v1847
      %v1849 = vrot.slane %v1781, 1
      %v1850 = vrot.slane %v1782, 1
      %v1851 = vsel %vm1247, %v1849, %v1850
      %v1852 = vrot.slane %v1783, 1
      %v1853 = vrot.slane %v1784, 1
      %v1854 = vsel %vm1247, %v1852, %v1853
      %v1855 = vrot.slane %v1785, 1
      %v1856 = vrot.slane %v1786, 1
      %v1857 = vsel %vm1247, %v1855, %v1856
      %v1858 = vrot.slane %v1787, 1
      %v1859 = vrot.slane %v1788, 1
      %v1860 = vsel %vm1247, %v1858, %v1859
      %v1861 = vrot.slane %v1789, 1
      %v1862 = vrot.slane %v1790, 1
      %v1863 = vsel %vm1247, %v1861, %v1862
      %v1864 = vrot.slane %v1791, 1
      %v1865 = vrot.slane %v1792, 1
      %v1866 = vsel %vm1247, %v1864, %v1865
      %v1867 = vrot.slane %v1793, 1
      %v1868 = vrot.slane %v1794, 1
      %v1869 = vsel %vm1247, %v1867, %v1868
      %v1870 = vrot.slane %v1795, 1
      %v1871 = vrot.slane %v1796, 1
      %v1872 = vsel %vm1247, %v1870, %v1871
      %v1873 = vrot.slane %v1797, 1
      %v1874 = vrot.slane %v1798, 1
      %v1875 = vsel %vm1247, %v1873, %v1874
      %v1876 = vrot.slane %v1799, 1
      %v1877 = vrot.slane %v1800, 1
      %v1878 = vsel %vm1247, %v1876, %v1877
      %v1879 = vrot.slane %v1801, 1
      %v1880 = vrot.slane %v1802, 1
      %v1881 = vsel %vm1247, %v1879, %v1880
      %v1882 = vrot.slane %v1803, 1
      %v1883 = vrot.slane %v1804, 1
      %v1884 = vsel %vm1247, %v1882, %v1883
      %v1933 = vadd.f32 %v1721, %v1837
      %v1934 = vadd.f32 %v1722, %v1839
      %v1935 = vadd.f32 %v1723, %v1838
      %v1936 = vadd.f32 %v1724, %v1840
      %v1937 = vadd.f32 %v1725, %v1842
      %v1938 = vadd.f32 %v1726, %v1841
      %v1939 = vadd.f32 %v1727, %v1843
      %v1940 = vadd.f32 %v1728, %v1845
      %v1941 = vadd.f32 %v1729, %v1844
      %v1942 = vadd.f32 %v1730, %v1846
      %v1943 = vadd.f32 %v1731, %v1848
      %v1944 = vadd.f32 %v1732, %v1847
      %v1945 = vadd.f32 %v1733, %v1849
      %v1946 = vadd.f32 %v1734, %v1851
      %v1947 = vadd.f32 %v1735, %v1850
      %v1948 = vadd.f32 %v1736, %v1852
      %v1949 = vadd.f32 %v1737, %v1854
      %v1950 = vadd.f32 %v1738, %v1853
      %v1951 = vadd.f32 %v1739, %v1855
      %v1952 = vadd.f32 %v1740, %v1857
      %v1953 = vadd.f32 %v1741, %v1856
      %v1954 = vadd.f32 %v1742, %v1858
      %v1955 = vadd.f32 %v1743, %v1860
      %v1956 = vadd.f32 %v1744, %v1859
      %v1957 = vadd.f32 %v1745, %v1861
      %v1958 = vadd.f32 %v1746, %v1863
      %v1959 = vadd.f32 %v1747, %v1862
      %v1960 = vadd.f32 %v1748, %v1864
      %v1961 = vadd.f32 %v1749, %v1866
      %v1962 = vadd.f32 %v1750, %v1865
      %v1963 = vadd.f32 %v1751, %v1867
      %v1964 = vadd.f32 %v1752, %v1869
      %v1965 = vadd.f32 %v1753, %v1868
      %v1966 = vadd.f32 %v1754, %v1870
      %v1967 = vadd.f32 %v1755, %v1872
      %v1968 = vadd.f32 %v1756, %v1871
      %v1969 = vadd.f32 %v1757, %v1873
      %v1970 = vadd.f32 %v1758, %v1875
      %v1971 = vadd.f32 %v1759, %v1874
      %v1972 = vadd.f32 %v1760, %v1876
      %v1973 = vadd.f32 %v1761, %v1878
      %v1974 = vadd.f32 %v1762, %v1877
      %v1975 = vadd.f32 %v1763, %v1879
      %v1976 = vadd.f32 %v1764, %v1881
      %v1977 = vadd.f32 %v1765, %v1880
      %v1978 = vadd.f32 %v1766, %v1882
      %v1979 = vadd.f32 %v1767, %v1884
      %v1980 = vadd.f32 %v1768, %v1883
      %v1981 = vlaneseq
      %v1982 = vshrl.u32 %v1981, 7
      %v1983 = vsub.s32 2, %v1982
      %v1984 = vrot.slane %v1077, %v1983
      %v1985 = vmul.f32 %v1009, %v1984
      %v1986 = vmul.f32 %v1010, %v1984
      %v1987 = vmul.f32 %v1011, %v1984
      %v1988 = vmul.f32 %v1013, %v1984
      %v1989 = vmul.f32 %v1014, %v1984
      %v1990 = vmul.f32 %v1015, %v1984
      %v1991 = vmul.f32 %v1017, %v1984
      %v1992 = vmul.f32 %v1018, %v1984
      %v1993 = vmul.f32 %v1019, %v1984
      %v1994 = vmul.f32 %v1021, %v1984
      %v1995 = vmul.f32 %v1022, %v1984
      %v1996 = vmul.f32 %v1023, %v1984
      %v1997 = vmul.f32 %v1025, %v1984
      %v1998 = vmul.f32 %v1026, %v1984
      %v1999 = vmul.f32 %v1027, %v1984
      %v2000 = vmul.f32 %v1029, %v1984
      %v2001 = vmul.f32 %v1030, %v1984
      %v2002 = vmul.f32 %v1031, %v1984
      %v2003 = vmul.f32 %v1033, %v1984
      %v2004 = vmul.f32 %v1034, %v1984
      %v2005 = vmul.f32 %v1035, %v1984
      %v2006 = vmul.f32 %v1037, %v1984
      %v2007 = vmul.f32 %v1038, %v1984
      %v2008 = vmul.f32 %v1039, %v1984
      %v2009 = vmul.f32 %v1041, %v1984
      %v2010 = vmul.f32 %v1042, %v1984
      %v2011 = vmul.f32 %v1043, %v1984
      %v2012 = vmul.f32 %v1045, %v1984
      %v2013 = vmul.f32 %v1046, %v1984
      %v2014 = vmul.f32 %v1047, %v1984
      %v2015 = vmul.f32 %v1049, %v1984
      %v2016 = vmul.f32 %v1050, %v1984
      %v2017 = vmul.f32 %v1051, %v1984
      %v2018 = vmul.f32 %v1053, %v1984
      %v2019 = vmul.f32 %v1054, %v1984
      %v2020 = vmul.f32 %v1055, %v1984
      %v2021 = vmul.f32 %v1057, %v1984
      %v2022 = vmul.f32 %v1058, %v1984
      %v2023 = vmul.f32 %v1059, %v1984
      %v2024 = vmul.f32 %v1061, %v1984
      %v2025 = vmul.f32 %v1062, %v1984
      %v2026 = vmul.f32 %v1063, %v1984
      %v2027 = vmul.f32 %v1065, %v1984
      %v2028 = vmul.f32 %v1066, %v1984
      %v2029 = vmul.f32 %v1067, %v1984
      %v2030 = vmul.f32 %v1069, %v1984
      %v2031 = vmul.f32 %v1070, %v1984
      %v2032 = vmul.f32 %v1071, %v1984
      %v2081 = vrot.slane %v1985, 2
      %v2082 = vrot.slane %v1986, 2
      %v2083 = vsel %vm1492, %v2081, %v2082
      %v2084 = vrot.slane %v1987, 2
      %v2085 = vsel %vm1492, %v2082, %v2084
      %v2086 = vrot.slane %v1988, 2
      %v2087 = vrot.slane %v1989, 2
      %v2088 = vsel %vm1492, %v2086, %v2087
      %v2089 = vrot.slane %v1990, 2
      %v2090 = vsel %vm1492, %v2087, %v2089
      %v2091 = vrot.slane %v1991, 2
      %v2092 = vrot.slane %v1992, 2
      %v2093 = vsel %vm1492, %v2091, %v2092
      %v2094 = vrot.slane %v1993, 2
      %v2095 = vsel %vm1492, %v2092, %v2094
      %v2096 = vrot.slane %v1994, 2
      %v2097 = vrot.slane %v1995, 2
      %v2098 = vsel %vm1492, %v2096, %v2097
      %v2099 = vrot.slane %v1996, 2
      %v2100 = vsel %vm1492, %v2097, %v2099
      %v2101 = vrot.slane %v1997, 2
      %v2102 = vrot.slane %v1998, 2
      %v2103 = vsel %vm1492, %v2101, %v2102
      %v2104 = vrot.slane %v1999, 2
      %v2105 = vsel %vm1492, %v2102, %v2104
      %v2106 = vrot.slane %v2000, 2
      %v2107 = vrot.slane %v2001, 2
      %v2108 = vsel %vm1492, %v2106, %v2107
      %v2109 = vrot.slane %v2002, 2
      %v2110 = vsel %vm1492, %v2107, %v2109
      %v2111 = vrot.slane %v2003, 2
      %v2112 = vrot.slane %v2004, 2
      %v2113 = vsel %vm1492, %v2111, %v2112
      %v2114 = vrot.slane %v2005, 2
      %v2115 = vsel %vm1492, %v2112, %v2114
      %v2116 = vrot.slane %v2006, 2
      %v2117 = vrot.slane %v2007, 2
      %v2118 = vsel %vm1492, %v2116, %v2117
      %v2119 = vrot.slane %v2008, 2
      %v2120 = vsel %vm1492, %v2117, %v2119
      %v2121 = vrot.slane %v2009, 2
      %v2122 = vrot.slane %v2010, 2
      %v2123 = vsel %vm1492, %v2121, %v2122
      %v2124 = vrot.slane %v2011, 2
      %v2125 = vsel %vm1492, %v2122, %v2124
      %v2126 = vrot.slane %v2012, 2
      %v2127 = vrot.slane %v2013, 2
      %v2128 = vsel %vm1492, %v2126, %v2127
      %v2129 = vrot.slane %v2014, 2
      %v2130 = vsel %vm1492, %v2127, %v2129
      %v2131 = vrot.slane %v2015, 2
      %v2132 = vrot.slane %v2016, 2
      %v2133 = vsel %vm1492, %v2131, %v2132
      %v2134 = vrot.slane %v2017, 2
      %v2135 = vsel %vm1492, %v2132, %v2134
      %v2136 = vrot.slane %v2018, 2
      %v2137 = vrot.slane %v2019, 2
      %v2138 = vsel %vm1492, %v2136, %v2137
      %v2139 = vrot.slane %v2020, 2
      %v2140 = vsel %vm1492, %v2137, %v2139
      %v2141 = vrot.slane %v2021, 2
      %v2142 = vrot.slane %v2022, 2
      %v2143 = vsel %vm1492, %v2141, %v2142
      %v2144 = vrot.slane %v2023, 2
      %v2145 = vsel %vm1492, %v2142, %v2144
      %v2146 = vrot.slane %v2024, 2
      %v2147 = vrot.slane %v2025, 2
      %v2148 = vsel %vm1492, %v2146, %v2147
      %v2149 = vrot.slane %v2026, 2
      %v2150 = vsel %vm1492, %v2147, %v2149
      %v2151 = vrot.slane %v2027, 2
      %v2152 = vrot.slane %v2028, 2
      %v2153 = vsel %vm1492, %v2151, %v2152
      %v2154 = vrot.slane %v2029, 2
      %v2155 = vsel %vm1492, %v2152, %v2154
      %v2156 = vrot.slane %v2030, 2
      %v2157 = vrot.slane %v2031, 2
      %v2158 = vsel %vm1492, %v2156, %v2157
      %v2159 = vrot.slane %v2032, 2
      %v2160 = vsel %vm1492, %v2157, %v2159
      %v2209 = vadd.f32 %v1933, %v2081
      %v2210 = vadd.f32 %v1934, %v2083
      %v2211 = vadd.f32 %v1935, %v2085
      %v2212 = vadd.f32 %v1936, %v2086
      %v2213 = vadd.f32 %v1937, %v2088
      %v2214 = vadd.f32 %v1938, %v2090
      %v2215 = vadd.f32 %v1939, %v2091
      %v2216 = vadd.f32 %v1940, %v2093
      %v2217 = vadd.f32 %v1941, %v2095
      %v2218 = vadd.f32 %v1942, %v2096
      %v2219 = vadd.f32 %v1943, %v2098
      %v2220 = vadd.f32 %v1944, %v2100
      %v2221 = vadd.f32 %v1945, %v2101
      %v2222 = vadd.f32 %v1946, %v2103
      %v2223 = vadd.f32 %v1947, %v2105
      %v2224 = vadd.f32 %v1948, %v2106
      %v2225 = vadd.f32 %v1949, %v2108
      %v2226 = vadd.f32 %v1950, %v2110
      %v2227 = vadd.f32 %v1951, %v2111
      %v2228 = vadd.f32 %v1952, %v2113
      %v2229 = vadd.f32 %v1953, %v2115
      %v2230 = vadd.f32 %v1954, %v2116
      %v2231 = vadd.f32 %v1955, %v2118
      %v2232 = vadd.f32 %v1956, %v2120
      %v2233 = vadd.f32 %v1957, %v2121
      %v2234 = vadd.f32 %v1958, %v2123
      %v2235 = vadd.f32 %v1959, %v2125
      %v2236 = vadd.f32 %v1960, %v2126
      %v2237 = vadd.f32 %v1961, %v2128
      %v2238 = vadd.f32 %v1962, %v2130
      %v2239 = vadd.f32 %v1963, %v2131
      %v2240 = vadd.f32 %v1964, %v2133
      %v2241 = vadd.f32 %v1965, %v2135
      %v2242 = vadd.f32 %v1966, %v2136
      %v2243 = vadd.f32 %v1967, %v2138
      %v2244 = vadd.f32 %v1968, %v2140
      %v2245 = vadd.f32 %v1969, %v2141
      %v2246 = vadd.f32 %v1970, %v2143
      %v2247 = vadd.f32 %v1971, %v2145
      %v2248 = vadd.f32 %v1972, %v2146
      %v2249 = vadd.f32 %v1973, %v2148
      %v2250 = vadd.f32 %v1974, %v2150
      %v2251 = vadd.f32 %v1975, %v2151
      %v2252 = vadd.f32 %v1976, %v2153
      %v2253 = vadd.f32 %v1977, %v2155
      %v2254 = vadd.f32 %v1978, %v2156
      %v2255 = vadd.f32 %v1979, %v2158
      %v2256 = vadd.f32 %v1980, %v2160
      %v2257 = vlaneseq
      %v2258 = vshrl.u32 %v2257, 7
      %v2259 = vsub.s32 0, %v2258
      %v2260 = vrot.slane %v1078, %v2259
      %v2261 = vmul.f32 %v1012, %v2260
      %v2262 = vmul.f32 %v1013, %v2260
      %v2263 = vmul.f32 %v1014, %v2260
      %v2264 = vmul.f32 %v1016, %v2260
      %v2265 = vmul.f32 %v1017, %v2260
      %v2266 = vmul.f32 %v1018, %v2260
      %v2267 = vmul.f32 %v1020, %v2260
      %v2268 = vmul.f32 %v1021, %v2260
      %v2269 = vmul.f32 %v1022, %v2260
      %v2270 = vmul.f32 %v1024, %v2260
      %v2271 = vmul.f32 %v1025, %v2260
      %v2272 = vmul.f32 %v1026, %v2260
      %v2273 = vmul.f32 %v1028, %v2260
      %v2274 = vmul.f32 %v1029, %v2260
      %v2275 = vmul.f32 %v1030, %v2260
      %v2276 = vmul.f32 %v1032, %v2260
      %v2277 = vmul.f32 %v1033, %v2260
      %v2278 = vmul.f32 %v1034, %v2260
      %v2279 = vmul.f32 %v1036, %v2260
      %v2280 = vmul.f32 %v1037, %v2260
      %v2281 = vmul.f32 %v1038, %v2260
      %v2282 = vmul.f32 %v1040, %v2260
      %v2283 = vmul.f32 %v1041, %v2260
      %v2284 = vmul.f32 %v1042, %v2260
      %v2285 = vmul.f32 %v1044, %v2260
      %v2286 = vmul.f32 %v1045, %v2260
      %v2287 = vmul.f32 %v1046, %v2260
      %v2288 = vmul.f32 %v1048, %v2260
      %v2289 = vmul.f32 %v1049, %v2260
      %v2290 = vmul.f32 %v1050, %v2260
      %v2291 = vmul.f32 %v1052, %v2260
      %v2292 = vmul.f32 %v1053, %v2260
      %v2293 = vmul.f32 %v1054, %v2260
      %v2294 = vmul.f32 %v1056, %v2260
      %v2295 = vmul.f32 %v1057, %v2260
      %v2296 = vmul.f32 %v1058, %v2260
      %v2297 = vmul.f32 %v1060, %v2260
      %v2298 = vmul.f32 %v1061, %v2260
      %v2299 = vmul.f32 %v1062, %v2260
      %v2300 = vmul.f32 %v1064, %v2260
      %v2301 = vmul.f32 %v1065, %v2260
      %v2302 = vmul.f32 %v1066, %v2260
      %v2303 = vmul.f32 %v1068, %v2260
      %v2304 = vmul.f32 %v1069, %v2260
      %v2305 = vmul.f32 %v1070, %v2260
      %v2306 = vmul.f32 %v1072, %v2260
      %v2307 = vmul.f32 %v1073, %v2260
      %v2308 = vmul.f32 %v1074, %v2260
      %v2309 = vadd.f32 %v2209, %v2261
      %v2310 = vadd.f32 %v2210, %v2262
      %v2311 = vadd.f32 %v2211, %v2263
      %v2312 = vadd.f32 %v2212, %v2264
      %v2313 = vadd.f32 %v2213, %v2265
      %v2314 = vadd.f32 %v2214, %v2266
      %v2315 = vadd.f32 %v2215, %v2267
      %v2316 = vadd.f32 %v2216, %v2268
      %v2317 = vadd.f32 %v2217, %v2269
      %v2318 = vadd.f32 %v2218, %v2270
      %v2319 = vadd.f32 %v2219, %v2271
      %v2320 = vadd.f32 %v2220, %v2272
      %v2321 = vadd.f32 %v2221, %v2273
      %v2322 = vadd.f32 %v2222, %v2274
      %v2323 = vadd.f32 %v2223, %v2275
      %v2324 = vadd.f32 %v2224, %v2276
      %v2325 = vadd.f32 %v2225, %v2277
      %v2326 = vadd.f32 %v2226, %v2278
      %v2327 = vadd.f32 %v2227, %v2279
      %v2328 = vadd.f32 %v2228, %v2280
      %v2329 = vadd.f32 %v2229, %v2281
      %v2330 = vadd.f32 %v2230, %v2282
      %v2331 = vadd.f32 %v2231, %v2283
      %v2332 = vadd.f32 %v2232, %v2284
      %v2333 = vadd.f32 %v2233, %v2285
      %v2334 = vadd.f32 %v2234, %v2286
      %v2335 = vadd.f32 %v2235, %v2287
      %v2336 = vadd.f32 %v2236, %v2288
      %v2337 = vadd.f32 %v2237, %v2289
      %v2338 = vadd.f32 %v2238, %v2290
      %v2339 = vadd.f32 %v2239, %v2291
      %v2340 = vadd.f32 %v2240, %v2292
      %v2341 = vadd.f32 %v2241, %v2293
      %v2342 = vadd.f32 %v2242, %v2294
      %v2343 = vadd.f32 %v2243, %v2295
      %v2344 = vadd.f32 %v2244, %v2296
      %v2345 = vadd.f32 %v2245, %v2297
      %v2346 = vadd.f32 %v2246, %v2298
      %v2347 = vadd.f32 %v2247, %v2299
      %v2348 = vadd.f32 %v2248, %v2300
      %v2349 = vadd.f32 %v2249, %v2301
      %v2350 = vadd.f32 %v2250, %v2302
      %v2351 = vadd.f32 %v2251, %v2303
      %v2352 = vadd.f32 %v2252, %v2304
      %v2353 = vadd.f32 %v2253, %v2305
      %v2354 = vadd.f32 %v2254, %v2306
      %v2355 = vadd.f32 %v2255, %v2307
      %v2356 = vadd.f32 %v2256, %v2308
      %v2357 = vlaneseq
      %v2358 = vshrl.u32 %v2357, 7
      %v2359 = vsub.s32 1, %v2358
      %v2360 = vrot.slane %v1078, %v2359
      %v2361 = vmul.f32 %v1013, %v2360
      %v2362 = vmul.f32 %v1014, %v2360
      %v2363 = vmul.f32 %v1017, %v2360
      %v2364 = vmul.f32 %v1018, %v2360
      %v2365 = vmul.f32 %v1021, %v2360
      %v2366 = vmul.f32 %v1022, %v2360
      %v2367 = vmul.f32 %v1025, %v2360
      %v2368 = vmul.f32 %v1026, %v2360
      %v2369 = vmul.f32 %v1029, %v2360
      %v2370 = vmul.f32 %v1030, %v2360
      %v2371 = vmul.f32 %v1033, %v2360
      %v2372 = vmul.f32 %v1034, %v2360
      %v2373 = vmul.f32 %v1037, %v2360
      %v2374 = vmul.f32 %v1038, %v2360
      %v2375 = vmul.f32 %v1041, %v2360
      %v2376 = vmul.f32 %v1042, %v2360
      %v2377 = vmul.f32 %v1045, %v2360
      %v2378 = vmul.f32 %v1046, %v2360
      %v2379 = vmul.f32 %v1049, %v2360
      %v2380 = vmul.f32 %v1050, %v2360
      %v2381 = vmul.f32 %v1053, %v2360
      %v2382 = vmul.f32 %v1054, %v2360
      %v2383 = vmul.f32 %v1057, %v2360
      %v2384 = vmul.f32 %v1058, %v2360
      %v2385 = vmul.f32 %v1061, %v2360
      %v2386 = vmul.f32 %v1062, %v2360
      %v2387 = vmul.f32 %v1065, %v2360
      %v2388 = vmul.f32 %v1066, %v2360
      %v2389 = vmul.f32 %v1069, %v2360
      %v2390 = vmul.f32 %v1070, %v2360
      %v2391 = vmul.f32 %v1073, %v2360
      %v2392 = vmul.f32 %v1074, %v2360
      %v2425 = vrot.slane %v2361, 1
      %v2426 = vrot.slane %v2362, 1
      %v2427 = vsel %vm1247, %v2425, %v2426
      %v2428 = vrot.slane %v2363, 1
      %v2429 = vrot.slane %v2364, 1
      %v2430 = vsel %vm1247, %v2428, %v2429
      %v2431 = vrot.slane %v2365, 1
      %v2432 = vrot.slane %v2366, 1
      %v2433 = vsel %vm1247, %v2431, %v2432
      %v2434 = vrot.slane %v2367, 1
      %v2435 = vrot.slane %v2368, 1
      %v2436 = vsel %vm1247, %v2434, %v2435
      %v2437 = vrot.slane %v2369, 1
      %v2438 = vrot.slane %v2370, 1
      %v2439 = vsel %vm1247, %v2437, %v2438
      %v2440 = vrot.slane %v2371, 1
      %v2441 = vrot.slane %v2372, 1
      %v2442 = vsel %vm1247, %v2440, %v2441
      %v2443 = vrot.slane %v2373, 1
      %v2444 = vrot.slane %v2374, 1
      %v2445 = vsel %vm1247, %v2443, %v2444
      %v2446 = vrot.slane %v2375, 1
      %v2447 = vrot.slane %v2376, 1
      %v2448 = vsel %vm1247, %v2446, %v2447
      %v2449 = vrot.slane %v2377, 1
      %v2450 = vrot.slane %v2378, 1
      %v2451 = vsel %vm1247, %v2449, %v2450
      %v2452 = vrot.slane %v2379, 1
      %v2453 = vrot.slane %v2380, 1
      %v2454 = vsel %vm1247, %v2452, %v2453
      %v2455 = vrot.slane %v2381, 1
      %v2456 = vrot.slane %v2382, 1
      %v2457 = vsel %vm1247, %v2455, %v2456
      %v2458 = vrot.slane %v2383, 1
      %v2459 = vrot.slane %v2384, 1
      %v2460 = vsel %vm1247, %v2458, %v2459
      %v2461 = vrot.slane %v2385, 1
      %v2462 = vrot.slane %v2386, 1
      %v2463 = vsel %vm1247, %v2461, %v2462
      %v2464 = vrot.slane %v2387, 1
      %v2465 = vrot.slane %v2388, 1
      %v2466 = vsel %vm1247, %v2464, %v2465
      %v2467 = vrot.slane %v2389, 1
      %v2468 = vrot.slane %v2390, 1
      %v2469 = vsel %vm1247, %v2467, %v2468
      %v2470 = vrot.slane %v2391, 1
      %v2471 = vrot.slane %v2392, 1
      %v2472 = vsel %vm1247, %v2470, %v2471
      %v2521 = vadd.f32 %v2309, %v2425
      %v2522 = vadd.f32 %v2310, %v2427
      %v2523 = vadd.f32 %v2311, %v2426
      %v2524 = vadd.f32 %v2312, %v2428
      %v2525 = vadd.f32 %v2313, %v2430
      %v2526 = vadd.f32 %v2314, %v2429
      %v2527 = vadd.f32 %v2315, %v2431
      %v2528 = vadd.f32 %v2316, %v2433
      %v2529 = vadd.f32 %v2317, %v2432
      %v2530 = vadd.f32 %v2318, %v2434
      %v2531 = vadd.f32 %v2319, %v2436
      %v2532 = vadd.f32 %v2320, %v2435
      %v2533 = vadd.f32 %v2321, %v2437
      %v2534 = vadd.f32 %v2322, %v2439
      %v2535 = vadd.f32 %v2323, %v2438
      %v2536 = vadd.f32 %v2324, %v2440
      %v2537 = vadd.f32 %v2325, %v2442
      %v2538 = vadd.f32 %v2326, %v2441
      %v2539 = vadd.f32 %v2327, %v2443
      %v2540 = vadd.f32 %v2328, %v2445
      %v2541 = vadd.f32 %v2329, %v2444
      %v2542 = vadd.f32 %v2330, %v2446
      %v2543 = vadd.f32 %v2331, %v2448
      %v2544 = vadd.f32 %v2332, %v2447
      %v2545 = vadd.f32 %v2333, %v2449
      %v2546 = vadd.f32 %v2334, %v2451
      %v2547 = vadd.f32 %v2335, %v2450
      %v2548 = vadd.f32 %v2336, %v2452
      %v2549 = vadd.f32 %v2337, %v2454
      %v2550 = vadd.f32 %v2338, %v2453
      %v2551 = vadd.f32 %v2339, %v2455
      %v2552 = vadd.f32 %v2340, %v2457
      %v2553 = vadd.f32 %v2341, %v2456
      %v2554 = vadd.f32 %v2342, %v2458
      %v2555 = vadd.f32 %v2343, %v2460
      %v2556 = vadd.f32 %v2344, %v2459
      %v2557 = vadd.f32 %v2345, %v2461
      %v2558 = vadd.f32 %v2346, %v2463
      %v2559 = vadd.f32 %v2347, %v2462
      %v2560 = vadd.f32 %v2348, %v2464
      %v2561 = vadd.f32 %v2349, %v2466
      %v2562 = vadd.f32 %v2350, %v2465
      %v2563 = vadd.f32 %v2351, %v2467
      %v2564 = vadd.f32 %v2352, %v2469
      %v2565 = vadd.f32 %v2353, %v2468
      %v2566 = vadd.f32 %v2354, %v2470
      %v2567 = vadd.f32 %v2355, %v2472
      %v2568 = vadd.f32 %v2356, %v2471
      %v2569 = vlaneseq
      %v2570 = vshrl.u32 %v2569, 7
      %v2571 = vsub.s32 2, %v2570
      %v2572 = vrot.slane %v1078, %v2571
      %v2573 = vmul.f32 %v1013, %v2572
      %v2574 = vmul.f32 %v1014, %v2572
      %v2575 = vmul.f32 %v1015, %v2572
      %v2576 = vmul.f32 %v1017, %v2572
      %v2577 = vmul.f32 %v1018, %v2572
      %v2578 = vmul.f32 %v1019, %v2572
      %v2579 = vmul.f32 %v1021, %v2572
      %v2580 = vmul.f32 %v1022, %v2572
      %v2581 = vmul.f32 %v1023, %v2572
      %v2582 = vmul.f32 %v1025, %v2572
      %v2583 = vmul.f32 %v1026, %v2572
      %v2584 = vmul.f32 %v1027, %v2572
      %v2585 = vmul.f32 %v1029, %v2572
      %v2586 = vmul.f32 %v1030, %v2572
      %v2587 = vmul.f32 %v1031, %v2572
      %v2588 = vmul.f32 %v1033, %v2572
      %v2589 = vmul.f32 %v1034, %v2572
      %v2590 = vmul.f32 %v1035, %v2572
      %v2591 = vmul.f32 %v1037, %v2572
      %v2592 = vmul.f32 %v1038, %v2572
      %v2593 = vmul.f32 %v1039, %v2572
      %v2594 = vmul.f32 %v1041, %v2572
      %v2595 = vmul.f32 %v1042, %v2572
      %v2596 = vmul.f32 %v1043, %v2572
      %v2597 = vmul.f32 %v1045, %v2572
      %v2598 = vmul.f32 %v1046, %v2572
      %v2599 = vmul.f32 %v1047, %v2572
      %v2600 = vmul.f32 %v1049, %v2572
      %v2601 = vmul.f32 %v1050, %v2572
      %v2602 = vmul.f32 %v1051, %v2572
      %v2603 = vmul.f32 %v1053, %v2572
      %v2604 = vmul.f32 %v1054, %v2572
      %v2605 = vmul.f32 %v1055, %v2572
      %v2606 = vmul.f32 %v1057, %v2572
      %v2607 = vmul.f32 %v1058, %v2572
      %v2608 = vmul.f32 %v1059, %v2572
      %v2609 = vmul.f32 %v1061, %v2572
      %v2610 = vmul.f32 %v1062, %v2572
      %v2611 = vmul.f32 %v1063, %v2572
      %v2612 = vmul.f32 %v1065, %v2572
      %v2613 = vmul.f32 %v1066, %v2572
      %v2614 = vmul.f32 %v1067, %v2572
      %v2615 = vmul.f32 %v1069, %v2572
      %v2616 = vmul.f32 %v1070, %v2572
      %v2617 = vmul.f32 %v1071, %v2572
      %v2618 = vmul.f32 %v1073, %v2572
      %v2619 = vmul.f32 %v1074, %v2572
      %v2620 = vmul.f32 %v1075, %v2572
      %v2669 = vrot.slane %v2573, 2
      %v2670 = vrot.slane %v2574, 2
      %v2671 = vsel %vm1492, %v2669, %v2670
      %v2672 = vrot.slane %v2575, 2
      %v2673 = vsel %vm1492, %v2670, %v2672
      %v2674 = vrot.slane %v2576, 2
      %v2675 = vrot.slane %v2577, 2
      %v2676 = vsel %vm1492, %v2674, %v2675
      %v2677 = vrot.slane %v2578, 2
      %v2678 = vsel %vm1492, %v2675, %v2677
      %v2679 = vrot.slane %v2579, 2
      %v2680 = vrot.slane %v2580, 2
      %v2681 = vsel %vm1492, %v2679, %v2680
      %v2682 = vrot.slane %v2581, 2
      %v2683 = vsel %vm1492, %v2680, %v2682
      %v2684 = vrot.slane %v2582, 2
      %v2685 = vrot.slane %v2583, 2
      %v2686 = vsel %vm1492, %v2684, %v2685
      %v2687 = vrot.slane %v2584, 2
      %v2688 = vsel %vm1492, %v2685, %v2687
      %v2689 = vrot.slane %v2585, 2
      %v2690 = vrot.slane %v2586, 2
      %v2691 = vsel %vm1492, %v2689, %v2690
      %v2692 = vrot.slane %v2587, 2
      %v2693 = vsel %vm1492, %v2690, %v2692
      %v2694 = vrot.slane %v2588, 2
      %v2695 = vrot.slane %v2589, 2
      %v2696 = vsel %vm1492, %v2694, %v2695
      %v2697 = vrot.slane %v2590, 2
      %v2698 = vsel %vm1492, %v2695, %v2697
      %v2699 = vrot.slane %v2591, 2
      %v2700 = vrot.slane %v2592, 2
      %v2701 = vsel %vm1492, %v2699, %v2700
      %v2702 = vrot.slane %v2593, 2
      %v2703 = vsel %vm1492, %v2700, %v2702
      %v2704 = vrot.slane %v2594, 2
      %v2705 = vrot.slane %v2595, 2
      %v2706 = vsel %vm1492, %v2704, %v2705
      %v2707 = vrot.slane %v2596, 2
      %v2708 = vsel %vm1492, %v2705, %v2707
      %v2709 = vrot.slane %v2597, 2
      %v2710 = vrot.slane %v2598, 2
      %v2711 = vsel %vm1492, %v2709, %v2710
      %v2712 = vrot.slane %v2599, 2
      %v2713 = vsel %vm1492, %v2710, %v2712
      %v2714 = vrot.slane %v2600, 2
      %v2715 = vrot.slane %v2601, 2
      %v2716 = vsel %vm1492, %v2714, %v2715
      %v2717 = vrot.slane %v2602, 2
      %v2718 = vsel %vm1492, %v2715, %v2717
      %v2719 = vrot.slane %v2603, 2
      %v2720 = vrot.slane %v2604, 2
      %v2721 = vsel %vm1492, %v2719, %v2720
      %v2722 = vrot.slane %v2605, 2
      %v2723 = vsel %vm1492, %v2720, %v2722
      %v2724 = vrot.slane %v2606, 2
      %v2725 = vrot.slane %v2607, 2
      %v2726 = vsel %vm1492, %v2724, %v2725
      %v2727 = vrot.slane %v2608, 2
      %v2728 = vsel %vm1492, %v2725, %v2727
      %v2729 = vrot.slane %v2609, 2
      %v2730 = vrot.slane %v2610, 2
      %v2731 = vsel %vm1492, %v2729, %v2730
      %v2732 = vrot.slane %v2611, 2
      %v2733 = vsel %vm1492, %v2730, %v2732
      %v2734 = vrot.slane %v2612, 2
      %v2735 = vrot.slane %v2613, 2
      %v2736 = vsel %vm1492, %v2734, %v2735
      %v2737 = vrot.slane %v2614, 2
      %v2738 = vsel %vm1492, %v2735, %v2737
      %v2739 = vrot.slane %v2615, 2
      %v2740 = vrot.slane %v2616, 2
      %v2741 = vsel %vm1492, %v2739, %v2740
      %v2742 = vrot.slane %v2617, 2
      %v2743 = vsel %vm1492, %v2740, %v2742
      %v2744 = vrot.slane %v2618, 2
      %v2745 = vrot.slane %v2619, 2
      %v2746 = vsel %vm1492, %v2744, %v2745
      %v2747 = vrot.slane %v2620, 2
      %v2748 = vsel %vm1492, %v2745, %v2747
      %v2797 = vadd.f32 %v2521, %v2669
      %v2798 = vadd.f32 %v2522, %v2671
      %v2799 = vadd.f32 %v2523, %v2673
      %v2800 = vadd.f32 %v2524, %v2674
      %v2801 = vadd.f32 %v2525, %v2676
      %v2802 = vadd.f32 %v2526, %v2678
      %v2803 = vadd.f32 %v2527, %v2679
      %v2804 = vadd.f32 %v2528, %v2681
      %v2805 = vadd.f32 %v2529, %v2683
      %v2806 = vadd.f32 %v2530, %v2684
      %v2807 = vadd.f32 %v2531, %v2686
      %v2808 = vadd.f32 %v2532, %v2688
      %v2809 = vadd.f32 %v2533, %v2689
      %v2810 = vadd.f32 %v2534, %v2691
      %v2811 = vadd.f32 %v2535, %v2693
      %v2812 = vadd.f32 %v2536, %v2694
      %v2813 = vadd.f32 %v2537, %v2696
      %v2814 = vadd.f32 %v2538, %v2698
      %v2815 = vadd.f32 %v2539, %v2699
      %v2816 = vadd.f32 %v2540, %v2701
      %v2817 = vadd.f32 %v2541, %v2703
      %v2818 = vadd.f32 %v2542, %v2704
      %v2819 = vadd.f32 %v2543, %v2706
      %v2820 = vadd.f32 %v2544, %v2708
      %v2821 = vadd.f32 %v2545, %v2709
      %v2822 = vadd.f32 %v2546, %v2711
      %v2823 = vadd.f32 %v2547, %v2713
      %v2824 = vadd.f32 %v2548, %v2714
      %v2825 = vadd.f32 %v2549, %v2716
      %v2826 = vadd.f32 %v2550, %v2718
      %v2827 = vadd.f32 %v2551, %v2719
      %v2828 = vadd.f32 %v2552, %v2721
      %v2829 = vadd.f32 %v2553, %v2723
      %v2830 = vadd.f32 %v2554, %v2724
      %v2831 = vadd.f32 %v2555, %v2726
      %v2832 = vadd.f32 %v2556, %v2728
      %v2833 = vadd.f32 %v2557, %v2729
      %v2834 = vadd.f32 %v2558, %v2731
      %v2835 = vadd.f32 %v2559, %v2733
      %v2836 = vadd.f32 %v2560, %v2734
      %v2837 = vadd.f32 %v2561, %v2736
      %v2838 = vadd.f32 %v2562, %v2738
      %v2839 = vadd.f32 %v2563, %v2739
      %v2840 = vadd.f32 %v2564, %v2741
      %v2841 = vadd.f32 %v2565, %v2743
      %v2842 = vadd.f32 %v2566, %v2744
      %v2843 = vadd.f32 %v2567, %v2746
      %v2844 = vadd.f32 %v2568, %v2748
      %v2845 = vld [vmem:[%s4] sm:$0x1]
      %v2847 = vlaneseq
      %v2848 = vshrl.u32 %v2847, 7
      %v2849 = vsub.s32 0, %v2848
      %v2850 = vrot.slane %v2845, %v2849
      %v2852 = vadd.f32 %v2797, %v2850
      %v2853 = vadd.f32 %v2798, %v2850
      %v2854 = vadd.f32 %v2799, %v2850
      %v2855 = vadd.f32 %v2800, %v2850
      %v2856 = vadd.f32 %v2801, %v2850
      %v2857 = vadd.f32 %v2802, %v2850
      %v2858 = vadd.f32 %v2803, %v2850
      %v2859 = vadd.f32 %v2804, %v2850
      %v2860 = vadd.f32 %v2805, %v2850
      %v2861 = vadd.f32 %v2806, %v2850
      %v2862 = vadd.f32 %v2807, %v2850
      %v2863 = vadd.f32 %v2808, %v2850
      %v2864 = vadd.f32 %v2809, %v2850
      %v2865 = vadd.f32 %v2810, %v2850
      %v2866 = vadd.f32 %v2811, %v2850
      %v2867 = vadd.f32 %v2812, %v2850
      %v2868 = vadd.f32 %v2813, %v2850
      %v2869 = vadd.f32 %v2814, %v2850
      %v2870 = vadd.f32 %v2815, %v2850
      %v2871 = vadd.f32 %v2816, %v2850
      %v2872 = vadd.f32 %v2817, %v2850
      %v2873 = vadd.f32 %v2818, %v2850
      %v2874 = vadd.f32 %v2819, %v2850
      %v2875 = vadd.f32 %v2820, %v2850
      %v2876 = vadd.f32 %v2821, %v2850
      %v2877 = vadd.f32 %v2822, %v2850
      %v2878 = vadd.f32 %v2823, %v2850
      %v2879 = vadd.f32 %v2824, %v2850
      %v2880 = vadd.f32 %v2825, %v2850
      %v2881 = vadd.f32 %v2826, %v2850
      %v2882 = vadd.f32 %v2827, %v2850
      %v2883 = vadd.f32 %v2828, %v2850
      %v2884 = vadd.f32 %v2829, %v2850
      %v2885 = vadd.f32 %v2830, %v2850
      %v2886 = vadd.f32 %v2831, %v2850
      %v2887 = vadd.f32 %v2832, %v2850
      %v2888 = vadd.f32 %v2833, %v2850
      %v2889 = vadd.f32 %v2834, %v2850
      %v2890 = vadd.f32 %v2835, %v2850
      %v2891 = vadd.f32 %v2836, %v2850
      %v2892 = vadd.f32 %v2837, %v2850
      %v2893 = vadd.f32 %v2838, %v2850
      %v2894 = vadd.f32 %v2839, %v2850
      %v2895 = vadd.f32 %v2840, %v2850
      %v2896 = vadd.f32 %v2841, %v2850
      %v2897 = vadd.f32 %v2842, %v2850
      %v2898 = vadd.f32 %v2843, %v2850
      %v2899 = vadd.f32 %v2844, %v2850
      %v2900 = vmax.f32 %v2852, 0.0
      %v2901 = vmax.f32 %v2853, 0.0
      %v2902 = vmax.f32 %v2854, 0.0
      %v2903 = vmax.f32 %v2855, 0.0
      %v2904 = vmax.f32 %v2856, 0.0
      %v2905 = vmax.f32 %v2857, 0.0
      %v2906 = vmax.f32 %v2858, 0.0
      %v2907 = vmax.f32 %v2859, 0.0
      %v2908 = vmax.f32 %v2860, 0.0
      %v2909 = vmax.f32 %v2861, 0.0
      %v2910 = vmax.f32 %v2862, 0.0
      %v2911 = vmax.f32 %v2863, 0.0
      %v2912 = vmax.f32 %v2864, 0.0
      %v2913 = vmax.f32 %v2865, 0.0
      %v2914 = vmax.f32 %v2866, 0.0
      %v2915 = vmax.f32 %v2867, 0.0
      %v2916 = vmax.f32 %v2868, 0.0
      %v2917 = vmax.f32 %v2869, 0.0
      %v2918 = vmax.f32 %v2870, 0.0
      %v2919 = vmax.f32 %v2871, 0.0
      %v2920 = vmax.f32 %v2872, 0.0
      %v2921 = vmax.f32 %v2873, 0.0
      %v2922 = vmax.f32 %v2874, 0.0
      %v2923 = vmax.f32 %v2875, 0.0
      %v2924 = vmax.f32 %v2876, 0.0
      %v2925 = vmax.f32 %v2877, 0.0
      %v2926 = vmax.f32 %v2878, 0.0
      %v2927 = vmax.f32 %v2879, 0.0
      %v2928 = vmax.f32 %v2880, 0.0
      %v2929 = vmax.f32 %v2881, 0.0
      %v2930 = vmax.f32 %v2882, 0.0
      %v2931 = vmax.f32 %v2883, 0.0
      %v2932 = vmax.f32 %v2884, 0.0
      %v2933 = vmax.f32 %v2885, 0.0
      %v2934 = vmax.f32 %v2886, 0.0
      %v2935 = vmax.f32 %v2887, 0.0
      %v2936 = vmax.f32 %v2888, 0.0
      %v2937 = vmax.f32 %v2889, 0.0
      %v2938 = vmax.f32 %v2890, 0.0
      %v2939 = vmax.f32 %v2891, 0.0
      %v2940 = vmax.f32 %v2892, 0.0
      %v2941 = vmax.f32 %v2893, 0.0
      %v2942 = vmax.f32 %v2894, 0.0
      %v2943 = vmax.f32 %v2895, 0.0
      %v2944 = vmax.f32 %v2896, 0.0
      %v2945 = vmax.f32 %v2897, 0.0
      %v2946 = vmax.f32 %v2898, 0.0
      %v2947 = vmax.f32 %v2899, 0.0
      %v2948 = vmin.f32 %v2900, 6.0
      %v2949 = vmin.f32 %v2901, 6.0
      %v2950 = vmin.f32 %v2902, 6.0
      %v2951 = vmin.f32 %v2903, 6.0
      %v2952 = vmin.f32 %v2904, 6.0
      %v2953 = vmin.f32 %v2905, 6.0
      %v2954 = vmin.f32 %v2906, 6.0
      %v2955 = vmin.f32 %v2907, 6.0
      %v2956 = vmin.f32 %v2908, 6.0
      %v2957 = vmin.f32 %v2909, 6.0
      %v2958 = vmin.f32 %v2910, 6.0
      %v2959 = vmin.f32 %v2911, 6.0
      %v2960 = vmin.f32 %v2912, 6.0
      %v2961 = vmin.f32 %v2913, 6.0
      %v2962 = vmin.f32 %v2914, 6.0
      %v2963 = vmin.f32 %v2915, 6.0
      %v2964 = vmin.f32 %v2916, 6.0
      %v2965 = vmin.f32 %v2917, 6.0
      %v2966 = vmin.f32 %v2918, 6.0
      %v2967 = vmin.f32 %v2919, 6.0
      %v2968 = vmin.f32 %v2920, 6.0
      %v2969 = vmin.f32 %v2921, 6.0
      %v2970 = vmin.f32 %v2922, 6.0
      %v2971 = vmin.f32 %v2923, 6.0
      %v2972 = vmin.f32 %v2924, 6.0
      %v2973 = vmin.f32 %v2925, 6.0
      %v2974 = vmin.f32 %v2926, 6.0
      %v2975 = vmin.f32 %v2927, 6.0
      %v2976 = vmin.f32 %v2928, 6.0
      %v2977 = vmin.f32 %v2929, 6.0
      %v2978 = vmin.f32 %v2930, 6.0
      %v2979 = vmin.f32 %v2931, 6.0
      %v2980 = vmin.f32 %v2932, 6.0
      %v2981 = vmin.f32 %v2933, 6.0
      %v2982 = vmin.f32 %v2934, 6.0
      %v2983 = vmin.f32 %v2935, 6.0
      %v2984 = vmin.f32 %v2936, 6.0
      %v2985 = vmin.f32 %v2937, 6.0
      %v2986 = vmin.f32 %v2938, 6.0
      %v2987 = vmin.f32 %v2939, 6.0
      %v2988 = vmin.f32 %v2940, 6.0
      %v2989 = vmin.f32 %v2941, 6.0
      %v2990 = vmin.f32 %v2942, 6.0
      %v2991 = vmin.f32 %v2943, 6.0
      %v2992 = vmin.f32 %v2944, 6.0
      %v2993 = vmin.f32 %v2945, 6.0
      %v2994 = vmin.f32 %v2946, 6.0
      %v2995 = vmin.f32 %v2947, 6.0
      %vm3044 = vcmask 1040384
      %v3045 = vrot.slane %v2948, 7
      %v3046 = vrot.slane %v2949, 7
      %v3047 = vsel %vm3044, %v3045, %v3046
      %v3048 = vrot.slane %v2950, 7
      %v3049 = vsel %vm3044, %v3046, %v3048
      %v3050 = vrot.slane %v2951, 7
      %v3051 = vrot.slane %v2952, 7
      %v3052 = vsel %vm3044, %v3050, %v3051
      %v3053 = vrot.slane %v2953, 7
      %v3054 = vsel %vm3044, %v3051, %v3053
      %v3055 = vrot.slane %v2954, 7
      %v3056 = vrot.slane %v2955, 7
      %v3057 = vsel %vm3044, %v3055, %v3056
      %v3058 = vrot.slane %v2956, 7
      %v3059 = vsel %vm3044, %v3056, %v3058
      %v3060 = vrot.slane %v2957, 7
      %v3061 = vrot.slane %v2958, 7
      %v3062 = vsel %vm3044, %v3060, %v3061
      %v3063 = vrot.slane %v2959, 7
      %v3064 = vsel %vm3044, %v3061, %v3063
      %v3065 = vrot.slane %v2960, 7
      %v3066 = vrot.slane %v2961, 7
      %v3067 = vsel %vm3044, %v3065, %v3066
      %v3068 = vrot.slane %v2962, 7
      %v3069 = vsel %vm3044, %v3066, %v3068
      %v3070 = vrot.slane %v2963, 7
      %v3071 = vrot.slane %v2964, 7
      %v3072 = vsel %vm3044, %v3070, %v3071
      %v3073 = vrot.slane %v2965, 7
      %v3074 = vsel %vm3044, %v3071, %v3073
      %v3075 = vrot.slane %v2966, 7
      %v3076 = vrot.slane %v2967, 7
      %v3077 = vsel %vm3044, %v3075, %v3076
      %v3078 = vrot.slane %v2968, 7
      %v3079 = vsel %vm3044, %v3076, %v3078
      %v3080 = vrot.slane %v2969, 7
      %v3081 = vrot.slane %v2970, 7
      %v3082 = vsel %vm3044, %v3080, %v3081
      %v3083 = vrot.slane %v2971, 7
      %v3084 = vsel %vm3044, %v3081, %v3083
      %v3085 = vrot.slane %v2972, 7
      %v3086 = vrot.slane %v2973, 7
      %v3087 = vsel %vm3044, %v3085, %v3086
      %v3088 = vrot.slane %v2974, 7
      %v3089 = vsel %vm3044, %v3086, %v3088
      %v3090 = vrot.slane %v2975, 7
      %v3091 = vrot.slane %v2976, 7
      %v3092 = vsel %vm3044, %v3090, %v3091
      %v3093 = vrot.slane %v2977, 7
      %v3094 = vsel %vm3044, %v3091, %v3093
      %v3095 = vrot.slane %v2978, 7
      %v3096 = vrot.slane %v2979, 7
      %v3097 = vsel %vm3044, %v3095, %v3096
      %v3098 = vrot.slane %v2980, 7
      %v3099 = vsel %vm3044, %v3096, %v3098
      %v3100 = vrot.slane %v2981, 7
      %v3101 = vrot.slane %v2982, 7
      %v3102 = vsel %vm3044, %v3100, %v3101
      %v3103 = vrot.slane %v2983, 7
      %v3104 = vsel %vm3044, %v3101, %v3103
      %v3105 = vrot.slane %v2984, 7
      %v3106 = vrot.slane %v2985, 7
      %v3107 = vsel %vm3044, %v3105, %v3106
      %v3108 = vrot.slane %v2986, 7
      %v3109 = vsel %vm3044, %v3106, %v3108
      %v3110 = vrot.slane %v2987, 7
      %v3111 = vrot.slane %v2988, 7
      %v3112 = vsel %vm3044, %v3110, %v3111
      %v3113 = vrot.slane %v2989, 7
      %v3114 = vsel %vm3044, %v3111, %v3113
      %v3115 = vrot.slane %v2990, 7
      %v3116 = vrot.slane %v2991, 7
      %v3117 = vsel %vm3044, %v3115, %v3116
      %v3118 = vrot.slane %v2992, 7
      %v3119 = vsel %vm3044, %v3116, %v3118
      %v3120 = vrot.slane %v2993, 7
      %v3121 = vrot.slane %v2994, 7
      %v3122 = vsel %vm3044, %v3120, %v3121
      %v3123 = vrot.slane %v2995, 7
      %v3124 = vsel %vm3044, %v3121, %v3123
      %v3157 = vld [vmem:[%s7] sm:$0xff]
      %v3158 = vld [vmem:[%s7 + $0x8] sm:$0xff]
      %v3159 = vld [vmem:[%s7 + $0x10] sm:$0xff]
      %v3160 = vld [vmem:[%s7 + $0x18] sm:$0xff]
      %v3161 = vld [vmem:[%s7 + $0x20] sm:$0xff]
      %v3162 = vld [vmem:[%s7 + $0x28] sm:$0xff]
      %v3163 = vld [vmem:[%s7 + $0x30] sm:$0xff]
      %v3164 = vld [vmem:[%s7 + $0x38] sm:$0xff]
      %v3165 = vld [vmem:[%s7 + $0x40] sm:$0xff]
      %v3166 = vld [vmem:[%s7 + $0x48] sm:$0xff]
      %v3167 = vld [vmem:[%s7 + $0x50] sm:$0xff]
      %v3168 = vld [vmem:[%s7 + $0x58] sm:$0xff]
      %v3169 = vld [vmem:[%s7 + $0x60] sm:$0xff]
      %v3170 = vld [vmem:[%s7 + $0x68] sm:$0xff]
      %v3171 = vld [vmem:[%s7 + $0x70] sm:$0xff]
      %v3172 = vld [vmem:[%s7 + $0x78] sm:$0xff]
      %3173 = vmatprep.subr.mxu0 0.0
      %3174 = vmatpush1.msra.mxu0 %v3047
      %3175 = vmatprep.subr.mxu0 0.0
      %3176 = vmatpush1.msra.mxu0 %v3049
      %3177 = vmatprep.subr.mxu0 0.0
      %3178 = vmatpush1.msra.mxu0 %v3052
      %3179 = vmatprep.subr.mxu0 0.0
      %3180 = vmatpush1.msra.mxu0 %v3054
      %3181 = vmatprep.subr.mxu0 0.0
      %3182 = vmatpush1.msra.mxu0 %v3057
      %3183 = vmatprep.subr.mxu0 0.0
      %3184 = vmatpush1.msra.mxu0 %v3059
      %3185 = vmatprep.subr.mxu0 0.0
      %3186 = vmatpush1.msra.mxu0 %v3062
      %3187 = vmatprep.subr.mxu0 0.0
      %3188 = vmatpush1.msra.mxu0 %v3064
      %3189 = vmatprep.subr.mxu0 0.0
      %3190 = vmatpush1.msra.mxu0 %v3067
      %3191 = vmatprep.subr.mxu0 0.0
      %3192 = vmatpush1.msra.mxu0 %v3069
      %3193 = vmatprep.subr.mxu0 0.0
      %3194 = vmatpush1.msra.mxu0 %v3072
      %3195 = vmatprep.subr.mxu0 0.0
      %3196 = vmatpush1.msra.mxu0 %v3074
      %3197 = vmatprep.subr.mxu0 0.0
      %3198 = vmatpush1.msra.mxu0 %v3077
      %3199 = vmatprep.subr.mxu0 0.0
      %3200 = vmatpush1.msra.mxu0 %v3079
      %3201 = vmatprep.subr.mxu0 0.0
      %3202 = vmatpush1.msra.mxu0 %v3082
      %3203 = vmatprep.subr.mxu0 0.0
      %3204 = vmatpush1.msra.mxu0 %v3084
      %3205 = vmatprep.subr.mxu0 0.0
      %3206 = vmatpush1.msra.mxu0 %v3087
      %3207 = vmatprep.subr.mxu0 0.0
      %3208 = vmatpush1.msra.mxu0 %v3089
      %3209 = vmatprep.subr.mxu0 0.0
      %3210 = vmatpush1.msra.mxu0 %v3092
      %3211 = vmatprep.subr.mxu0 0.0
      %3212 = vmatpush1.msra.mxu0 %v3094
      %3213 = vmatprep.subr.mxu0 0.0
      %3214 = vmatpush1.msra.mxu0 %v3097
      %3215 = vmatprep.subr.mxu0 0.0
      %3216 = vmatpush1.msra.mxu0 %v3099
      %3217 = vmatprep.subr.mxu0 0.0
      %3218 = vmatpush1.msra.mxu0 %v3102
      %3219 = vmatprep.subr.mxu0 0.0
      %3220 = vmatpush1.msra.mxu0 %v3104
      %3221 = vmatprep.subr.mxu0 0.0
      %3222 = vmatpush1.msra.mxu0 %v3107
      %3223 = vmatprep.subr.mxu0 0.0
      %3224 = vmatpush1.msra.mxu0 %v3109
      %3225 = vmatprep.subr.mxu0 0.0
      %3226 = vmatpush1.msra.mxu0 %v3112
      %3227 = vmatprep.subr.mxu0 0.0
      %3228 = vmatpush1.msra.mxu0 %v3114
      %3229 = vmatprep.subr.mxu0 0.0
      %3230 = vmatpush1.msra.mxu0 %v3117
      %3231 = vmatprep.subr.mxu0 0.0
      %3232 = vmatpush1.msra.mxu0 %v3119
      %3233 = vmatprep.subr.mxu0 0.0
      %3234 = vmatpush1.msra.mxu0 %v3122
      %3235 = vmatprep.subr.mxu0 0.0
      %3236 = vmatpush1.msra.mxu0 %v3124
      %3237 = vmatprep.mubr.f32.mxu0 %v3158
      %3238 = vmatmul.mubr.f32.gmra.mrb[0].mxu0 %v3157
      %v3239 = vpop.f32.mrb[0].mxu0
      %v3240 = vadd.f32 0.0, %v3239
      %v3241 = vpop.f32.mrb[0].mxu0
      %3242 = vmatprep.mubr.f32.mxu0 %v3160
      %3243 = vmatmul.mubr.f32.gmra.mrb[0].mxu0 %v3159
      %v3244 = vpop.f32.mrb[0].mxu0
      %v3245 = vadd.f32 0.0, %v3244
      %v3246 = vpop.f32.mrb[0].mxu0
      %3247 = vmatprep.mubr.f32.mxu0 %v3162
      %3248 = vmatmul.mubr.f32.gmra.mrb[0].mxu0 %v3161
      %v3249 = vpop.f32.mrb[0].mxu0
      %v3250 = vadd.f32 0.0, %v3249
      %v3251 = vpop.f32.mrb[0].mxu0
      %3252 = vmatprep.mubr.f32.mxu0 %v3164
      %3253 = vmatmul.mubr.f32.gmra.mrb[0].mxu0 %v3163
      %v3254 = vpop.f32.mrb[0].mxu0
      %v3255 = vadd.f32 0.0, %v3254
      %v3256 = vpop.f32.mrb[0].mxu0
      %3257 = vmatprep.mubr.f32.mxu0 %v3166
      %3258 = vmatmul.mubr.f32.gmra.mrb[0].mxu0 %v3165
      %v3259 = vpop.f32.mrb[0].mxu0
      %v3260 = vadd.f32 0.0, %v3259
      %v3261 = vpop.f32.mrb[0].mxu0
      %3262 = vmatprep.mubr.f32.mxu0 %v3168
      %3263 = vmatmul.mubr.f32.gmra.mrb[0].mxu0 %v3167
      %v3264 = vpop.f32.mrb[0].mxu0
      %v3265 = vadd.f32 0.0, %v3264
      %v3266 = vpop.f32.mrb[0].mxu0
      %3267 = vmatprep.mubr.f32.mxu0 %v3170
      %3268 = vmatmul.mubr.f32.gmra.mrb[0].mxu0 %v3169
      %v3269 = vpop.f32.mrb[0].mxu0
      %v3270 = vadd.f32 0.0, %v3269
      %v3271 = vpop.f32.mrb[0].mxu0
      %3272 = vmatprep.mubr.f32.mxu0 %v3172
      %3273 = vmatmul.mubr.f32.gmra.mrb[0].mxu0 %v3171
      %v3274 = vpop.f32.mrb[0].mxu0
      %v3275 = vadd.f32 0.0, %v3274
      %v3276 = vpop.f32.mrb[0].mxu0
      %3277 = vdwg.mxu0
      %v3278 = vld [vmem:[%s5] sm:$0xff]
      %v3279 = vld [vmem:[%s5 + $0x8] sm:$0xff]
      %v3280 = vld [vmem:[%s5 + $0x10] sm:$0xff]
      %v3281 = vld [vmem:[%s6] sm:$0x1]
      %v3283 = vlaneseq
      %v3284 = vshrl.u32 %v3283, 7
      %v3285 = vsub.s32 0, %v3284
      %v3286 = vrot.slane %v3281, %v3285
      %v3289 = vsel %vm898, %v3240, 0
      %v3292 = vsel %vm898, %v3245, 0
      %v3295 = vsel %vm898, %v3250, 0
      %v3298 = vsel %vm898, %v3255, 0
      %v3301 = vsel %vm898, %v3260, 0
      %v3304 = vsel %vm898, %v3265, 0
      %v3307 = vsel %vm898, %v3270, 0
      %v3310 = vsel %vm898, %v3275, 0
      %3312 = vmatprep.subr.mxu0 0.0
      %3313 = vmatpush1.msra.mxu0 %v3278
      %3314 = vmatprep.subr.mxu0 0.0
      %3315 = vmatpush1.msra.mxu0 %v3279
      %3316 = vmatprep.subr.mxu0 0.0
      %3317 = vmatpush1.msra.mxu0 %v3280
      %3318 = vmatprep.subr.mxu0 0.0
      %3319 = vmatpush1.msra.mxu0 0.0
      %3320 = vmatprep.subr.mxu0 0.0
      %3321 = vmatpush1.msra.mxu0 0.0
      %3322 = vmatprep.subr.mxu0 0.0
      %3323 = vmatpush1.msra.mxu0 0.0
      %3324 = vmatprep.subr.mxu0 0.0
      %3325 = vmatpush1.msra.mxu0 0.0
      %3326 = vmatprep.subr.mxu0 0.0
      %3327 = vmatpush1.msra.mxu0 0.0
      %3328 = vmatprep.subr.mxu0 0.0
      %3329 = vmatpush1.msra.mxu0 0.0
      %3330 = vmatprep.subr.mxu0 0.0
      %3331 = vmatpush1.msra.mxu0 0.0
      %3332 = vmatprep.subr.mxu0 0.0
      %3333 = vmatpush1.msra.mxu0 0.0
      %3334 = vmatprep.subr.mxu0 0.0
      %3335 = vmatpush1.msra.mxu0 0.0
      %3336 = vmatprep.subr.mxu0 0.0
      %3337 = vmatpush1.msra.mxu0 0.0
      %3338 = vmatprep.subr.mxu0 0.0
      %3339 = vmatpush1.msra.mxu0 0.0
      %3340 = vmatprep.subr.mxu0 0.0
      %3341 = vmatpush1.msra.mxu0 0.0
      %3342 = vmatprep.subr.mxu0 0.0
      %3343 = vmatpush1.msra.mxu0 0.0
      %3344 = vmatprep.subr.mxu0 0.0
      %3345 = vmatpush1.msra.mxu0 0.0
      %3346 = vmatprep.subr.mxu0 0.0
      %3347 = vmatpush1.msra.mxu0 0.0
      %3348 = vmatprep.subr.mxu0 0.0
      %3349 = vmatpush1.msra.mxu0 0.0
      %3350 = vmatprep.subr.mxu0 0.0
      %3351 = vmatpush1.msra.mxu0 0.0
      %3352 = vmatprep.subr.mxu0 0.0
      %3353 = vmatpush1.msra.mxu0 0.0
      %3354 = vmatprep.subr.mxu0 0.0
      %3355 = vmatpush1.msra.mxu0 0.0
      %3356 = vmatprep.subr.mxu0 0.0
      %3357 = vmatpush1.msra.mxu0 0.0
      %3358 = vmatprep.subr.mxu0 0.0
      %3359 = vmatpush1.msra.mxu0 0.0
      %3360 = vmatprep.subr.mxu0 0.0
      %3361 = vmatpush1.msra.mxu0 0.0
      %3362 = vmatprep.subr.mxu0 0.0
      %3363 = vmatpush1.msra.mxu0 0.0
      %3364 = vmatprep.subr.mxu0 0.0
      %3365 = vmatpush1.msra.mxu0 0.0
      %3366 = vmatprep.subr.mxu0 0.0
      %3367 = vmatpush1.msra.mxu0 0.0
      %3368 = vmatprep.subr.mxu0 0.0
      %3369 = vmatpush1.msra.mxu0 0.0
      %3370 = vmatprep.subr.mxu0 0.0
      %3371 = vmatpush1.msra.mxu0 0.0
      %3372 = vmatprep.subr.mxu0 0.0
      %3373 = vmatpush1.msra.mxu0 0.0
      %3374 = vmatprep.subr.mxu0 0.0
      %3375 = vmatpush1.msra.mxu0 0.0
      %3376 = vmatprep.mubr.f32.mxu0 0.0
      %3377 = vmatmul.mubr.f32.gmra.mrb[0].mxu0 %v3289
      %v3378 = vpop.f32.mrb[0].mxu0
      %v3379 = vadd.f32 %v3286, %v3378
      %v3380 = vpop.f32.mrb[0].mxu0
      %3381 = vmatprep.mubr.f32.mxu0 0.0
      %3382 = vmatmul.mubr.f32.gmra.mrb[0].mxu0 %v3292
      %v3383 = vpop.f32.mrb[0].mxu0
      %v3384 = vadd.f32 %v3286, %v3383
      %v3385 = vpop.f32.mrb[0].mxu0
      %3386 = vmatprep.mubr.f32.mxu0 0.0
      %3387 = vmatmul.mubr.f32.gmra.mrb[0].mxu0 %v3295
      %v3388 = vpop.f32.mrb[0].mxu0
      %v3389 = vadd.f32 %v3286, %v3388
      %v3390 = vpop.f32.mrb[0].mxu0
      %3391 = vmatprep.mubr.f32.mxu0 0.0
      %3392 = vmatmul.mubr.f32.gmra.mrb[0].mxu0 %v3298
      %v3393 = vpop.f32.mrb[0].mxu0
      %v3394 = vadd.f32 %v3286, %v3393
      %v3395 = vpop.f32.mrb[0].mxu0
      %3396 = vmatprep.mubr.f32.mxu0 0.0
      %3397 = vmatmul.mubr.f32.gmra.mrb[0].mxu0 %v3301
      %v3398 = vpop.f32.mrb[0].mxu0
      %v3399 = vadd.f32 %v3286, %v3398
      %v3400 = vpop.f32.mrb[0].mxu0
      %3401 = vmatprep.mubr.f32.mxu0 0.0
      %3402 = vmatmul.mubr.f32.gmra.mrb[0].mxu0 %v3304
      %v3403 = vpop.f32.mrb[0].mxu0
      %v3404 = vadd.f32 %v3286, %v3403
      %v3405 = vpop.f32.mrb[0].mxu0
      %3406 = vmatprep.mubr.f32.mxu0 0.0
      %3407 = vmatmul.mubr.f32.gmra.mrb[0].mxu0 %v3307
      %v3408 = vpop.f32.mrb[0].mxu0
      %v3409 = vadd.f32 %v3286, %v3408
      %v3410 = vpop.f32.mrb[0].mxu0
      %3411 = vmatprep.mubr.f32.mxu0 0.0
      %3412 = vmatmul.mubr.f32.gmra.mrb[0].mxu0 %v3310
      %v3413 = vpop.f32.mrb[0].mxu0
      %v3414 = vadd.f32 %v3286, %v3413
      %v3415 = vpop.f32.mrb[0].mxu0
      %3416 = vdwg.mxu0
      %v3417 = vld [vmem:[%s8] sm:$0xff]
      %v3418 = vld [vmem:[%s9] sm:$0x1]
      %v3420 = vlaneseq
      %v3421 = vshrl.u32 %v3420, 7
      %v3422 = vsub.s32 0, %v3421
      %v3423 = vrot.slane %v3418, %v3422
      %vm3425 = vcmask 64512
      %v3427 = vsel %vm3425, %v3379, 0
      %v3430 = vsel %vm3425, %v3384, 0
      %v3433 = vsel %vm3425, %v3389, 0
      %v3436 = vsel %vm3425, %v3394, 0
      %v3439 = vsel %vm3425, %v3399, 0
      %v3442 = vsel %vm3425, %v3404, 0
      %v3445 = vsel %vm3425, %v3409, 0
      %v3448 = vsel %vm3425, %v3414, 0
      %3450 = vmatprep.subr.mxu0 0.0
      %3451 = vmatpush1.msra.mxu0 %v3417
      %3452 = vmatprep.subr.mxu0 0.0
      %3453 = vmatpush1.msra.mxu0 0.0
      %3454 = vmatprep.subr.mxu0 0.0
      %3455 = vmatpush1.msra.mxu0 0.0
      %3456 = vmatprep.subr.mxu0 0.0
      %3457 = vmatpush1.msra.mxu0 0.0
      %3458 = vmatprep.subr.mxu0 0.0
      %3459 = vmatpush1.msra.mxu0 0.0
      %3460 = vmatprep.subr.mxu0 0.0
      %3461 = vmatpush1.msra.mxu0 0.0
      %3462 = vmatprep.subr.mxu0 0.0
      %3463 = vmatpush1.msra.mxu0 0.0
      %3464 = vmatprep.subr.mxu0 0.0
      %3465 = vmatpush1.msra.mxu0 0.0
      %3466 = vmatprep.subr.mxu0 0.0
      %3467 = vmatpush1.msra.mxu0 0.0
      %3468 = vmatprep.subr.mxu0 0.0
      %3469 = vmatpush1.msra.mxu0 0.0
      %3470 = vmatprep.subr.mxu0 0.0
      %3471 = vmatpush1.msra.mxu0 0.0
      %3472 = vmatprep.subr.mxu0 0.0
      %3473 = vmatpush1.msra.mxu0 0.0
      %3474 = vmatprep.subr.mxu0 0.0
      %3475 = vmatpush1.msra.mxu0 0.0
      %3476 = vmatprep.subr.mxu0 0.0
      %3477 = vmatpush1.msra.mxu0 0.0
      %3478 = vmatprep.subr.mxu0 0.0
      %3479 = vmatpush1.msra.mxu0 0.0
      %3480 = vmatprep.subr.mxu0 0.0
      %3481 = vmatpush1.msra.mxu0 0.0
      %3482 = vmatprep.subr.mxu0 0.0
      %3483 = vmatpush1.msra.mxu0 0.0
      %3484 = vmatprep.subr.mxu0 0.0
      %3485 = vmatpush1.msra.mxu0 0.0
      %3486 = vmatprep.subr.mxu0 0.0
      %3487 = vmatpush1.msra.mxu0 0.0
      %3488 = vmatprep.subr.mxu0 0.0
      %3489 = vmatpush1.msra.mxu0 0.0
      %3490 = vmatprep.subr.mxu0 0.0
      %3491 = vmatpush1.msra.mxu0 0.0
      %3492 = vmatprep.subr.mxu0 0.0
      %3493 = vmatpush1.msra.mxu0 0.0
      %3494 = vmatprep.subr.mxu0 0.0
      %3495 = vmatpush1.msra.mxu0 0.0
      %3496 = vmatprep.subr.mxu0 0.0
      %3497 = vmatpush1.msra.mxu0 0.0
      %3498 = vmatprep.subr.mxu0 0.0
      %3499 = vmatpush1.msra.mxu0 0.0
      %3500 = vmatprep.subr.mxu0 0.0
      %3501 = vmatpush1.msra.mxu0 0.0
      %3502 = vmatprep.subr.mxu0 0.0
      %3503 = vmatpush1.msra.mxu0 0.0
      %3504 = vmatprep.subr.mxu0 0.0
      %3505 = vmatpush1.msra.mxu0 0.0
      %3506 = vmatprep.subr.mxu0 0.0
      %3507 = vmatpush1.msra.mxu0 0.0
      %3508 = vmatprep.subr.mxu0 0.0
      %3509 = vmatpush1.msra.mxu0 0.0
      %3510 = vmatprep.subr.mxu0 0.0
      %3511 = vmatpush1.msra.mxu0 0.0
      %3512 = vmatprep.subr.mxu0 0.0
      %3513 = vmatpush1.msra.mxu0 0.0
      %3514 = vmatprep.mubr.f32.mxu0 0.0
      %3515 = vmatmul.mubr.f32.gmra.mrb[0].mxu0 %v3427
      %v3516 = vpop.f32.mrb[0].mxu0
      %v3517 = vadd.f32 %v3423, %v3516
      %v3518 = vpop.f32.mrb[0].mxu0
      %3519 = vmatprep.mubr.f32.mxu0 0.0
      %3520 = vmatmul.mubr.f32.gmra.mrb[0].mxu0 %v3430
      %v3521 = vpop.f32.mrb[0].mxu0
      %v3522 = vadd.f32 %v3423, %v3521
      %v3523 = vpop.f32.mrb[0].mxu0
      %3524 = vmatprep.mubr.f32.mxu0 0.0
      %3525 = vmatmul.mubr.f32.gmra.mrb[0].mxu0 %v3433
      %v3526 = vpop.f32.mrb[0].mxu0
      %v3527 = vadd.f32 %v3423, %v3526
      %v3528 = vpop.f32.mrb[0].mxu0
      %3529 = vmatprep.mubr.f32.mxu0 0.0
      %3530 = vmatmul.mubr.f32.gmra.mrb[0].mxu0 %v3436
      %v3531 = vpop.f32.mrb[0].mxu0
      %v3532 = vadd.f32 %v3423, %v3531
      %v3533 = vpop.f32.mrb[0].mxu0
      %3534 = vmatprep.mubr.f32.mxu0 0.0
      %3535 = vmatmul.mubr.f32.gmra.mrb[0].mxu0 %v3439
      %v3536 = vpop.f32.mrb[0].mxu0
      %v3537 = vadd.f32 %v3423, %v3536
      %v3538 = vpop.f32.mrb[0].mxu0
      %3539 = vmatprep.mubr.f32.mxu0 0.0
      %3540 = vmatmul.mubr.f32.gmra.mrb[0].mxu0 %v3442
      %v3541 = vpop.f32.mrb[0].mxu0
      %v3542 = vadd.f32 %v3423, %v3541
      %v3543 = vpop.f32.mrb[0].mxu0
      %3544 = vmatprep.mubr.f32.mxu0 0.0
      %3545 = vmatmul.mubr.f32.gmra.mrb[0].mxu0 %v3445
      %v3546 = vpop.f32.mrb[0].mxu0
      %v3547 = vadd.f32 %v3423, %v3546
      %v3548 = vpop.f32.mrb[0].mxu0
      %3549 = vmatprep.mubr.f32.mxu0 0.0
      %3550 = vmatmul.mubr.f32.gmra.mrb[0].mxu0 %v3448
      %v3551 = vpop.f32.mrb[0].mxu0
      %v3552 = vadd.f32 %v3423, %v3551
      %v3553 = vpop.f32.mrb[0].mxu0
      %3554 = vdwg.mxu0
      %v3555 = vmax.f32 %v3517, 0.0
      %v3556 = vmax.f32 %v3522, 0.0
      %v3557 = vmax.f32 %v3527, 0.0
      %v3558 = vmax.f32 %v3532, 0.0
      %v3559 = vmax.f32 %v3537, 0.0
      %v3560 = vmax.f32 %v3542, 0.0
      %v3561 = vmax.f32 %v3547, 0.0
      %v3562 = vmax.f32 %v3552, 0.0
      %v3563 = vmin.f32 %v3555, 6.0
      %v3564 = vmin.f32 %v3556, 6.0
      %v3565 = vmin.f32 %v3557, 6.0
      %v3566 = vmin.f32 %v3558, 6.0
      %v3567 = vmin.f32 %v3559, 6.0
      %v3568 = vmin.f32 %v3560, 6.0
      %v3569 = vmin.f32 %v3561, 6.0
      %v3570 = vmin.f32 %v3562, 6.0
      %vm3571 = vcmask 392192
      %3572 = vst.msk [vmem:[#allocation3] sm:$0xff] %vm3571, 0.0
      %3573 = vst.msk [vmem:[#allocation3 + $0x8] sm:$0xff] %vm3571, 0.0
      %3574 = vst.msk [vmem:[#allocation3 + $0x10] sm:$0xff] %vm3571, 0.0
      %3575 = vst.msk [vmem:[#allocation3 + $0x18] sm:$0xff] %vm3571, 0.0
      %3576 = vst.msk [vmem:[#allocation3 + $0x20] sm:$0xff] %vm3571, 0.0
      %3577 = vst.msk [vmem:[#allocation3 + $0x28] sm:$0xff] %vm3571, 0.0
      %3578 = vst.msk [vmem:[#allocation3 + $0x30] sm:$0xff] %vm3571, 0.0
      %3579 = vst.msk [vmem:[#allocation3 + $0x38] sm:$0xff] %vm3571, 0.0
      %3580 = vst.msk [vmem:[#allocation3 + $0x40] sm:$0xff] %vm3571, 0.0
      %3581 = vst.msk [vmem:[#allocation3 + $0x48] sm:$0xff] %vm3571, 0.0
      %3582 = vst.msk [vmem:[#allocation3 + $0x50] sm:$0xff] %vm3571, 0.0
      %3583 = vst.msk [vmem:[#allocation3 + $0x58] sm:$0xff] %vm3571, 0.0
      %3584 = vst.msk [vmem:[#allocation3 + $0x60] sm:$0xff] %vm3571, 0.0
      %3585 = vst.msk [vmem:[#allocation3 + $0x68] sm:$0xff] %vm3571, 0.0
      %3586 = vst.msk [vmem:[#allocation3 + $0x70] sm:$0xff] %vm3571, 0.0
      %3587 = vst.msk [vmem:[#allocation3 + $0x78] sm:$0xff] %vm3571, 0.0
      %3588 = vst.msk [vmem:[#allocation3 + $0x80] sm:$0xff] %vm3571, 0.0
      %3589 = vst.msk [vmem:[#allocation3 + $0x88] sm:$0xff] %vm3571, 0.0
      %3590 = vst.msk [vmem:[#allocation3 + $0x90] sm:$0xff] %vm3571, 0.0
      %3591 = vst.msk [vmem:[#allocation3 + $0x98] sm:$0xff] %vm3571, 0.0
      %3592 = vst.msk [vmem:[#allocation3 + $0xa0] sm:$0xff] %vm3571, 0.0
      %3593 = vst.msk [vmem:[#allocation3 + $0xa8] sm:$0xff] %vm3571, 0.0
      %3594 = vst.msk [vmem:[#allocation3 + $0xb0] sm:$0xff] %vm3571, 0.0
      %3595 = vst.msk [vmem:[#allocation3 + $0xb8] sm:$0xff] %vm3571, 0.0
      %3596 = vst.msk [vmem:[#allocation3 + $0xc0] sm:$0xff] %vm3571, 0.0
      %3597 = vst.msk [vmem:[#allocation3 + $0xc8] sm:$0xff] %vm3571, 0.0
      %3598 = vst.msk [vmem:[#allocation3 + $0xd0] sm:$0xff] %vm3571, 0.0
      %3599 = vst.msk [vmem:[#allocation3 + $0xd8] sm:$0xff] %vm3571, 0.0
      %3600 = vst.msk [vmem:[#allocation3 + $0xe0] sm:$0xff] %vm3571, 0.0
      %3601 = vst.msk [vmem:[#allocation3 + $0xe8] sm:$0xff] %vm3571, 0.0
      %s3602 = scalar_lea.vmem [#allocation3], 24
      %3603 = vst.msk [vmem:[%s3602 + $0x8] sm:$0xff] %vm3571, %v3563
      %3604 = vst.msk [vmem:[%s3602 + $0x20] sm:$0xff] %vm3571, %v3564
      %3605 = vst.msk [vmem:[%s3602 + $0x38] sm:$0xff] %vm3571, %v3565
      %3606 = vst.msk [vmem:[%s3602 + $0x50] sm:$0xff] %vm3571, %v3566
      %3607 = vst.msk [vmem:[%s3602 + $0x68] sm:$0xff] %vm3571, %v3567
      %3608 = vst.msk [vmem:[%s3602 + $0x80] sm:$0xff] %vm3571, %v3568
      %3609 = vst.msk [vmem:[%s3602 + $0x98] sm:$0xff] %vm3571, %v3569
      %3610 = vst.msk [vmem:[%s3602 + $0xb0] sm:$0xff] %vm3571, %v3570
      %v3611 = vld [vmem:[#allocation3] sm:$0xff]
      %v3612 = vld [vmem:[#allocation3 + $0x8] sm:$0xff]
      %v3613 = vld [vmem:[#allocation3 + $0x10] sm:$0xff]
      %v3614 = vld [vmem:[#allocation3 + $0x18] sm:$0xff]
      %v3615 = vld [vmem:[#allocation3 + $0x20] sm:$0xff]
      %v3616 = vld [vmem:[#allocation3 + $0x28] sm:$0xff]
      %v3617 = vld [vmem:[#allocation3 + $0x30] sm:$0xff]
      %v3618 = vld [vmem:[#allocation3 + $0x38] sm:$0xff]
      %v3619 = vld [vmem:[#allocation3 + $0x40] sm:$0xff]
      %v3620 = vld [vmem:[#allocation3 + $0x48] sm:$0xff]
      %v3621 = vld [vmem:[#allocation3 + $0x50] sm:$0xff]
      %v3622 = vld [vmem:[#allocation3 + $0x58] sm:$0xff]
      %v3623 = vld [vmem:[#allocation3 + $0x60] sm:$0xff]
      %v3624 = vld [vmem:[#allocation3 + $0x68] sm:$0xff]
      %v3625 = vld [vmem:[#allocation3 + $0x70] sm:$0xff]
      %v3626 = vld [vmem:[#allocation3 + $0x78] sm:$0xff]
      %v3627 = vld [vmem:[#allocation3 + $0x80] sm:$0xff]
      %v3628 = vld [vmem:[#allocation3 + $0x88] sm:$0xff]
      %v3629 = vld [vmem:[#allocation3 + $0x90] sm:$0xff]
      %v3630 = vld [vmem:[#allocation3 + $0x98] sm:$0xff]
      %v3631 = vld [vmem:[#allocation3 + $0xa0] sm:$0xff]
      %v3632 = vld [vmem:[#allocation3 + $0xa8] sm:$0xff]
      %v3633 = vld [vmem:[#allocation3 + $0xb0] sm:$0xff]
      %v3634 = vld [vmem:[#allocation3 + $0xb8] sm:$0xff]
      %v3635 = vld [vmem:[#allocation3 + $0xc0] sm:$0xff]
      %v3636 = vld [vmem:[#allocation3 + $0xc8] sm:$0xff]
      %v3637 = vld [vmem:[#allocation3 + $0xd0] sm:$0xff]
      %v3638 = vld [vmem:[#allocation3 + $0xd8] sm:$0xff]
      %v3639 = vld [vmem:[#allocation3 + $0xe0] sm:$0xff]
      %v3640 = vld [vmem:[#allocation3 + $0xe8] sm:$0xff]
      %v3641 = vld [vmem:[%s10] sm:$0x7]
      %v3642 = vld [vmem:[%s10 + $0x4] sm:$0x7]
      %v3643 = vld [vmem:[%s10 + $0x8] sm:$0x7]
      %v3644 = vlaneseq
      %v3645 = vshrl.u32 %v3644, 7
      %v3646 = vsub.s32 0, %v3645
      %v3647 = vrot.slane %v3641, %v3646
      %v3648 = vmul.f32 %v3611, %v3647
      %v3649 = vmul.f32 %v3612, %v3647
      %v3650 = vmul.f32 %v3614, %v3647
      %v3651 = vmul.f32 %v3615, %v3647
      %v3652 = vmul.f32 %v3617, %v3647
      %v3653 = vmul.f32 %v3618, %v3647
      %v3654 = vmul.f32 %v3620, %v3647
      %v3655 = vmul.f32 %v3621, %v3647
      %v3656 = vmul.f32 %v3623, %v3647
      %v3657 = vmul.f32 %v3624, %v3647
      %v3658 = vmul.f32 %v3626, %v3647
      %v3659 = vmul.f32 %v3627, %v3647
      %v3660 = vmul.f32 %v3629, %v3647
      %v3661 = vmul.f32 %v3630, %v3647
      %v3662 = vmul.f32 %v3632, %v3647
      %v3663 = vmul.f32 %v3633, %v3647
      %v3664 = vadd.f32 %v3648, 0.0
      %v3665 = vadd.f32 %v3649, 0.0
      %v3666 = vadd.f32 %v3650, 0.0
      %v3667 = vadd.f32 %v3651, 0.0
      %v3668 = vadd.f32 %v3652, 0.0
      %v3669 = vadd.f32 %v3653, 0.0
      %v3670 = vadd.f32 %v3654, 0.0
      %v3671 = vadd.f32 %v3655, 0.0
      %v3672 = vadd.f32 %v3656, 0.0
      %v3673 = vadd.f32 %v3657, 0.0
      %v3674 = vadd.f32 %v3658, 0.0
      %v3675 = vadd.f32 %v3659, 0.0
      %v3676 = vadd.f32 %v3660, 0.0
      %v3677 = vadd.f32 %v3661, 0.0
      %v3678 = vadd.f32 %v3662, 0.0
      %v3679 = vadd.f32 %v3663, 0.0
      %v3680 = vlaneseq
      %v3681 = vshrl.u32 %v3680, 7
      %v3682 = vsub.s32 1, %v3681
      %v3683 = vrot.slane %v3641, %v3682
      %v3684 = vmul.f32 %v3612, %v3683
      %v3685 = vmul.f32 %v3615, %v3683
      %v3686 = vmul.f32 %v3618, %v3683
      %v3687 = vmul.f32 %v3621, %v3683
      %v3688 = vmul.f32 %v3624, %v3683
      %v3689 = vmul.f32 %v3627, %v3683
      %v3690 = vmul.f32 %v3630, %v3683
      %v3691 = vmul.f32 %v3633, %v3683
      %v3700 = vrot.slane %v3684, 1
      %v3701 = vrot.slane %v3685, 1
      %v3702 = vrot.slane %v3686, 1
      %v3703 = vrot.slane %v3687, 1
      %v3704 = vrot.slane %v3688, 1
      %v3705 = vrot.slane %v3689, 1
      %v3706 = vrot.slane %v3690, 1
      %v3707 = vrot.slane %v3691, 1
      %v3716 = vadd.f32 %v3664, %v3700
      %v3717 = vadd.f32 %v3665, %v3700
      %v3718 = vadd.f32 %v3666, %v3701
      %v3719 = vadd.f32 %v3667, %v3701
      %v3720 = vadd.f32 %v3668, %v3702
      %v3721 = vadd.f32 %v3669, %v3702
      %v3722 = vadd.f32 %v3670, %v3703
      %v3723 = vadd.f32 %v3671, %v3703
      %v3724 = vadd.f32 %v3672, %v3704
      %v3725 = vadd.f32 %v3673, %v3704
      %v3726 = vadd.f32 %v3674, %v3705
      %v3727 = vadd.f32 %v3675, %v3705
      %v3728 = vadd.f32 %v3676, %v3706
      %v3729 = vadd.f32 %v3677, %v3706
      %v3730 = vadd.f32 %v3678, %v3707
      %v3731 = vadd.f32 %v3679, %v3707
      %v3732 = vlaneseq
      %v3733 = vshrl.u32 %v3732, 7
      %v3734 = vsub.s32 2, %v3733
      %v3735 = vrot.slane %v3641, %v3734
      %v3736 = vmul.f32 %v3612, %v3735
      %v3737 = vmul.f32 %v3613, %v3735
      %v3738 = vmul.f32 %v3615, %v3735
      %v3739 = vmul.f32 %v3616, %v3735
      %v3740 = vmul.f32 %v3618, %v3735
      %v3741 = vmul.f32 %v3619, %v3735
      %v3742 = vmul.f32 %v3621, %v3735
      %v3743 = vmul.f32 %v3622, %v3735
      %v3744 = vmul.f32 %v3624, %v3735
      %v3745 = vmul.f32 %v3625, %v3735
      %v3746 = vmul.f32 %v3627, %v3735
      %v3747 = vmul.f32 %v3628, %v3735
      %v3748 = vmul.f32 %v3630, %v3735
      %v3749 = vmul.f32 %v3631, %v3735
      %v3750 = vmul.f32 %v3633, %v3735
      %v3751 = vmul.f32 %v3634, %v3735
      %v3768 = vrot.slane %v3736, 2
      %v3769 = vrot.slane %v3737, 2
      %v3770 = vsel %vm1492, %v3768, %v3769
      %v3771 = vrot.slane %v3738, 2
      %v3772 = vrot.slane %v3739, 2
      %v3773 = vsel %vm1492, %v3771, %v3772
      %v3774 = vrot.slane %v3740, 2
      %v3775 = vrot.slane %v3741, 2
      %v3776 = vsel %vm1492, %v3774, %v3775
      %v3777 = vrot.slane %v3742, 2
      %v3778 = vrot.slane %v3743, 2
      %v3779 = vsel %vm1492, %v3777, %v3778
      %v3780 = vrot.slane %v3744, 2
      %v3781 = vrot.slane %v3745, 2
      %v3782 = vsel %vm1492, %v3780, %v3781
      %v3783 = vrot.slane %v3746, 2
      %v3784 = vrot.slane %v3747, 2
      %v3785 = vsel %vm1492, %v3783, %v3784
      %v3786 = vrot.slane %v3748, 2
      %v3787 = vrot.slane %v3749, 2
      %v3788 = vsel %vm1492, %v3786, %v3787
      %v3789 = vrot.slane %v3750, 2
      %v3790 = vrot.slane %v3751, 2
      %v3791 = vsel %vm1492, %v3789, %v3790
      %v3808 = vadd.f32 %v3716, %v3768
      %v3809 = vadd.f32 %v3717, %v3770
      %v3810 = vadd.f32 %v3718, %v3771
      %v3811 = vadd.f32 %v3719, %v3773
      %v3812 = vadd.f32 %v3720, %v3774
      %v3813 = vadd.f32 %v3721, %v3776
      %v3814 = vadd.f32 %v3722, %v3777
      %v3815 = vadd.f32 %v3723, %v3779
      %v3816 = vadd.f32 %v3724, %v3780
      %v3817 = vadd.f32 %v3725, %v3782
      %v3818 = vadd.f32 %v3726, %v3783
      %v3819 = vadd.f32 %v3727, %v3785
      %v3820 = vadd.f32 %v3728, %v3786
      %v3821 = vadd.f32 %v3729, %v3788
      %v3822 = vadd.f32 %v3730, %v3789
      %v3823 = vadd.f32 %v3731, %v3791
      %v3824 = vlaneseq
      %v3825 = vshrl.u32 %v3824, 7
      %v3826 = vsub.s32 0, %v3825
      %v3827 = vrot.slane %v3642, %v3826
      %v3828 = vmul.f32 %v3614, %v3827
      %v3829 = vmul.f32 %v3615, %v3827
      %v3830 = vmul.f32 %v3617, %v3827
      %v3831 = vmul.f32 %v3618, %v3827
      %v3832 = vmul.f32 %v3620, %v3827
      %v3833 = vmul.f32 %v3621, %v3827
      %v3834 = vmul.f32 %v3623, %v3827
      %v3835 = vmul.f32 %v3624, %v3827
      %v3836 = vmul.f32 %v3626, %v3827
      %v3837 = vmul.f32 %v3627, %v3827
      %v3838 = vmul.f32 %v3629, %v3827
      %v3839 = vmul.f32 %v3630, %v3827
      %v3840 = vmul.f32 %v3632, %v3827
      %v3841 = vmul.f32 %v3633, %v3827
      %v3842 = vmul.f32 %v3635, %v3827
      %v3843 = vmul.f32 %v3636, %v3827
      %v3844 = vadd.f32 %v3808, %v3828
      %v3845 = vadd.f32 %v3809, %v3829
      %v3846 = vadd.f32 %v3810, %v3830
      %v3847 = vadd.f32 %v3811, %v3831
      %v3848 = vadd.f32 %v3812, %v3832
      %v3849 = vadd.f32 %v3813, %v3833
      %v3850 = vadd.f32 %v3814, %v3834
      %v3851 = vadd.f32 %v3815, %v3835
      %v3852 = vadd.f32 %v3816, %v3836
      %v3853 = vadd.f32 %v3817, %v3837
      %v3854 = vadd.f32 %v3818, %v3838
      %v3855 = vadd.f32 %v3819, %v3839
      %v3856 = vadd.f32 %v3820, %v3840
      %v3857 = vadd.f32 %v3821, %v3841
      %v3858 = vadd.f32 %v3822, %v3842
      %v3859 = vadd.f32 %v3823, %v3843
      %v3860 = vlaneseq
      %v3861 = vshrl.u32 %v3860, 7
      %v3862 = vsub.s32 1, %v3861
      %v3863 = vrot.slane %v3642, %v3862
      %v3864 = vmul.f32 %v3615, %v3863
      %v3865 = vmul.f32 %v3618, %v3863
      %v3866 = vmul.f32 %v3621, %v3863
      %v3867 = vmul.f32 %v3624, %v3863
      %v3868 = vmul.f32 %v3627, %v3863
      %v3869 = vmul.f32 %v3630, %v3863
      %v3870 = vmul.f32 %v3633, %v3863
      %v3871 = vmul.f32 %v3636, %v3863
      %v3880 = vrot.slane %v3864, 1
      %v3881 = vrot.slane %v3865, 1
      %v3882 = vrot.slane %v3866, 1
      %v3883 = vrot.slane %v3867, 1
      %v3884 = vrot.slane %v3868, 1
      %v3885 = vrot.slane %v3869, 1
      %v3886 = vrot.slane %v3870, 1
      %v3887 = vrot.slane %v3871, 1
      %v3896 = vadd.f32 %v3844, %v3880
      %v3897 = vadd.f32 %v3845, %v3880
      %v3898 = vadd.f32 %v3846, %v3881
      %v3899 = vadd.f32 %v3847, %v3881
      %v3900 = vadd.f32 %v3848, %v3882
      %v3901 = vadd.f32 %v3849, %v3882
      %v3902 = vadd.f32 %v3850, %v3883
      %v3903 = vadd.f32 %v3851, %v3883
      %v3904 = vadd.f32 %v3852, %v3884
      %v3905 = vadd.f32 %v3853, %v3884
      %v3906 = vadd.f32 %v3854, %v3885
      %v3907 = vadd.f32 %v3855, %v3885
      %v3908 = vadd.f32 %v3856, %v3886
      %v3909 = vadd.f32 %v3857, %v3886
      %v3910 = vadd.f32 %v3858, %v3887
      %v3911 = vadd.f32 %v3859, %v3887
      %v3912 = vlaneseq
      %v3913 = vshrl.u32 %v3912, 7
      %v3914 = vsub.s32 2, %v3913
      %v3915 = vrot.slane %v3642, %v3914
      %v3916 = vmul.f32 %v3615, %v3915
      %v3917 = vmul.f32 %v3616, %v3915
      %v3918 = vmul.f32 %v3618, %v3915
      %v3919 = vmul.f32 %v3619, %v3915
      %v3920 = vmul.f32 %v3621, %v3915
      %v3921 = vmul.f32 %v3622, %v3915
      %v3922 = vmul.f32 %v3624, %v3915
      %v3923 = vmul.f32 %v3625, %v3915
      %v3924 = vmul.f32 %v3627, %v3915
      %v3925 = vmul.f32 %v3628, %v3915
      %v3926 = vmul.f32 %v3630, %v3915
      %v3927 = vmul.f32 %v3631, %v3915
      %v3928 = vmul.f32 %v3633, %v3915
      %v3929 = vmul.f32 %v3634, %v3915
      %v3930 = vmul.f32 %v3636, %v3915
      %v3931 = vmul.f32 %v3637, %v3915
      %v3948 = vrot.slane %v3916, 2
      %v3949 = vrot.slane %v3917, 2
      %v3950 = vsel %vm1492, %v3948, %v3949
      %v3951 = vrot.slane %v3918, 2
      %v3952 = vrot.slane %v3919, 2
      %v3953 = vsel %vm1492, %v3951, %v3952
      %v3954 = vrot.slane %v3920, 2
      %v3955 = vrot.slane %v3921, 2
      %v3956 = vsel %vm1492, %v3954, %v3955
      %v3957 = vrot.slane %v3922, 2
      %v3958 = vrot.slane %v3923, 2
      %v3959 = vsel %vm1492, %v3957, %v3958
      %v3960 = vrot.slane %v3924, 2
      %v3961 = vrot.slane %v3925, 2
      %v3962 = vsel %vm1492, %v3960, %v3961
      %v3963 = vrot.slane %v3926, 2
      %v3964 = vrot.slane %v3927, 2
      %v3965 = vsel %vm1492, %v3963, %v3964
      %v3966 = vrot.slane %v3928, 2
      %v3967 = vrot.slane %v3929, 2
      %v3968 = vsel %vm1492, %v3966, %v3967
      %v3969 = vrot.slane %v3930, 2
      %v3970 = vrot.slane %v3931, 2
      %v3971 = vsel %vm1492, %v3969, %v3970
      %v3988 = vadd.f32 %v3896, %v3948
      %v3989 = vadd.f32 %v3897, %v3950
      %v3990 = vadd.f32 %v3898, %v3951
      %v3991 = vadd.f32 %v3899, %v3953
      %v3992 = vadd.f32 %v3900, %v3954
      %v3993 = vadd.f32 %v3901, %v3956
      %v3994 = vadd.f32 %v3902, %v3957
      %v3995 = vadd.f32 %v3903, %v3959
      %v3996 = vadd.f32 %v3904, %v3960
      %v3997 = vadd.f32 %v3905, %v3962
      %v3998 = vadd.f32 %v3906, %v3963
      %v3999 = vadd.f32 %v3907, %v3965
      %v4000 = vadd.f32 %v3908, %v3966
      %v4001 = vadd.f32 %v3909, %v3968
      %v4002 = vadd.f32 %v3910, %v3969
      %v4003 = vadd.f32 %v3911, %v3971
      %v4004 = vlaneseq
      %v4005 = vshrl.u32 %v4004, 7
      %v4006 = vsub.s32 0, %v4005
      %v4007 = vrot.slane %v3643, %v4006
      %v4008 = vmul.f32 %v3617, %v4007
      %v4009 = vmul.f32 %v3618, %v4007
      %v4010 = vmul.f32 %v3620, %v4007
      %v4011 = vmul.f32 %v3621, %v4007
      %v4012 = vmul.f32 %v3623, %v4007
      %v4013 = vmul.f32 %v3624, %v4007
      %v4014 = vmul.f32 %v3626, %v4007
      %v4015 = vmul.f32 %v3627, %v4007
      %v4016 = vmul.f32 %v3629, %v4007
      %v4017 = vmul.f32 %v3630, %v4007
      %v4018 = vmul.f32 %v3632, %v4007
      %v4019 = vmul.f32 %v3633, %v4007
      %v4020 = vmul.f32 %v3635, %v4007
      %v4021 = vmul.f32 %v3636, %v4007
      %v4022 = vmul.f32 %v3638, %v4007
      %v4023 = vmul.f32 %v3639, %v4007
      %v4024 = vadd.f32 %v3988, %v4008
      %v4025 = vadd.f32 %v3989, %v4009
      %v4026 = vadd.f32 %v3990, %v4010
      %v4027 = vadd.f32 %v3991, %v4011
      %v4028 = vadd.f32 %v3992, %v4012
      %v4029 = vadd.f32 %v3993, %v4013
      %v4030 = vadd.f32 %v3994, %v4014
      %v4031 = vadd.f32 %v3995, %v4015
      %v4032 = vadd.f32 %v3996, %v4016
      %v4033 = vadd.f32 %v3997, %v4017
      %v4034 = vadd.f32 %v3998, %v4018
      %v4035 = vadd.f32 %v3999, %v4019
      %v4036 = vadd.f32 %v4000, %v4020
      %v4037 = vadd.f32 %v4001, %v4021
      %v4038 = vadd.f32 %v4002, %v4022
      %v4039 = vadd.f32 %v4003, %v4023
      %v4040 = vlaneseq
      %v4041 = vshrl.u32 %v4040, 7
      %v4042 = vsub.s32 1, %v4041
      %v4043 = vrot.slane %v3643, %v4042
      %v4044 = vmul.f32 %v3618, %v4043
      %v4045 = vmul.f32 %v3621, %v4043
      %v4046 = vmul.f32 %v3624, %v4043
      %v4047 = vmul.f32 %v3627, %v4043
      %v4048 = vmul.f32 %v3630, %v4043
      %v4049 = vmul.f32 %v3633, %v4043
      %v4050 = vmul.f32 %v3636, %v4043
      %v4051 = vmul.f32 %v3639, %v4043
      %v4060 = vrot.slane %v4044, 1
      %v4061 = vrot.slane %v4045, 1
      %v4062 = vrot.slane %v4046, 1
      %v4063 = vrot.slane %v4047, 1
      %v4064 = vrot.slane %v4048, 1
      %v4065 = vrot.slane %v4049, 1
      %v4066 = vrot.slane %v4050, 1
      %v4067 = vrot.slane %v4051, 1
      %v4076 = vadd.f32 %v4024, %v4060
      %v4077 = vadd.f32 %v4025, %v4060
      %v4078 = vadd.f32 %v4026, %v4061
      %v4079 = vadd.f32 %v4027, %v4061
      %v4080 = vadd.f32 %v4028, %v4062
      %v4081 = vadd.f32 %v4029, %v4062
      %v4082 = vadd.f32 %v4030, %v4063
      %v4083 = vadd.f32 %v4031, %v4063
      %v4084 = vadd.f32 %v4032, %v4064
      %v4085 = vadd.f32 %v4033, %v4064
      %v4086 = vadd.f32 %v4034, %v4065
      %v4087 = vadd.f32 %v4035, %v4065
      %v4088 = vadd.f32 %v4036, %v4066
      %v4089 = vadd.f32 %v4037, %v4066
      %v4090 = vadd.f32 %v4038, %v4067
      %v4091 = vadd.f32 %v4039, %v4067
      %v4092 = vlaneseq
      %v4093 = vshrl.u32 %v4092, 7
      %v4094 = vsub.s32 2, %v4093
      %v4095 = vrot.slane %v3643, %v4094
      %v4096 = vmul.f32 %v3618, %v4095
      %v4097 = vmul.f32 %v3619, %v4095
      %v4098 = vmul.f32 %v3621, %v4095
      %v4099 = vmul.f32 %v3622, %v4095
      %v4100 = vmul.f32 %v3624, %v4095
      %v4101 = vmul.f32 %v3625, %v4095
      %v4102 = vmul.f32 %v3627, %v4095
      %v4103 = vmul.f32 %v3628, %v4095
      %v4104 = vmul.f32 %v3630, %v4095
      %v4105 = vmul.f32 %v3631, %v4095
      %v4106 = vmul.f32 %v3633, %v4095
      %v4107 = vmul.f32 %v3634, %v4095
      %v4108 = vmul.f32 %v3636, %v4095
      %v4109 = vmul.f32 %v3637, %v4095
      %v4110 = vmul.f32 %v3639, %v4095
      %v4111 = vmul.f32 %v3640, %v4095
      %v4128 = vrot.slane %v4096, 2
      %v4129 = vrot.slane %v4097, 2
      %v4130 = vsel %vm1492, %v4128, %v4129
      %v4131 = vrot.slane %v4098, 2
      %v4132 = vrot.slane %v4099, 2
      %v4133 = vsel %vm1492, %v4131, %v4132
      %v4134 = vrot.slane %v4100, 2
      %v4135 = vrot.slane %v4101, 2
      %v4136 = vsel %vm1492, %v4134, %v4135
      %v4137 = vrot.slane %v4102, 2
      %v4138 = vrot.slane %v4103, 2
      %v4139 = vsel %vm1492, %v4137, %v4138
      %v4140 = vrot.slane %v4104, 2
      %v4141 = vrot.slane %v4105, 2
      %v4142 = vsel %vm1492, %v4140, %v4141
      %v4143 = vrot.slane %v4106, 2
      %v4144 = vrot.slane %v4107, 2
      %v4145 = vsel %vm1492, %v4143, %v4144
      %v4146 = vrot.slane %v4108, 2
      %v4147 = vrot.slane %v4109, 2
      %v4148 = vsel %vm1492, %v4146, %v4147
      %v4149 = vrot.slane %v4110, 2
      %v4150 = vrot.slane %v4111, 2
      %v4151 = vsel %vm1492, %v4149, %v4150
      %v4168 = vadd.f32 %v4076, %v4128
      %v4169 = vadd.f32 %v4077, %v4130
      %v4170 = vadd.f32 %v4078, %v4131
      %v4171 = vadd.f32 %v4079, %v4133
      %v4172 = vadd.f32 %v4080, %v4134
      %v4173 = vadd.f32 %v4081, %v4136
      %v4174 = vadd.f32 %v4082, %v4137
      %v4175 = vadd.f32 %v4083, %v4139
      %v4176 = vadd.f32 %v4084, %v4140
      %v4177 = vadd.f32 %v4085, %v4142
      %v4178 = vadd.f32 %v4086, %v4143
      %v4179 = vadd.f32 %v4087, %v4145
      %v4180 = vadd.f32 %v4088, %v4146
      %v4181 = vadd.f32 %v4089, %v4148
      %v4182 = vadd.f32 %v4090, %v4149
      %v4183 = vadd.f32 %v4091, %v4151
      %v4184 = vld [vmem:[%s11] sm:$0x1]
      %v4186 = vlaneseq
      %v4187 = vshrl.u32 %v4186, 7
      %v4188 = vsub.s32 0, %v4187
      %v4189 = vrot.slane %v4184, %v4188
      %v4191 = vadd.f32 %v4168, %v4189
      %v4192 = vadd.f32 %v4169, %v4189
      %v4193 = vadd.f32 %v4170, %v4189
      %v4194 = vadd.f32 %v4171, %v4189
      %v4195 = vadd.f32 %v4172, %v4189
      %v4196 = vadd.f32 %v4173, %v4189
      %v4197 = vadd.f32 %v4174, %v4189
      %v4198 = vadd.f32 %v4175, %v4189
      %v4199 = vadd.f32 %v4176, %v4189
      %v4200 = vadd.f32 %v4177, %v4189
      %v4201 = vadd.f32 %v4178, %v4189
      %v4202 = vadd.f32 %v4179, %v4189
      %v4203 = vadd.f32 %v4180, %v4189
      %v4204 = vadd.f32 %v4181, %v4189
      %v4205 = vadd.f32 %v4182, %v4189
      %v4206 = vadd.f32 %v4183, %v4189
      %v4207 = vmax.f32 %v4191, 0.0
      %v4208 = vmax.f32 %v4192, 0.0
      %v4209 = vmax.f32 %v4193, 0.0
      %v4210 = vmax.f32 %v4194, 0.0
      %v4211 = vmax.f32 %v4195, 0.0
      %v4212 = vmax.f32 %v4196, 0.0
      %v4213 = vmax.f32 %v4197, 0.0
      %v4214 = vmax.f32 %v4198, 0.0
      %v4215 = vmax.f32 %v4199, 0.0
      %v4216 = vmax.f32 %v4200, 0.0
      %v4217 = vmax.f32 %v4201, 0.0
      %v4218 = vmax.f32 %v4202, 0.0
      %v4219 = vmax.f32 %v4203, 0.0
      %v4220 = vmax.f32 %v4204, 0.0
      %v4221 = vmax.f32 %v4205, 0.0
      %v4222 = vmax.f32 %v4206, 0.0
      %v4223 = vmin.f32 %v4207, 6.0
      %v4224 = vmin.f32 %v4208, 6.0
      %v4225 = vmin.f32 %v4209, 6.0
      %v4226 = vmin.f32 %v4210, 6.0
      %v4227 = vmin.f32 %v4211, 6.0
      %v4228 = vmin.f32 %v4212, 6.0
      %v4229 = vmin.f32 %v4213, 6.0
      %v4230 = vmin.f32 %v4214, 6.0
      %v4231 = vmin.f32 %v4215, 6.0
      %v4232 = vmin.f32 %v4216, 6.0
      %v4233 = vmin.f32 %v4217, 6.0
      %v4234 = vmin.f32 %v4218, 6.0
      %v4235 = vmin.f32 %v4219, 6.0
      %v4236 = vmin.f32 %v4220, 6.0
      %v4237 = vmin.f32 %v4221, 6.0
      %v4238 = vmin.f32 %v4222, 6.0
      %v4255 = vrot.slane %v4223, 7
      %v4256 = vrot.slane %v4224, 7
      %v4257 = vsel %vm3044, %v4255, %v4256
      %v4258 = vrot.slane %v4225, 7
      %v4259 = vrot.slane %v4226, 7
      %v4260 = vsel %vm3044, %v4258, %v4259
      %v4261 = vrot.slane %v4227, 7
      %v4262 = vrot.slane %v4228, 7
      %v4263 = vsel %vm3044, %v4261, %v4262
      %v4264 = vrot.slane %v4229, 7
      %v4265 = vrot.slane %v4230, 7
      %v4266 = vsel %vm3044, %v4264, %v4265
      %v4267 = vrot.slane %v4231, 7
      %v4268 = vrot.slane %v4232, 7
      %v4269 = vsel %vm3044, %v4267, %v4268
      %v4270 = vrot.slane %v4233, 7
      %v4271 = vrot.slane %v4234, 7
      %v4272 = vsel %vm3044, %v4270, %v4271
      %v4273 = vrot.slane %v4235, 7
      %v4274 = vrot.slane %v4236, 7
      %v4275 = vsel %vm3044, %v4273, %v4274
      %v4276 = vrot.slane %v4237, 7
      %v4277 = vrot.slane %v4238, 7
      %v4278 = vsel %vm3044, %v4276, %v4277
      %v4279 = vld [vmem:[%s12] sm:$0xff]
      %v4280 = vld [vmem:[%s12 + $0x8] sm:$0xff]
      %v4281 = vld [vmem:[%s12 + $0x10] sm:$0xff]
      %v4282 = vld [vmem:[%s12 + $0x18] sm:$0xff]
      %v4283 = vld [vmem:[%s12 + $0x20] sm:$0xff]
      %v4284 = vld [vmem:[%s12 + $0x28] sm:$0xff]
      %v4285 = vld [vmem:[%s13] sm:$0x1]
      %v4287 = vlaneseq
      %v4288 = vshrl.u32 %v4287, 7
      %v4289 = vsub.s32 0, %v4288
      %v4290 = vrot.slane %v4285, %v4289
      %v4292 = vsel %vm3571, %v4257, 0
      %v4294 = vsel %vm3571, %v4260, 0
      %v4296 = vsel %vm3571, %v4263, 0
      %v4298 = vsel %vm3571, %v4266, 0
      %v4300 = vsel %vm3571, %v4269, 0
      %v4302 = vsel %vm3571, %v4272, 0
      %v4304 = vsel %vm3571, %v4275, 0
      %v4306 = vsel %vm3571, %v4278, 0
      %4308 = vmatprep.subr.mxu0 0.0
      %4309 = vmatpush1.msra.mxu0 %v4279
      %4310 = vmatprep.subr.mxu0 0.0
      %4311 = vmatpush1.msra.mxu0 %v4280
      %4312 = vmatprep.subr.mxu0 0.0
      %4313 = vmatpush1.msra.mxu0 %v4281
      %4314 = vmatprep.subr.mxu0 0.0
      %4315 = vmatpush1.msra.mxu0 %v4282
      %4316 = vmatprep.subr.mxu0 0.0
      %4317 = vmatpush1.msra.mxu0 %v4283
      %4318 = vmatprep.subr.mxu0 0.0
      %4319 = vmatpush1.msra.mxu0 %v4284
      %4320 = vmatprep.subr.mxu0 0.0
      %4321 = vmatpush1.msra.mxu0 0.0
      %4322 = vmatprep.subr.mxu0 0.0
      %4323 = vmatpush1.msra.mxu0 0.0
      %4324 = vmatprep.subr.mxu0 0.0
      %4325 = vmatpush1.msra.mxu0 0.0
      %4326 = vmatprep.subr.mxu0 0.0
      %4327 = vmatpush1.msra.mxu0 0.0
      %4328 = vmatprep.subr.mxu0 0.0
      %4329 = vmatpush1.msra.mxu0 0.0
      %4330 = vmatprep.subr.mxu0 0.0
      %4331 = vmatpush1.msra.mxu0 0.0
      %4332 = vmatprep.subr.mxu0 0.0
      %4333 = vmatpush1.msra.mxu0 0.0
      %4334 = vmatprep.subr.mxu0 0.0
      %4335 = vmatpush1.msra.mxu0 0.0
      %4336 = vmatprep.subr.mxu0 0.0
      %4337 = vmatpush1.msra.mxu0 0.0
      %4338 = vmatprep.subr.mxu0 0.0
      %4339 = vmatpush1.msra.mxu0 0.0
      %4340 = vmatprep.subr.mxu0 0.0
      %4341 = vmatpush1.msra.mxu0 0.0
      %4342 = vmatprep.subr.mxu0 0.0
      %4343 = vmatpush1.msra.mxu0 0.0
      %4344 = vmatprep.subr.mxu0 0.0
      %4345 = vmatpush1.msra.mxu0 0.0
      %4346 = vmatprep.subr.mxu0 0.0
      %4347 = vmatpush1.msra.mxu0 0.0
      %4348 = vmatprep.subr.mxu0 0.0
      %4349 = vmatpush1.msra.mxu0 0.0
      %4350 = vmatprep.subr.mxu0 0.0
      %4351 = vmatpush1.msra.mxu0 0.0
      %4352 = vmatprep.subr.mxu0 0.0
      %4353 = vmatpush1.msra.mxu0 0.0
      %4354 = vmatprep.subr.mxu0 0.0
      %4355 = vmatpush1.msra.mxu0 0.0
      %4356 = vmatprep.subr.mxu0 0.0
      %4357 = vmatpush1.msra.mxu0 0.0
      %4358 = vmatprep.subr.mxu0 0.0
      %4359 = vmatpush1.msra.mxu0 0.0
      %4360 = vmatprep.subr.mxu0 0.0
      %4361 = vmatpush1.msra.mxu0 0.0
      %4362 = vmatprep.subr.mxu0 0.0
      %4363 = vmatpush1.msra.mxu0 0.0
      %4364 = vmatprep.subr.mxu0 0.0
      %4365 = vmatpush1.msra.mxu0 0.0
      %4366 = vmatprep.subr.mxu0 0.0
      %4367 = vmatpush1.msra.mxu0 0.0
      %4368 = vmatprep.subr.mxu0 0.0
      %4369 = vmatpush1.msra.mxu0 0.0
      %4370 = vmatprep.subr.mxu0 0.0
      %4371 = vmatpush1.msra.mxu0 0.0
      %4372 = vmatprep.mubr.f32.mxu0 0.0
      %4373 = vmatmul.mubr.f32.gmra.mrb[0].mxu0 %v4292
      %v4374 = vpop.f32.mrb[0].mxu0
      %v4375 = vadd.f32 %v4290, %v4374
      %v4376 = vpop.f32.mrb[0].mxu0
      %4377 = vmatprep.mubr.f32.mxu0 0.0
      %4378 = vmatmul.mubr.f32.gmra.mrb[0].mxu0 %v4294
      %v4379 = vpop.f32.mrb[0].mxu0
      %v4380 = vadd.f32 %v4290, %v4379
      %v4381 = vpop.f32.mrb[0].mxu0
      %4382 = vmatprep.mubr.f32.mxu0 0.0
      %4383 = vmatmul.mubr.f32.gmra.mrb[0].mxu0 %v4296
      %v4384 = vpop.f32.mrb[0].mxu0
      %v4385 = vadd.f32 %v4290, %v4384
      %v4386 = vpop.f32.mrb[0].mxu0
      %4387 = vmatprep.mubr.f32.mxu0 0.0
      %4388 = vmatmul.mubr.f32.gmra.mrb[0].mxu0 %v4298
      %v4389 = vpop.f32.mrb[0].mxu0
      %v4390 = vadd.f32 %v4290, %v4389
      %v4391 = vpop.f32.mrb[0].mxu0
      %4392 = vmatprep.mubr.f32.mxu0 0.0
      %4393 = vmatmul.mubr.f32.gmra.mrb[0].mxu0 %v4300
      %v4394 = vpop.f32.mrb[0].mxu0
      %v4395 = vadd.f32 %v4290, %v4394
      %v4396 = vpop.f32.mrb[0].mxu0
      %4397 = vmatprep.mubr.f32.mxu0 0.0
      %4398 = vmatmul.mubr.f32.gmra.mrb[0].mxu0 %v4302
      %v4399 = vpop.f32.mrb[0].mxu0
      %v4400 = vadd.f32 %v4290, %v4399
      %v4401 = vpop.f32.mrb[0].mxu0
      %4402 = vmatprep.mubr.f32.mxu0 0.0
      %4403 = vmatmul.mubr.f32.gmra.mrb[0].mxu0 %v4304
      %v4404 = vpop.f32.mrb[0].mxu0
      %v4405 = vadd.f32 %v4290, %v4404
      %v4406 = vpop.f32.mrb[0].mxu0
      %4407 = vmatprep.mubr.f32.mxu0 0.0
      %4408 = vmatmul.mubr.f32.gmra.mrb[0].mxu0 %v4306
      %v4409 = vpop.f32.mrb[0].mxu0
      %v4410 = vadd.f32 %v4290, %v4409
      %v4411 = vpop.f32.mrb[0].mxu0
      %4412 = vdwg.mxu0
      %v4413 = vadd.f32 %v4375, %v3379
      %v4414 = vadd.f32 %v4380, %v3384
      %v4415 = vadd.f32 %v4385, %v3389
      %v4416 = vadd.f32 %v4390, %v3394
      %v4417 = vadd.f32 %v4395, %v3399
      %v4418 = vadd.f32 %v4400, %v3404
      %v4419 = vadd.f32 %v4405, %v3409
      %v4420 = vadd.f32 %v4410, %v3414
      %4421 = vst.msk [vmem:[%s467] sm:$0xff] %vm3425, %v4413
      %4422 = vst.msk [vmem:[%s467 + $0x8] sm:$0xff] %vm3425, %v4414
      %4423 = vst.msk [vmem:[%s467 + $0x10] sm:$0xff] %vm3425, %v4415
      %4424 = vst.msk [vmem:[%s467 + $0x18] sm:$0xff] %vm3425, %v4416
      %4425 = vst.msk [vmem:[%s467 + $0x20] sm:$0xff] %vm3425, %v4417
      %4426 = vst.msk [vmem:[%s467 + $0x28] sm:$0xff] %vm3425, %v4418
      %4427 = vst.msk [vmem:[%s467 + $0x30] sm:$0xff] %vm3425, %v4419
      %4428 = vst.msk [vmem:[%s467 + $0x38] sm:$0xff] %vm3425, %v4420
      %p4429 = scmp.lt.s32.totalorder %s25, 1
      %s4430 = scalar_select %p4429, %s25, 1
      %s4431 = smul.addr %s4430, 8
      %s4432 = smul.addr %s4431, 8
      %s4433 = scalar_lea.vmem %s14, %s4432
      // Predicated region
      $region77: #{_lambda_.1} parent=75 // pred_check
        %p4434 = pneg %p342
      $region78: #{_lambda_.1} parent=75 // pred_check_branch
        %4436 = sbr.rel (%p4434) target = $region80
      $region79: #{_lambda_.1} parent=75 // pred_region
        _
      $region80: #{_lambda_.1} parent=75 // pred_fallthru
        _
    $region76: #{_lambda_.1} parent=5 // pred_fallthru
      _
    %p4437 = scmp.le.s32.totalorder 2, %s20
    // Predicated region
    $region81: #{_lambda_.1} parent=5 // pred_check
      %p4438 = pneg %p4437
    $region82: #{_lambda_.1} parent=5 // pred_check_branch
      %4440 = sbr.rel (%p4438) target = $region84
    $region83: #{_lambda_.1} parent=5 // pred_region
      %s4441 = ssub.s32 %s20, 2
      // Predicated region
      $region85: #{_lambda_.1} parent=83 // pred_check
        %p4442 = pneg %p348
      $region86: #{_lambda_.1} parent=83 // pred_check_branch
        %4444 = sbr.rel (%p4442) target = $region88
      $region87: #{_lambda_.1} parent=83 // pred_region
        %p4445 = scmp.lt.s32.totalorder %s26, 1
        %s4446 = scalar_select %p4445, %s26, 1
        %s4447 = smul.addr %s4446, 8
        %s4448 = smul.addr %s4447, 8
        %s4449 = scalar_lea.vmem %s14, %s4448
      $region88: #{_lambda_.1} parent=83 // pred_fallthru
        _
    $region84: #{_lambda_.1} parent=5 // pred_fallthru
      _
  $region6: #{_lambda_.1} parent=0 // loop_footer
    %s24 = sadd.s32 1, %s20
  $region7: #{_lambda_.1} parent=0 // loop_footer_branch
    %19 = sbr.rel target = $region3
  $region8: #{_lambda_.1} parent=0 // loop_exit
    _

</llo_original>
